<compile_context>
chip_gen: v7x
topology: tpu7x:2x2x1
jax: 0.10.0
libtpu: 0.0.40
codegen_flags: <defaults>
</compile_context>

<pallas_src>
import jax
import jax.numpy as jnp
from jax.experimental import pallas as pl
from jax.experimental.pallas import tpu as pltpu

nc = 1
ndf = 64
NEG_SLOPE = 0.2
BN_EPS = 1e-5

PAIR = 2          # adjacent conv1 output positions packed per row (lane-dense out)
TM_MAX = 1024     # conv1 row tile, in paired rows (= 2048 original rows)
SB = 8            # samples per grid block in the conv2 / tail kernels
SP = 56           # rows per sample for conv2 output (49 real, padded to 8-multiple)


# ----------------------------- Pallas kernels ------------------------------ #

def _conv1_lrelu_kernel(a_ref, w_ref, o_ref):
    # a: (TM, 32) bf16   w: (32, 128) block-diagonal bf16  ->  LeakyReLU, bf16.
    y = jnp.dot(a_ref[...], w_ref[...], preferred_element_type=jnp.float32)
    o_ref[...] = jnp.where(y > 0, y, NEG_SLOPE * y).astype(o_ref.dtype)


def _conv2_stats_kernel(a_ref, w_ref, y_ref, s1_ref, s2_ref):
    # conv2 matmul for one sample block + partial BatchNorm sums.
    # a: (SB*SP, 1024) bf16   w: (1024, 128) bf16   y: (SB*SP, 128) f32.
    y = jnp.dot(a_ref[...], w_ref[...], preferred_element_type=jnp.float32)
    y_ref[...] = y
    s1_ref[0] = jnp.sum(y, axis=0, keepdims=True)
    s2_ref[0] = jnp.sum(y * y, axis=0, keepdims=True)


def _bn_lrelu_conv3_sigmoid_kernel(y_ref, scale_ref, shift_ref, w3_ref, seg_ref,
                                   o_ref):
    # BN apply -> LeakyReLU(0.2) -> conv3 (per-sample weighted reduce) -> sigmoid.
    # Padded rows are masked by zero rows of w3; padded samples are discarded
    # by the wrapper.
    yn = y_ref[...] * scale_ref[...] + shift_ref[...]
    yn = jnp.where(yn > 0, yn, NEG_SLOPE * yn)
    t = yn * w3_ref[...]                                                   # (SB*SP, 128)
    partial = jnp.dot(seg_ref[...], t, preferred_element_type=jnp.float32)  # (SB, 128)
    logit = jnp.sum(partial, axis=1, keepdims=True)                          # (SB, 1)
    z = jnp.exp(-jnp.abs(logit))                                             # stable sigmoid
    sig = jnp.where(logit >= 0, 1.0 / (1.0 + z), z / (1.0 + z))
    o_ref[...] = jnp.broadcast_to(sig, o_ref.shape)                          # lane-dense store


# ------------------------------- JAX glue ---------------------------------- #

def _round_up(v, m):
    return ((v + m - 1) // m) * m


def _im2col_nhwc(x, kh, kw, stride, pad):
    """x: (N, H, W, C) -> (N*Ho*Wo, kh*kw*C) with feature order (kh, kw, C)."""
    N, H, W, C = x.shape
    xp = jnp.pad(x, ((0, 0), (pad, pad), (pad, pad), (0, 0)))
    Ho = (H + 2 * pad - kh) // stride + 1
    Wo = (W + 2 * pad - kw) // stride + 1
    cols = []
    for i in range(kh):
        for j in range(kw):
            cols.append(xp[:, i:i + stride * Ho:stride, j:j + stride * Wo:stride, :])
    col = jnp.stack(cols, axis=3)                       # (N, Ho, Wo, kh*kw, C)
    return col.reshape(N * Ho * Wo, kh * kw * C), Ho, Wo


def discriminator_forward(x, params):
    """x: (N, nc, 28, 28) f32 (NCHW, PyTorch) -> (N, 1, 1, 1) f32 in (0, 1)."""
    w1, w2, gamma, beta, w3 = params
    N = x.shape[0]
    x_nhwc = jnp.transpose(x, (0, 2, 3, 1))             # (N, 28, 28, 1)

    # ---- Conv2d(nc, ndf, 4, 2, 1, bias=False) + LeakyReLU(0.2) ------------ #
    K1 = 4 * 4 * nc
    a1, h1, w1o = _im2col_nhwc(x_nhwc, 4, 4, 2, 1)      # (N*196, 16)
    a1 = a1.astype(jnp.bfloat16).reshape(-1, PAIR * K1)  # (N*98, 32), free reshape
    rp = a1.shape[0]
    TM = TM_MAX if rp > TM_MAX else _round_up(rp, 8)
    rp_pad = _round_up(rp, TM)
    if rp_pad != rp:
        a1 = jnp.pad(a1, ((0, rp_pad - rp), (0, 0)))

    w1m = jnp.transpose(w1, (2, 3, 1, 0)).reshape(K1, ndf).astype(jnp.bfloat16)
    z16 = jnp.zeros_like(w1m)
    w1bd = jnp.concatenate(                              # (32, 128) block-diagonal
        [jnp.concatenate([w1m, z16], axis=1),
         jnp.concatenate([z16, w1m], axis=1)], axis=0)

    y1p = pl.pallas_call(
        _conv1_lrelu_kernel,
        out_shape=jax.ShapeDtypeStruct((rp_pad, PAIR * ndf), jnp.bfloat16),
        grid=(rp_pad // TM,),
        in_specs=[pl.BlockSpec((TM, PAIR * K1), lambda i: (i, 0)),
                  pl.BlockSpec((PAIR * K1, PAIR * ndf), lambda i: (0, 0))],
        out_specs=pl.BlockSpec((TM, PAIR * ndf), lambda i: (i, 0)),
        compiler_params=pltpu.CompilerParams(dimension_semantics=("parallel",)),
    )(a1, w1bd)
    y1 = y1p[:rp].reshape(N, h1, w1o, ndf)               # NHWC, channels on lanes

    # ---- Conv2d(ndf, 2*ndf, 4, 2, 1) -> per-sample-tiled rows -------------- #
    # TODO(synk): implicit-GEMM tap loop in-kernel instead of this HBM im2col.
    K2 = 4 * 4 * ndf
    C2 = 2 * ndf
    a2, h2, w2o = _im2col_nhwc(y1, 4, 4, 2, 1)           # (N*49, 1024) bf16
    hw2 = h2 * w2o                                       # 49
    N_pad = _round_up(max(N, 1), SB)
    a2 = a2.reshape(N, hw2, K2)
    a2 = jnp.pad(a2, ((0, N_pad - N), (0, SP - hw2), (0, 0)))
    a2 = a2.reshape(N_pad * SP, K2)
    w2m = jnp.transpose(w2, (2, 3, 1, 0)).reshape(K2, C2).astype(jnp.bfloat16)

    nblk = N_pad // SB
    RB = SB * SP                                         # 448 rows per block

    y2, s1p, s2p = pl.pallas_call(
        _conv2_stats_kernel,
        out_shape=(jax.ShapeDtypeStruct((N_pad * SP, C2), jnp.float32),
                   jax.ShapeDtypeStruct((nblk, 1, C2), jnp.float32),
                   jax.ShapeDtypeStruct((nblk, 1, C2), jnp.float32)),
        grid=(nblk,),
        in_specs=[pl.BlockSpec((RB, K2), lambda i: (i, 0)),
                  pl.BlockSpec((K2, C2), lambda i: (0, 0))],
        out_specs=(pl.BlockSpec((RB, C2), lambda i: (i, 0)),
                   pl.BlockSpec((1, 1, C2), lambda i: (i, 0, 0)),
                   pl.BlockSpec((1, 1, C2), lambda i: (i, 0, 0))),
        compiler_params=pltpu.CompilerParams(dimension_semantics=("parallel",)),
    )(a2, w2m)

    # ---- train-mode BatchNorm statistics (tiny XLA reduction) -------------- #
    cnt = float(N * hw2)                                 # true row count (pads are zero)
    s1 = jnp.sum(s1p[:, 0, :], axis=0)
    s2 = jnp.sum(s2p[:, 0, :], axis=0)
    mean = s1 / cnt
    var = jnp.maximum(s2 / cnt - mean * mean, 0.0)       # biased variance
    inv = jax.lax.rsqrt(var + BN_EPS)
    scale = (gamma * inv).reshape(1, C2).astype(jnp.float32)
    shift = (beta - mean * gamma * inv).reshape(1, C2).astype(jnp.float32)

    # ---- BN + LeakyReLU + Conv2d(2*ndf, 1, 7, 1, 0) + Sigmoid -------------- #
    # conv3 weights laid out like one sample's rows, padded rows are zero;
    # tiled only SB times (constant, independent of N).
    w3r = jnp.transpose(w3[0], (1, 2, 0)).reshape(hw2, C2).astype(jnp.float32)
    w3t = jnp.tile(jnp.pad(w3r, ((0, SP - hw2), (0, 0))), (SB, 1))        # (RB, 128)
    seg = (jnp.arange(RB) // SP == jnp.arange(SB)[:, None]).astype(jnp.float32)  # (SB, RB)

    out = pl.pallas_call(
        _bn_lrelu_conv3_sigmoid_kernel,
        out_shape=jax.ShapeDtypeStruct((N_pad, 128), jnp.float32),
        grid=(nblk,),
        in_specs=[pl.BlockSpec((RB, C2), lambda i: (i, 0)),
                  pl.BlockSpec((1, C2), lambda i: (0, 0)),
                  pl.BlockSpec((1, C2), lambda i: (0, 0)),
                  pl.BlockSpec((RB, C2), lambda i: (0, 0)),
                  pl.BlockSpec((SB, RB), lambda i: (0, 0))],
        out_specs=pl.BlockSpec((SB, 128), lambda i: (i, 0)),
        compiler_params=pltpu.CompilerParams(dimension_semantics=("parallel",)),
    )(y2, scale, shift, w3t, seg)

    return out[:N, 0].reshape(N, 1, 1, 1)


def init_params(key):
    k1, k2, k3 = jax.random.split(key, 3)
    w1 = jax.random.normal(k1, (ndf, nc, 4, 4), jnp.float32) * 0.02
    w2 = jax.random.normal(k2, (ndf * 2, ndf, 4, 4), jnp.float32) * 0.02
    gamma = jnp.ones((ndf * 2,), jnp.float32)   # BatchNorm weight (default init)
    beta = jnp.zeros((ndf * 2,), jnp.float32)   # BatchNorm bias   (default init)
    w3 = jax.random.normal(k3, (1, ndf * 2, 7, 7), jnp.float32) * 0.02
    return (w1, w2, gamma, beta, w3)


if __name__ == "__main__":
    key = jax.random.PRNGKey(0)
    kx, kp = jax.random.split(key)
    # MNIST-shaped input implied by the module (28x28 -> 14 -> 7 -> 1), batch=2.
    x = jax.random.normal(kx, (2, nc, 28, 28), jnp.float32)
    params = init_params(kp)

    out = jax.jit(discriminator_forward)(x, params)
    out = jax.block_until_ready(out)

    assert out.shape == (2, 1, 1, 1), out.shape
    assert bool(jnp.all(jnp.isfinite(out)))
    assert bool(jnp.all((out > 0.0) & (out < 1.0)))
    print("KERNEL_OK")
</pallas_src>

<mosaic_0001>
module attributes {stable_mosaic.version = 11 : i64} {
  func.func @_conv1_lrelu_kernel(%arg0: i32, %arg1: memref<200x32xbf16, #tpu.memory_space<vmem>>, %arg2: memref<32x128xbf16, #tpu.memory_space<vmem>>, %arg3: memref<200x128xbf16, #tpu.memory_space<vmem>>) attributes {dimension_semantics = [#tpu.dimension_semantics<parallel>], iteration_bounds = array<i64: 1>, scalar_prefetch = 0 : i64, scratch_operands = 0 : i64, tpu.core_type = #tpu.core_type<tc>, window_params = [{transform_indices = @transform_0, window_bounds = array<i64: 200, 32>}, {pipeline_mode = #tpu.pipeline_mode<synchronous>, transform_indices = @transform_1, window_bounds = array<i64: 32, 128>}, {transform_indices = @transform_2, window_bounds = array<i64: 200, 128>}]} {
    %c0 = arith.constant 0 : index
    %c0_0 = arith.constant 0 : index
    %0 = vector.load %arg1[%c0, %c0_0] : memref<200x32xbf16, #tpu.memory_space<vmem>>, vector<200x32xbf16>
    %c0_1 = arith.constant 0 : index
    %c0_2 = arith.constant 0 : index
    %1 = vector.load %arg2[%c0_1, %c0_2] : memref<32x128xbf16, #tpu.memory_space<vmem>>, vector<32x128xbf16>
    %cst = arith.constant dense<0.000000e+00> : vector<200x128xf32>
    %2 = tpu.matmul %0, %1, %cst {dimension_numbers = #tpu.dot_dimension_numbers<[1], [0], [0], [1], [0, 0, 1, 1], [], []>} : vector<200x32xbf16>, vector<32x128xbf16>, vector<200x128xf32> -> vector<200x128xf32>
    %cst_3 = arith.constant 0.000000e+00 : f32
    %3 = vector.broadcast %cst_3 : f32 to vector<200x128xf32>
    %4 = arith.cmpf ogt, %2, %3 : vector<200x128xf32>
    %cst_4 = arith.constant 2.000000e-01 : f32
    %5 = vector.broadcast %cst_4 : f32 to vector<200x128xf32>
    %6 = arith.mulf %5, %2 : vector<200x128xf32>
    %7 = arith.select %4, %2, %6 : vector<200x128xi1>, vector<200x128xf32>
    %8 = arith.truncf %7 : vector<200x128xf32> to vector<200x128xbf16>
    %c0_5 = arith.constant 0 : index
    %c0_6 = arith.constant 0 : index
    %9 = vector.load %arg3[%c0_5, %c0_6] : memref<200x128xbf16, #tpu.memory_space<vmem>>, vector<200x128xbf16>
    tpu.vector_store %arg3[%c0_5, %c0_6], %8 {strides = array<i32>} : memref<200x128xbf16, #tpu.memory_space<vmem>>, vector<200x128xbf16>,
    return
  }
  func.func @transform_0(%arg0: i32) -> (i32, i32) {
    %c0_i32 = arith.constant 0 : i32
    %c0_i32_0 = arith.constant 0 : i32
    return %arg0, %c0_i32 : i32, i32
  }
  func.func @transform_1(%arg0: i32) -> (i32, i32) {
    %c0_i32 = arith.constant 0 : i32
    %c0_i32_0 = arith.constant 0 : i32
    %c0_i32_1 = arith.constant 0 : i32
    return %c0_i32, %c0_i32_0 : i32, i32
  }
  func.func @transform_2(%arg0: i32) -> (i32, i32) {
    %c0_i32 = arith.constant 0 : i32
    %c0_i32_0 = arith.constant 0 : i32
    return %arg0, %c0_i32 : i32, i32
  }
}

module attributes {stable_mosaic.version = 11 : i64} {
  func.func @_conv2_stats_kernel(%arg0: i32, %arg1: memref<448x1024xbf16, #tpu.memory_space<vmem>>, %arg2: memref<1024x128xbf16, #tpu.memory_space<vmem>>, %arg3: memref<448x128xf32, #tpu.memory_space<vmem>>, %arg4: memref<1x1x128xf32, #tpu.memory_space<vmem>>, %arg5: memref<1x1x128xf32, #tpu.memory_space<vmem>>) attributes {dimension_semantics = [#tpu.dimension_semantics<parallel>], iteration_bounds = array<i64: 1>, scalar_prefetch = 0 : i64, scratch_operands = 0 : i64, tpu.core_type = #tpu.core_type<tc>, window_params = [{transform_indices = @transform_0, window_bounds = array<i64: 448, 1024>}, {pipeline_mode = #tpu.pipeline_mode<synchronous>, transform_indices = @transform_1, window_bounds = array<i64: 1024, 128>}, {transform_indices = @transform_2, window_bounds = array<i64: 448, 128>}, {transform_indices = @transform_3, window_bounds = array<i64: 1, 1, 128>}, {transform_indices = @transform_4, window_bounds = array<i64: 1, 1, 128>}]} {
    %c0 = arith.constant 0 : index
    %c0_0 = arith.constant 0 : index
    %0 = vector.load %arg1[%c0, %c0_0] : memref<448x1024xbf16, #tpu.memory_space<vmem>>, vector<448x1024xbf16>
    %c0_1 = arith.constant 0 : index
    %c0_2 = arith.constant 0 : index
    %1 = vector.load %arg2[%c0_1, %c0_2] : memref<1024x128xbf16, #tpu.memory_space<vmem>>, vector<1024x128xbf16>
    %cst = arith.constant dense<0.000000e+00> : vector<448x128xf32>
    %2 = tpu.matmul %0, %1, %cst {dimension_numbers = #tpu.dot_dimension_numbers<[1], [0], [0], [1], [0, 0, 1, 1], [], []>} : vector<448x1024xbf16>, vector<1024x128xbf16>, vector<448x128xf32> -> vector<448x128xf32>
    %c0_3 = arith.constant 0 : index
    %c0_4 = arith.constant 0 : index
    %3 = vector.load %arg3[%c0_3, %c0_4] : memref<448x128xf32, #tpu.memory_space<vmem>>, vector<448x128xf32>
    tpu.vector_store %arg3[%c0_3, %c0_4], %2 {strides = array<i32>} : memref<448x128xf32, #tpu.memory_space<vmem>>, vector<448x128xf32>,
    %cst_5 = arith.constant dense<0.000000e+00> : vector<128xf32>
    %4 = vector.multi_reduction <add>, %2, %cst_5 [0] : vector<448x128xf32> to vector<128xf32>
    %5 = vector.shape_cast %4 : vector<128xf32> to vector<1x128xf32>
    %c0_6 = arith.constant 0 : index
    %c0_7 = arith.constant 0 : index
    %c0_8 = arith.constant 0 : index
    %6 = vector.load %arg4[%c0_6, %c0_7, %c0_8] : memref<1x1x128xf32, #tpu.memory_space<vmem>>, vector<1x1x128xf32>
    %7 = vector.shape_cast %6 : vector<1x1x128xf32> to vector<1x128xf32>
    %8 = vector.shape_cast %5 : vector<1x128xf32> to vector<1x1x128xf32>
    tpu.vector_store %arg4[%c0_6, %c0_7, %c0_8], %8 {strides = array<i32>} : memref<1x1x128xf32, #tpu.memory_space<vmem>>, vector<1x1x128xf32>,
    %9 = arith.mulf %2, %2 : vector<448x128xf32>
    %cst_9 = arith.constant dense<0.000000e+00> : vector<128xf32>
    %10 = vector.multi_reduction <add>, %9, %cst_9 [0] : vector<448x128xf32> to vector<128xf32>
    %11 = vector.shape_cast %10 : vector<128xf32> to vector<1x128xf32>
    %c0_10 = arith.constant 0 : index
    %c0_11 = arith.constant 0 : index
    %c0_12 = arith.constant 0 : index
    %12 = vector.load %arg5[%c0_10, %c0_11, %c0_12] : memref<1x1x128xf32, #tpu.memory_space<vmem>>, vector<1x1x128xf32>
    %13 = vector.shape_cast %12 : vector<1x1x128xf32> to vector<1x128xf32>
    %14 = vector.shape_cast %11 : vector<1x128xf32> to vector<1x1x128xf32>
    tpu.vector_store %arg5[%c0_10, %c0_11, %c0_12], %14 {strides = array<i32>} : memref<1x1x128xf32, #tpu.memory_space<vmem>>, vector<1x1x128xf32>,
    return
  }
  func.func @transform_0(%arg0: i32) -> (i32, i32) {
    %c0_i32 = arith.constant 0 : i32
    %c0_i32_0 = arith.constant 0 : i32
    return %arg0, %c0_i32 : i32, i32
  }
  func.func @transform_1(%arg0: i32) -> (i32, i32) {
    %c0_i32 = arith.constant 0 : i32
    %c0_i32_0 = arith.constant 0 : i32
    %c0_i32_1 = arith.constant 0 : i32
    return %c0_i32, %c0_i32_0 : i32, i32
  }
  func.func @transform_2(%arg0: i32) -> (i32, i32) {
    %c0_i32 = arith.constant 0 : i32
    %c0_i32_0 = arith.constant 0 : i32
    return %arg0, %c0_i32 : i32, i32
  }
  func.func @transform_3(%arg0: i32) -> (i32, i32, i32) {
    %c0_i32 = arith.constant 0 : i32
    %c0_i32_0 = arith.constant 0 : i32
    %c0_i32_1 = arith.constant 0 : i32
    return %arg0, %c0_i32, %c0_i32_0 : i32, i32, i32
  }
  func.func @transform_4(%arg0: i32) -> (i32, i32, i32) {
    %c0_i32 = arith.constant 0 : i32
    %c0_i32_0 = arith.constant 0 : i32
    %c0_i32_1 = arith.constant 0 : i32
    return %arg0, %c0_i32, %c0_i32_0 : i32, i32, i32
  }
}

module attributes {stable_mosaic.version = 11 : i64} {
  func.func @_bn_lrelu_conv3_sigmoid_kernel(%arg0: i32, %arg1: memref<448x128xf32, #tpu.memory_space<vmem>>, %arg2: memref<1x128xf32, #tpu.memory_space<vmem>>, %arg3: memref<1x128xf32, #tpu.memory_space<vmem>>, %arg4: memref<448x128xf32, #tpu.memory_space<vmem>>, %arg5: memref<8x448xf32, #tpu.memory_space<vmem>>, %arg6: memref<8x128xf32, #tpu.memory_space<vmem>>) attributes {dimension_semantics = [#tpu.dimension_semantics<parallel>], iteration_bounds = array<i64: 1>, scalar_prefetch = 0 : i64, scratch_operands = 0 : i64, tpu.core_type = #tpu.core_type<tc>, window_params = [{transform_indices = @transform_0, window_bounds = array<i64: 448, 128>}, {pipeline_mode = #tpu.pipeline_mode<synchronous>, transform_indices = @transform_1, window_bounds = array<i64: 1, 128>}, {pipeline_mode = #tpu.pipeline_mode<synchronous>, transform_indices = @transform_2, window_bounds = array<i64: 1, 128>}, {pipeline_mode = #tpu.pipeline_mode<synchronous>, transform_indices = @transform_3, window_bounds = array<i64: 448, 128>}, {pipeline_mode = #tpu.pipeline_mode<synchronous>, transform_indices = @transform_4, window_bounds = array<i64: 8, 448>}, {transform_indices = @transform_5, window_bounds = array<i64: 8, 128>}]} {
    %c0 = arith.constant 0 : index
    %c0_0 = arith.constant 0 : index
    %0 = vector.load %arg1[%c0, %c0_0] : memref<448x128xf32, #tpu.memory_space<vmem>>, vector<448x128xf32>
    %c0_1 = arith.constant 0 : index
    %c0_2 = arith.constant 0 : index
    %1 = vector.load %arg2[%c0_1, %c0_2] : memref<1x128xf32, #tpu.memory_space<vmem>>, vector<1x128xf32>
    %2 = vector.broadcast %1 : vector<1x128xf32> to vector<448x128xf32>
    %3 = arith.mulf %0, %2 : vector<448x128xf32>
    %c0_3 = arith.constant 0 : index
    %c0_4 = arith.constant 0 : index
    %4 = vector.load %arg3[%c0_3, %c0_4] : memref<1x128xf32, #tpu.memory_space<vmem>>, vector<1x128xf32>
    %5 = vector.broadcast %4 : vector<1x128xf32> to vector<448x128xf32>
    %6 = arith.addf %3, %5 : vector<448x128xf32>
    %cst = arith.constant 0.000000e+00 : f32
    %7 = vector.broadcast %cst : f32 to vector<448x128xf32>
    %8 = arith.cmpf ogt, %6, %7 : vector<448x128xf32>
    %cst_5 = arith.constant 2.000000e-01 : f32
    %9 = vector.broadcast %cst_5 : f32 to vector<448x128xf32>
    %10 = arith.mulf %9, %6 : vector<448x128xf32>
    %11 = arith.select %8, %6, %10 : vector<448x128xi1>, vector<448x128xf32>
    %c0_6 = arith.constant 0 : index
    %c0_7 = arith.constant 0 : index
    %12 = vector.load %arg4[%c0_6, %c0_7] : memref<448x128xf32, #tpu.memory_space<vmem>>, vector<448x128xf32>
    %13 = arith.mulf %11, %12 : vector<448x128xf32>
    %c0_8 = arith.constant 0 : index
    %c0_9 = arith.constant 0 : index
    %14 = vector.load %arg5[%c0_8, %c0_9] : memref<8x448xf32, #tpu.memory_space<vmem>>, vector<8x448xf32>
    %cst_10 = arith.constant dense<0.000000e+00> : vector<8x128xf32>
    %15 = tpu.matmul %14, %13, %cst_10 {dimension_numbers = #tpu.dot_dimension_numbers<[1], [0], [0], [1], [0, 0, 1, 1], [], []>} : vector<8x448xf32>, vector<448x128xf32>, vector<8x128xf32> -> vector<8x128xf32>
    %cst_11 = arith.constant dense<0.000000e+00> : vector<8xf32>
    %16 = vector.multi_reduction <add>, %15, %cst_11 [1] : vector<8x128xf32> to vector<8xf32>
    %17 = vector.shape_cast %16 : vector<8xf32> to vector<8x1xf32>
    %18 = math.absf %17 : vector<8x1xf32>
    %cst_12 = arith.constant 0.000000e+00 : f32
    %19 = vector.broadcast %cst_12 : f32 to vector<8x1xf32>
    %20 = arith.subf %19, %18 : vector<8x1xf32>
    %21 = math.exp %20 : vector<8x1xf32>
    %cst_13 = arith.constant 0.000000e+00 : f32
    %22 = vector.broadcast %cst_13 : f32 to vector<8x1xf32>
    %23 = arith.cmpf oge, %17, %22 : vector<8x1xf32>
    %cst_14 = arith.constant 1.000000e+00 : f32
    %24 = vector.broadcast %cst_14 : f32 to vector<8x1xf32>
    %25 = arith.addf %24, %21 : vector<8x1xf32>
    %cst_15 = arith.constant 1.000000e+00 : f32
    %26 = vector.broadcast %cst_15 : f32 to vector<8x1xf32>
    %27 = arith.divf %26, %25 : vector<8x1xf32>
    %cst_16 = arith.constant 1.000000e+00 : f32
    %28 = vector.broadcast %cst_16 : f32 to vector<8x1xf32>
    %29 = arith.addf %28, %21 : vector<8x1xf32>
    %30 = arith.divf %21, %29 : vector<8x1xf32>
    %31 = arith.select %23, %27, %30 : vector<8x1xi1>, vector<8x1xf32>
    %32 = vector.shape_cast %31 : vector<8x1xf32> to vector<8x1xf32>
    %33 = vector.broadcast %32 : vector<8x1xf32> to vector<8x128xf32>
    %c0_17 = arith.constant 0 : index
    %c0_18 = arith.constant 0 : index
    %34 = vector.load %arg6[%c0_17, %c0_18] : memref<8x128xf32, #tpu.memory_space<vmem>>, vector<8x128xf32>
    tpu.vector_store %arg6[%c0_17, %c0_18], %33 {strides = array<i32>} : memref<8x128xf32, #tpu.memory_space<vmem>>, vector<8x128xf32>,
    return
  }
  func.func @transform_0(%arg0: i32) -> (i32, i32) {
    %c0_i32 = arith.constant 0 : i32
    %c0_i32_0 = arith.constant 0 : i32
    return %arg0, %c0_i32 : i32, i32
  }
  func.func @transform_1(%arg0: i32) -> (i32, i32) {
    %c0_i32 = arith.constant 0 : i32
    %c0_i32_0 = arith.constant 0 : i32
    %c0_i32_1 = arith.constant 0 : i32
    return %c0_i32, %c0_i32_0 : i32, i32
  }
  func.func @transform_2(%arg0: i32) -> (i32, i32) {
    %c0_i32 = arith.constant 0 : i32
    %c0_i32_0 = arith.constant 0 : i32
    %c0_i32_1 = arith.constant 0 : i32
    return %c0_i32, %c0_i32_0 : i32, i32
  }
  func.func @transform_3(%arg0: i32) -> (i32, i32) {
    %c0_i32 = arith.constant 0 : i32
    %c0_i32_0 = arith.constant 0 : i32
    %c0_i32_1 = arith.constant 0 : i32
    return %c0_i32, %c0_i32_0 : i32, i32
  }
  func.func @transform_4(%arg0: i32) -> (i32, i32) {
    %c0_i32 = arith.constant 0 : i32
    %c0_i32_0 = arith.constant 0 : i32
    %c0_i32_1 = arith.constant 0 : i32
    return %c0_i32, %c0_i32_0 : i32, i32
  }
  func.func @transform_5(%arg0: i32) -> (i32, i32) {
    %c0_i32 = arith.constant 0 : i32
    %c0_i32_0 = arith.constant 0 : i32
    return %arg0, %c0_i32 : i32, i32
  }
}

</mosaic_0001>

<llo_original>
// kernel: discriminator_forward.3
$region0: #{discriminator_forward.3}
  #allocation0 [shape = 'u32[]', space=smem, size = 0x4, offset = 0x4, fixed_abs, tag = 'smem constant byte address 0x4 - core index']
  #allocation1 [shape = 'u32[144,128]{1,0:T(1,128)}', space=vmem, size = 0x12000, scoped, tag = 'internal scratch']
  %s0 = inlined_call_operand.vmem [shape: bf16[200,32], index: 0, kind: input, shape index: {}]
  %s1 = inlined_call_operand.vmem [shape: bf16[32,128], index: 1, kind: input, shape index: {}]
  %s2 = inlined_call_operand.vmem [shape: bf16[200,128], index: 2, kind: output, shape index: {}]
  %s3 = sld [smem:[#allocation0]]
  $region18: #{discriminator_forward.3} parent=0
    _
  %s5 = ssub.s32 1, %s3
  %s6 = scalar_select 0, %s5, %s3
  // Predicated region
  $region2: #{discriminator_forward.3} parent=0 // pred_check
    _
  $region3: #{discriminator_forward.3} parent=0 // pred_check_branch
    %8 = sbr.rel (0) target = $region5
  $region4: #{discriminator_forward.3} parent=0 // pred_region
    _
  $region5: #{discriminator_forward.3} parent=0 // pred_fallthru
    _
  // Predicated region
  $region6: #{discriminator_forward.3} parent=0 // pred_check
    _
  $region7: #{discriminator_forward.3} parent=0 // pred_check_branch
    %10 = sbr.rel (0) target = $region9
  $region8: #{discriminator_forward.3} parent=0 // pred_region
    _
  $region9: #{discriminator_forward.3} parent=0 // pred_fallthru
    _
  %v12 = vld [vmem:[%s0] sm:$0xf]
  %v13 = vld [vmem:[%s0 + $0x4] sm:$0xf]
  %v14 = vld [vmem:[%s0 + $0x8] sm:$0xf]
  %v15 = vld [vmem:[%s0 + $0xc] sm:$0xf]
  %v16 = vld [vmem:[%s0 + $0x10] sm:$0xf]
  %v17 = vld [vmem:[%s0 + $0x14] sm:$0xf]
  %v18 = vld [vmem:[%s0 + $0x18] sm:$0xf]
  %v19 = vld [vmem:[%s0 + $0x1c] sm:$0xf]
  %v20 = vld [vmem:[%s0 + $0x20] sm:$0xf]
  %v21 = vld [vmem:[%s0 + $0x24] sm:$0xf]
  %v22 = vld [vmem:[%s0 + $0x28] sm:$0xf]
  %v23 = vld [vmem:[%s0 + $0x2c] sm:$0xf]
  %v24 = vld [vmem:[%s0 + $0x30] sm:$0xf]
  %v25 = vld [vmem:[%s0 + $0x34] sm:$0xf]
  %v26 = vld [vmem:[%s0 + $0x38] sm:$0xf]
  %v27 = vld [vmem:[%s0 + $0x3c] sm:$0xf]
  %v28 = vld [vmem:[%s0 + $0x40] sm:$0xf]
  %v29 = vld [vmem:[%s0 + $0x44] sm:$0xf]
  %v30 = vld [vmem:[%s0 + $0x48] sm:$0xf]
  %v31 = vld [vmem:[%s0 + $0x4c] sm:$0xf]
  %v32 = vld [vmem:[%s0 + $0x50] sm:$0xf]
  %v33 = vld [vmem:[%s0 + $0x54] sm:$0xf]
  %v34 = vld [vmem:[%s0 + $0x58] sm:$0xf]
  %v35 = vld [vmem:[%s0 + $0x5c] sm:$0xf]
  %v36 = vld [vmem:[%s0 + $0x60] sm:$0xf]
  %v37 = vld [vmem:[%s1] sm:$0xf]
  %v38 = vld [vmem:[%s1 + $0x4] sm:$0xf]
  %v39 = vld [vmem:[%s1 + $0x8] sm:$0xf]
  %v40 = vld [vmem:[%s1 + $0xc] sm:$0xf]
  %v66 = vunpack.c.l.b16 %v12
  %v67 = vunpack.c.l.b16 %v13
  %v68 = vunpack.c.l.b16 %v14
  %v69 = vunpack.c.l.b16 %v15
  %v70 = vunpack.c.l.b16 %v16
  %v71 = vunpack.c.l.b16 %v17
  %v72 = vunpack.c.l.b16 %v18
  %v73 = vunpack.c.l.b16 %v19
  %v74 = vunpack.c.l.b16 %v20
  %v75 = vunpack.c.l.b16 %v21
  %v76 = vunpack.c.l.b16 %v22
  %v77 = vunpack.c.l.b16 %v23
  %v78 = vunpack.c.l.b16 %v24
  %v79 = vunpack.c.l.b16 %v25
  %v80 = vunpack.c.l.b16 %v26
  %v81 = vunpack.c.l.b16 %v27
  %v82 = vunpack.c.l.b16 %v28
  %v83 = vunpack.c.l.b16 %v29
  %v84 = vunpack.c.l.b16 %v30
  %v85 = vunpack.c.l.b16 %v31
  %v86 = vunpack.c.l.b16 %v32
  %v87 = vunpack.c.l.b16 %v33
  %v88 = vunpack.c.l.b16 %v34
  %v89 = vunpack.c.l.b16 %v35
  %v90 = vunpack.c.l.b16 %v36
  %v91 = vpack.c.b16 %v67, %v66
  %v92 = vpack.c.b16 %v69, %v68
  %v93 = vpack.c.b16 %v71, %v70
  %v94 = vpack.c.b16 %v73, %v72
  %v95 = vpack.c.b16 %v75, %v74
  %v96 = vpack.c.b16 %v77, %v76
  %v97 = vpack.c.b16 %v79, %v78
  %v98 = vpack.c.b16 %v81, %v80
  %v99 = vpack.c.b16 %v83, %v82
  %v100 = vpack.c.b16 %v85, %v84
  %v101 = vpack.c.b16 %v87, %v86
  %v102 = vpack.c.b16 %v89, %v88
  %v103 = vpack.c.b16 %v90, %v90
  %v108 = vunpack.c.l.b16 %v37
  %v109 = vunpack.c.l.b16 %v38
  %v110 = vunpack.c.l.b16 %v39
  %v111 = vunpack.c.l.b16 %v40
  %v112 = vpack.c.b16 %v109, %v108
  %v113 = vpack.c.b16 %v111, %v110
  %vm116 = vcmask 261120
  %v118 = vsel %vm116, %v91, 0
  %v121 = vsel %vm116, %v92, 0
  %v124 = vsel %vm116, %v93, 0
  %v127 = vsel %vm116, %v94, 0
  %v130 = vsel %vm116, %v95, 0
  %v133 = vsel %vm116, %v96, 0
  %v136 = vsel %vm116, %v97, 0
  %v139 = vsel %vm116, %v98, 0
  %v142 = vsel %vm116, %v99, 0
  %v145 = vsel %vm116, %v100, 0
  %v148 = vsel %vm116, %v101, 0
  %v151 = vsel %vm116, %v102, 0
  %v154 = vsel %vm116, %v103, 0
  %156 = vmatprep.subr.bf16.mxu0 0
  %157 = vmatpush1.bf16.msra.mxu0 %v112
  %158 = vmatprep.subr.bf16.mxu0 0
  %159 = vmatpush1.bf16.msra.mxu0 %v113
  %160 = vmatprep.subr.bf16.mxu0 0
  %161 = vmatpush1.bf16.msra.mxu0 0
  %162 = vmatprep.subr.bf16.mxu0 0
  %163 = vmatpush1.bf16.msra.mxu0 0
  %164 = vmatprep.subr.bf16.mxu0 0
  %165 = vmatpush1.bf16.msra.mxu0 0
  %166 = vmatprep.subr.bf16.mxu0 0
  %167 = vmatpush1.bf16.msra.mxu0 0
  %168 = vmatprep.subr.bf16.mxu0 0
  %169 = vmatpush1.bf16.msra.mxu0 0
  %170 = vmatprep.subr.bf16.mxu0 0
  %171 = vmatpush1.bf16.msra.mxu0 0
  %172 = vmatprep.subr.bf16.mxu0 0
  %173 = vmatpush1.bf16.msra.mxu0 0
  %174 = vmatprep.subr.bf16.mxu0 0
  %175 = vmatpush1.bf16.msra.mxu0 0
  %176 = vmatprep.subr.bf16.mxu0 0
  %177 = vmatpush1.bf16.msra.mxu0 0
  %178 = vmatprep.subr.bf16.mxu0 0
  %179 = vmatpush1.bf16.msra.mxu0 0
  %180 = vmatprep.subr.bf16.mxu0 0
  %181 = vmatpush1.bf16.msra.mxu0 0
  %182 = vmatprep.subr.bf16.mxu0 0
  %183 = vmatpush1.bf16.msra.mxu0 0
  %184 = vmatprep.subr.bf16.mxu0 0
  %185 = vmatpush1.bf16.msra.mxu0 0
  %186 = vmatprep.subr.bf16.mxu0 0
  %187 = vmatpush1.bf16.msra.mxu0 0
  %188 = vmatprep.mubr.bf16.mxu0 0
  %189 = vmatmul.mubr.bf16.gmra.mrb[0].mxu0 %v118
  %v190 = vpop.f32.mrb[0].mxu0
  %v191 = vadd.f32 0.0, %v190
  %v192 = vpop.f32.mrb[0].mxu0
  %v193 = vpop.f32.mrb[0].mxu0
  %v194 = vadd.f32 0.0, %v193
  %v195 = vpop.f32.mrb[0].mxu0
  %196 = vmatprep.mubr.bf16.mxu0 0
  %197 = vmatmul.mubr.bf16.gmra.mrb[0].mxu0 %v121
  %v198 = vpop.f32.mrb[0].mxu0
  %v199 = vadd.f32 0.0, %v198
  %v200 = vpop.f32.mrb[0].mxu0
  %v201 = vpop.f32.mrb[0].mxu0
  %v202 = vadd.f32 0.0, %v201
  %v203 = vpop.f32.mrb[0].mxu0
  %204 = vmatprep.mubr.bf16.mxu0 0
  %205 = vmatmul.mubr.bf16.gmra.mrb[0].mxu0 %v124
  %v206 = vpop.f32.mrb[0].mxu0
  %v207 = vadd.f32 0.0, %v206
  %v208 = vpop.f32.mrb[0].mxu0
  %v209 = vpop.f32.mrb[0].mxu0
  %v210 = vadd.f32 0.0, %v209
  %v211 = vpop.f32.mrb[0].mxu0
  %212 = vmatprep.mubr.bf16.mxu0 0
  %213 = vmatmul.mubr.bf16.gmra.mrb[0].mxu0 %v127
  %v214 = vpop.f32.mrb[0].mxu0
  %v215 = vadd.f32 0.0, %v214
  %v216 = vpop.f32.mrb[0].mxu0
  %v217 = vpop.f32.mrb[0].mxu0
  %v218 = vadd.f32 0.0, %v217
  %v219 = vpop.f32.mrb[0].mxu0
  %220 = vmatprep.mubr.bf16.mxu0 0
  %221 = vmatmul.mubr.bf16.gmra.mrb[0].mxu0 %v130
  %v222 = vpop.f32.mrb[0].mxu0
  %v223 = vadd.f32 0.0, %v222
  %v224 = vpop.f32.mrb[0].mxu0
  %v225 = vpop.f32.mrb[0].mxu0
  %v226 = vadd.f32 0.0, %v225
  %v227 = vpop.f32.mrb[0].mxu0
  %228 = vmatprep.mubr.bf16.mxu0 0
  %229 = vmatmul.mubr.bf16.gmra.mrb[0].mxu0 %v133
  %v230 = vpop.f32.mrb[0].mxu0
  %v231 = vadd.f32 0.0, %v230
  %v232 = vpop.f32.mrb[0].mxu0
  %v233 = vpop.f32.mrb[0].mxu0
  %v234 = vadd.f32 0.0, %v233
  %v235 = vpop.f32.mrb[0].mxu0
  %236 = vmatprep.mubr.bf16.mxu0 0
  %237 = vmatmul.mubr.bf16.gmra.mrb[0].mxu0 %v136
  %v238 = vpop.f32.mrb[0].mxu0
  %v239 = vadd.f32 0.0, %v238
  %v240 = vpop.f32.mrb[0].mxu0
  %v241 = vpop.f32.mrb[0].mxu0
  %v242 = vadd.f32 0.0, %v241
  %v243 = vpop.f32.mrb[0].mxu0
  %244 = vmatprep.mubr.bf16.mxu0 0
  %245 = vmatmul.mubr.bf16.gmra.mrb[0].mxu0 %v139
  %v246 = vpop.f32.mrb[0].mxu0
  %v247 = vadd.f32 0.0, %v246
  %v248 = vpop.f32.mrb[0].mxu0
  %v249 = vpop.f32.mrb[0].mxu0
  %v250 = vadd.f32 0.0, %v249
  %v251 = vpop.f32.mrb[0].mxu0
  %252 = vmatprep.mubr.bf16.mxu0 0
  %253 = vmatmul.mubr.bf16.gmra.mrb[0].mxu0 %v142
  %v254 = vpop.f32.mrb[0].mxu0
  %v255 = vadd.f32 0.0, %v254
  %v256 = vpop.f32.mrb[0].mxu0
  %v257 = vpop.f32.mrb[0].mxu0
  %v258 = vadd.f32 0.0, %v257
  %v259 = vpop.f32.mrb[0].mxu0
  %260 = vmatprep.mubr.bf16.mxu0 0
  %261 = vmatmul.mubr.bf16.gmra.mrb[0].mxu0 %v145
  %v262 = vpop.f32.mrb[0].mxu0
  %v263 = vadd.f32 0.0, %v262
  %v264 = vpop.f32.mrb[0].mxu0
  %v265 = vpop.f32.mrb[0].mxu0
  %v266 = vadd.f32 0.0, %v265
  %v267 = vpop.f32.mrb[0].mxu0
  %268 = vmatprep.mubr.bf16.mxu0 0
  %269 = vmatmul.mubr.bf16.gmra.mrb[0].mxu0 %v148
  %v270 = vpop.f32.mrb[0].mxu0
  %v271 = vadd.f32 0.0, %v270
  %v272 = vpop.f32.mrb[0].mxu0
  %v273 = vpop.f32.mrb[0].mxu0
  %v274 = vadd.f32 0.0, %v273
  %v275 = vpop.f32.mrb[0].mxu0
  %276 = vmatprep.mubr.bf16.mxu0 0
  %277 = vmatmul.mubr.bf16.gmra.mrb[0].mxu0 %v151
  %v278 = vpop.f32.mrb[0].mxu0
  %v279 = vadd.f32 0.0, %v278
  %v280 = vpop.f32.mrb[0].mxu0
  %v281 = vpop.f32.mrb[0].mxu0
  %v282 = vadd.f32 0.0, %v281
  %v283 = vpop.f32.mrb[0].mxu0
  %284 = vmatprep.mubr.bf16.mxu0 0
  %285 = vmatmul.mubr.bf16.gmra.mrb[0].mxu0 %v154
  %v286 = vpop.f32.mrb[0].mxu0
  %v287 = vadd.f32 0.0, %v286
  %v288 = vpop.f32.mrb[0].mxu0
  %v289 = vpop.f32.mrb[0].mxu0
  %v290 = vpop.f32.mrb[0].mxu0
  %291 = vdwg.mxu0
  %vm292 = vcmp.gt.f32.partialorder %v191, 0.0
  %vm293 = vcmp.gt.f32.partialorder %v194, 0.0
  %vm294 = vcmp.gt.f32.partialorder %v199, 0.0
  %vm295 = vcmp.gt.f32.partialorder %v202, 0.0
  %vm296 = vcmp.gt.f32.partialorder %v207, 0.0
  %vm297 = vcmp.gt.f32.partialorder %v210, 0.0
  %vm298 = vcmp.gt.f32.partialorder %v215, 0.0
  %vm299 = vcmp.gt.f32.partialorder %v218, 0.0
  %vm300 = vcmp.gt.f32.partialorder %v223, 0.0
  %vm301 = vcmp.gt.f32.partialorder %v226, 0.0
  %vm302 = vcmp.gt.f32.partialorder %v231, 0.0
  %vm303 = vcmp.gt.f32.partialorder %v234, 0.0
  %vm304 = vcmp.gt.f32.partialorder %v239, 0.0
  %vm305 = vcmp.gt.f32.partialorder %v242, 0.0
  %vm306 = vcmp.gt.f32.partialorder %v247, 0.0
  %vm307 = vcmp.gt.f32.partialorder %v250, 0.0
  %vm308 = vcmp.gt.f32.partialorder %v255, 0.0
  %vm309 = vcmp.gt.f32.partialorder %v258, 0.0
  %vm310 = vcmp.gt.f32.partialorder %v263, 0.0
  %vm311 = vcmp.gt.f32.partialorder %v266, 0.0
  %vm312 = vcmp.gt.f32.partialorder %v271, 0.0
  %vm313 = vcmp.gt.f32.partialorder %v274, 0.0
  %vm314 = vcmp.gt.f32.partialorder %v279, 0.0
  %vm315 = vcmp.gt.f32.partialorder %v282, 0.0
  %vm316 = vcmp.gt.f32.partialorder %v287, 0.0
  %v317 = vmul.f32 %v191, 0.2
  %v318 = vmul.f32 %v194, 0.2
  %v319 = vmul.f32 %v199, 0.2
  %v320 = vmul.f32 %v202, 0.2
  %v321 = vmul.f32 %v207, 0.2
  %v322 = vmul.f32 %v210, 0.2
  %v323 = vmul.f32 %v215, 0.2
  %v324 = vmul.f32 %v218, 0.2
  %v325 = vmul.f32 %v223, 0.2
  %v326 = vmul.f32 %v226, 0.2
  %v327 = vmul.f32 %v231, 0.2
  %v328 = vmul.f32 %v234, 0.2
  %v329 = vmul.f32 %v239, 0.2
  %v330 = vmul.f32 %v242, 0.2
  %v331 = vmul.f32 %v247, 0.2
  %v332 = vmul.f32 %v250, 0.2
  %v333 = vmul.f32 %v255, 0.2
  %v334 = vmul.f32 %v258, 0.2
  %v335 = vmul.f32 %v263, 0.2
  %v336 = vmul.f32 %v266, 0.2
  %v337 = vmul.f32 %v271, 0.2
  %v338 = vmul.f32 %v274, 0.2
  %v339 = vmul.f32 %v279, 0.2
  %v340 = vmul.f32 %v282, 0.2
  %v341 = vmul.f32 %v287, 0.2
  %v342 = vsel %vm292, %v191, %v317
  %v343 = vsel %vm293, %v194, %v318
  %v344 = vsel %vm294, %v199, %v319
  %v345 = vsel %vm295, %v202, %v320
  %v346 = vsel %vm296, %v207, %v321
  %v347 = vsel %vm297, %v210, %v322
  %v348 = vsel %vm298, %v215, %v323
  %v349 = vsel %vm299, %v218, %v324
  %v350 = vsel %vm300, %v223, %v325
  %v351 = vsel %vm301, %v226, %v326
  %v352 = vsel %vm302, %v231, %v327
  %v353 = vsel %vm303, %v234, %v328
  %v354 = vsel %vm304, %v239, %v329
  %v355 = vsel %vm305, %v242, %v330
  %v356 = vsel %vm306, %v247, %v331
  %v357 = vsel %vm307, %v250, %v332
  %v358 = vsel %vm308, %v255, %v333
  %v359 = vsel %vm309, %v258, %v334
  %v360 = vsel %vm310, %v263, %v335
  %v361 = vsel %vm311, %v266, %v336
  %v362 = vsel %vm312, %v271, %v337
  %v363 = vsel %vm313, %v274, %v338
  %v364 = vsel %vm314, %v279, %v339
  %v365 = vsel %vm315, %v282, %v340
  %v366 = vsel %vm316, %v287, %v341
  %v367 = vpack.c.bf16 %v343, %v342
  %v368 = vpack.c.bf16 %v345, %v344
  %v369 = vpack.c.bf16 %v347, %v346
  %v370 = vpack.c.bf16 %v349, %v348
  %v371 = vpack.c.bf16 %v351, %v350
  %v372 = vpack.c.bf16 %v353, %v352
  %v373 = vpack.c.bf16 %v355, %v354
  %v374 = vpack.c.bf16 %v357, %v356
  %v375 = vpack.c.bf16 %v359, %v358
  %v376 = vpack.c.bf16 %v361, %v360
  %v377 = vpack.c.bf16 %v363, %v362
  %v378 = vpack.c.bf16 %v365, %v364
  %v379 = vpack.c.bf16 %v366, %v366
  %v393 = vunpack.c.l.b16 %v367
  %v394 = vunpack.c.h.b16 %v367
  %v395 = vunpack.c.l.b16 %v368
  %v396 = vunpack.c.h.b16 %v368
  %v397 = vunpack.c.l.b16 %v369
  %v398 = vunpack.c.h.b16 %v369
  %v399 = vunpack.c.l.b16 %v370
  %v400 = vunpack.c.h.b16 %v370
  %v401 = vunpack.c.l.b16 %v371
  %v402 = vunpack.c.h.b16 %v371
  %v403 = vunpack.c.l.b16 %v372
  %v404 = vunpack.c.h.b16 %v372
  %v405 = vunpack.c.l.b16 %v373
  %v406 = vunpack.c.h.b16 %v373
  %v407 = vunpack.c.l.b16 %v374
  %v408 = vunpack.c.h.b16 %v374
  %v409 = vunpack.c.l.b16 %v375
  %v410 = vunpack.c.h.b16 %v375
  %v411 = vunpack.c.l.b16 %v376
  %v412 = vunpack.c.h.b16 %v376
  %v413 = vunpack.c.l.b16 %v377
  %v414 = vunpack.c.h.b16 %v377
  %v415 = vunpack.c.l.b16 %v378
  %v416 = vunpack.c.h.b16 %v378
  %v417 = vunpack.c.l.b16 %v379
  %v418 = vpack.c.b16 %v393, %v393
  %v419 = vpack.c.b16 %v394, %v394
  %v420 = vpack.c.b16 %v395, %v395
  %v421 = vpack.c.b16 %v396, %v396
  %v422 = vpack.c.b16 %v397, %v397
  %v423 = vpack.c.b16 %v398, %v398
  %v424 = vpack.c.b16 %v399, %v399
  %v425 = vpack.c.b16 %v400, %v400
  %v426 = vpack.c.b16 %v401, %v401
  %v427 = vpack.c.b16 %v402, %v402
  %v428 = vpack.c.b16 %v403, %v403
  %v429 = vpack.c.b16 %v404, %v404
  %v430 = vpack.c.b16 %v405, %v405
  %v431 = vpack.c.b16 %v406, %v406
  %v432 = vpack.c.b16 %v407, %v407
  %v433 = vpack.c.b16 %v408, %v408
  %v434 = vpack.c.b16 %v409, %v409
  %v435 = vpack.c.b16 %v410, %v410
  %v436 = vpack.c.b16 %v411, %v411
  %v437 = vpack.c.b16 %v412, %v412
  %v438 = vpack.c.b16 %v413, %v413
  %v439 = vpack.c.b16 %v414, %v414
  %v440 = vpack.c.b16 %v415, %v415
  %v441 = vpack.c.b16 %v416, %v416
  %v442 = vpack.c.b16 %v417, %v417
  %468 = vst [vmem:[%s2] sm:$0xf] %v418
  %469 = vst [vmem:[%s2 + $0x4] sm:$0xf] %v419
  %470 = vst [vmem:[%s2 + $0x8] sm:$0xf] %v420
  %471 = vst [vmem:[%s2 + $0xc] sm:$0xf] %v421
  %472 = vst [vmem:[%s2 + $0x10] sm:$0xf] %v422
  %473 = vst [vmem:[%s2 + $0x14] sm:$0xf] %v423
  %474 = vst [vmem:[%s2 + $0x18] sm:$0xf] %v424
  %475 = vst [vmem:[%s2 + $0x1c] sm:$0xf] %v425
  %476 = vst [vmem:[%s2 + $0x20] sm:$0xf] %v426
  %477 = vst [vmem:[%s2 + $0x24] sm:$0xf] %v427
  %478 = vst [vmem:[%s2 + $0x28] sm:$0xf] %v428
  %479 = vst [vmem:[%s2 + $0x2c] sm:$0xf] %v429
  %480 = vst [vmem:[%s2 + $0x30] sm:$0xf] %v430
  %481 = vst [vmem:[%s2 + $0x34] sm:$0xf] %v431
  %482 = vst [vmem:[%s2 + $0x38] sm:$0xf] %v432
  %483 = vst [vmem:[%s2 + $0x3c] sm:$0xf] %v433
  %484 = vst [vmem:[%s2 + $0x40] sm:$0xf] %v434
  %485 = vst [vmem:[%s2 + $0x44] sm:$0xf] %v435
  %486 = vst [vmem:[%s2 + $0x48] sm:$0xf] %v436
  %487 = vst [vmem:[%s2 + $0x4c] sm:$0xf] %v437
  %488 = vst [vmem:[%s2 + $0x50] sm:$0xf] %v438
  %489 = vst [vmem:[%s2 + $0x54] sm:$0xf] %v439
  %490 = vst [vmem:[%s2 + $0x58] sm:$0xf] %v440
  %491 = vst [vmem:[%s2 + $0x5c] sm:$0xf] %v441
  %492 = vst [vmem:[%s2 + $0x60] sm:$0xf] %v442
  // Predicated region
  $region10: #{discriminator_forward.3} parent=0 // pred_check
    _
  $region11: #{discriminator_forward.3} parent=0 // pred_check_branch
    %494 = sbr.rel (0) target = $region13
  $region12: #{discriminator_forward.3} parent=0 // pred_region
    _
  $region13: #{discriminator_forward.3} parent=0 // pred_fallthru
    _
  // Predicated region
  $region14: #{discriminator_forward.3} parent=0 // pred_check
    _
  $region15: #{discriminator_forward.3} parent=0 // pred_check_branch
    %496 = sbr.rel (0) target = $region17
  $region16: #{discriminator_forward.3} parent=0 // pred_region
    _
  $region17: #{discriminator_forward.3} parent=0 // pred_fallthru
    _

// kernel: discriminator_forward.5
$region0: #{discriminator_forward.5}
  #allocation0 [shape = 'u32[]', space=smem, size = 0x4, offset = 0x4, fixed_abs, tag = 'smem constant byte address 0x4 - core index']
  #allocation1 [shape = 'u32[144,128]{1,0:T(1,128)}', space=vmem, size = 0x12000, scoped, tag = 'internal scratch']
  %s0 = inlined_call_operand.vmem [shape: f32[448,128], index: 0, kind: input, shape index: {}]
  %s1 = inlined_call_operand.vmem [shape: f32[1,128], index: 1, kind: input, shape index: {}]
  %s2 = inlined_call_operand.vmem [shape: f32[1,128], index: 2, kind: input, shape index: {}]
  %s3 = inlined_call_operand.vmem [shape: f32[448,128], index: 3, kind: input, shape index: {}]
  %s4 = inlined_call_operand.vmem [shape: f32[8,448], index: 4, kind: input, shape index: {}]
  %s5 = inlined_call_operand.vmem [shape: f32[8,128], index: 5, kind: output, shape index: {}]
  %s6 = sld [smem:[#allocation0]]
  $region30: #{discriminator_forward.5} parent=0
    _
  %s8 = ssub.s32 1, %s6
  %s9 = scalar_select 0, %s8, %s6
  // Predicated region
  $region2: #{discriminator_forward.5} parent=0 // pred_check
    _
  $region3: #{discriminator_forward.5} parent=0 // pred_check_branch
    %11 = sbr.rel (0) target = $region5
  $region4: #{discriminator_forward.5} parent=0 // pred_region
    _
  $region5: #{discriminator_forward.5} parent=0 // pred_fallthru
    _
  // Predicated region
  $region6: #{discriminator_forward.5} parent=0 // pred_check
    _
  $region7: #{discriminator_forward.5} parent=0 // pred_check_branch
    %13 = sbr.rel (0) target = $region9
  $region8: #{discriminator_forward.5} parent=0 // pred_region
    _
  $region9: #{discriminator_forward.5} parent=0 // pred_fallthru
    _
  // Predicated region
  $region10: #{discriminator_forward.5} parent=0 // pred_check
    _
  $region11: #{discriminator_forward.5} parent=0 // pred_check_branch
    %15 = sbr.rel (0) target = $region13
  $region12: #{discriminator_forward.5} parent=0 // pred_region
    _
  $region13: #{discriminator_forward.5} parent=0 // pred_fallthru
    _
  // Predicated region
  $region14: #{discriminator_forward.5} parent=0 // pred_check
    _
  $region15: #{discriminator_forward.5} parent=0 // pred_check_branch
    %17 = sbr.rel (0) target = $region17
  $region16: #{discriminator_forward.5} parent=0 // pred_region
    _
  $region17: #{discriminator_forward.5} parent=0 // pred_fallthru
    _
  // Predicated region
  $region18: #{discriminator_forward.5} parent=0 // pred_check
    _
  $region19: #{discriminator_forward.5} parent=0 // pred_check_branch
    %19 = sbr.rel (0) target = $region21
  $region20: #{discriminator_forward.5} parent=0 // pred_region
    _
  $region21: #{discriminator_forward.5} parent=0 // pred_fallthru
    _
  %v20 = vld [vmem:[%s0] sm:$0xff]
  %v21 = vld [vmem:[%s0 + $0x8] sm:$0xff]
  %v22 = vld [vmem:[%s0 + $0x10] sm:$0xff]
  %v23 = vld [vmem:[%s0 + $0x18] sm:$0xff]
  %v24 = vld [vmem:[%s0 + $0x20] sm:$0xff]
  %v25 = vld [vmem:[%s0 + $0x28] sm:$0xff]
  %v26 = vld [vmem:[%s0 + $0x30] sm:$0xff]
  %v27 = vld [vmem:[%s0 + $0x38] sm:$0xff]
  %v28 = vld [vmem:[%s0 + $0x40] sm:$0xff]
  %v29 = vld [vmem:[%s0 + $0x48] sm:$0xff]
  %v30 = vld [vmem:[%s0 + $0x50] sm:$0xff]
  %v31 = vld [vmem:[%s0 + $0x58] sm:$0xff]
  %v32 = vld [vmem:[%s0 + $0x60] sm:$0xff]
  %v33 = vld [vmem:[%s0 + $0x68] sm:$0xff]
  %v34 = vld [vmem:[%s0 + $0x70] sm:$0xff]
  %v35 = vld [vmem:[%s0 + $0x78] sm:$0xff]
  %v36 = vld [vmem:[%s0 + $0x80] sm:$0xff]
  %v37 = vld [vmem:[%s0 + $0x88] sm:$0xff]
  %v38 = vld [vmem:[%s0 + $0x90] sm:$0xff]
  %v39 = vld [vmem:[%s0 + $0x98] sm:$0xff]
  %v40 = vld [vmem:[%s0 + $0xa0] sm:$0xff]
  %v41 = vld [vmem:[%s0 + $0xa8] sm:$0xff]
  %v42 = vld [vmem:[%s0 + $0xb0] sm:$0xff]
  %v43 = vld [vmem:[%s0 + $0xb8] sm:$0xff]
  %v44 = vld [vmem:[%s0 + $0xc0] sm:$0xff]
  %v45 = vld [vmem:[%s0 + $0xc8] sm:$0xff]
  %v46 = vld [vmem:[%s0 + $0xd0] sm:$0xff]
  %v47 = vld [vmem:[%s0 + $0xd8] sm:$0xff]
  %v48 = vld [vmem:[%s0 + $0xe0] sm:$0xff]
  %v49 = vld [vmem:[%s0 + $0xe8] sm:$0xff]
  %v50 = vld [vmem:[%s0 + $0xf0] sm:$0xff]
  %v51 = vld [vmem:[%s0 + $0xf8] sm:$0xff]
  %v52 = vld [vmem:[%s0 + $0x100] sm:$0xff]
  %v53 = vld [vmem:[%s0 + $0x108] sm:$0xff]
  %v54 = vld [vmem:[%s0 + $0x110] sm:$0xff]
  %v55 = vld [vmem:[%s0 + $0x118] sm:$0xff]
  %v56 = vld [vmem:[%s0 + $0x120] sm:$0xff]
  %v57 = vld [vmem:[%s0 + $0x128] sm:$0xff]
  %v58 = vld [vmem:[%s0 + $0x130] sm:$0xff]
  %v59 = vld [vmem:[%s0 + $0x138] sm:$0xff]
  %v60 = vld [vmem:[%s0 + $0x140] sm:$0xff]
  %v61 = vld [vmem:[%s0 + $0x148] sm:$0xff]
  %v62 = vld [vmem:[%s0 + $0x150] sm:$0xff]
  %v63 = vld [vmem:[%s0 + $0x158] sm:$0xff]
  %v64 = vld [vmem:[%s0 + $0x160] sm:$0xff]
  %v65 = vld [vmem:[%s0 + $0x168] sm:$0xff]
  %v66 = vld [vmem:[%s0 + $0x170] sm:$0xff]
  %v67 = vld [vmem:[%s0 + $0x178] sm:$0xff]
  %v68 = vld [vmem:[%s0 + $0x180] sm:$0xff]
  %v69 = vld [vmem:[%s0 + $0x188] sm:$0xff]
  %v70 = vld [vmem:[%s0 + $0x190] sm:$0xff]
  %v71 = vld [vmem:[%s0 + $0x198] sm:$0xff]
  %v72 = vld [vmem:[%s0 + $0x1a0] sm:$0xff]
  %v73 = vld [vmem:[%s0 + $0x1a8] sm:$0xff]
  %v74 = vld [vmem:[%s0 + $0x1b0] sm:$0xff]
  %v75 = vld [vmem:[%s0 + $0x1b8] sm:$0xff]
  %v76 = vld [vmem:[%s1] sm:$0x1]
  %v78 = vlaneseq
  %v79 = vshrl.u32 %v78, 7
  %v80 = vsub.s32 0, %v79
  %v81 = vrot.slane %v76, %v80
  %v83 = vmul.f32 %v20, %v81
  %v84 = vmul.f32 %v21, %v81
  %v85 = vmul.f32 %v22, %v81
  %v86 = vmul.f32 %v23, %v81
  %v87 = vmul.f32 %v24, %v81
  %v88 = vmul.f32 %v25, %v81
  %v89 = vmul.f32 %v26, %v81
  %v90 = vmul.f32 %v27, %v81
  %v91 = vmul.f32 %v28, %v81
  %v92 = vmul.f32 %v29, %v81
  %v93 = vmul.f32 %v30, %v81
  %v94 = vmul.f32 %v31, %v81
  %v95 = vmul.f32 %v32, %v81
  %v96 = vmul.f32 %v33, %v81
  %v97 = vmul.f32 %v34, %v81
  %v98 = vmul.f32 %v35, %v81
  %v99 = vmul.f32 %v36, %v81
  %v100 = vmul.f32 %v37, %v81
  %v101 = vmul.f32 %v38, %v81
  %v102 = vmul.f32 %v39, %v81
  %v103 = vmul.f32 %v40, %v81
  %v104 = vmul.f32 %v41, %v81
  %v105 = vmul.f32 %v42, %v81
  %v106 = vmul.f32 %v43, %v81
  %v107 = vmul.f32 %v44, %v81
  %v108 = vmul.f32 %v45, %v81
  %v109 = vmul.f32 %v46, %v81
  %v110 = vmul.f32 %v47, %v81
  %v111 = vmul.f32 %v48, %v81
  %v112 = vmul.f32 %v49, %v81
  %v113 = vmul.f32 %v50, %v81
  %v114 = vmul.f32 %v51, %v81
  %v115 = vmul.f32 %v52, %v81
  %v116 = vmul.f32 %v53, %v81
  %v117 = vmul.f32 %v54, %v81
  %v118 = vmul.f32 %v55, %v81
  %v119 = vmul.f32 %v56, %v81
  %v120 = vmul.f32 %v57, %v81
  %v121 = vmul.f32 %v58, %v81
  %v122 = vmul.f32 %v59, %v81
  %v123 = vmul.f32 %v60, %v81
  %v124 = vmul.f32 %v61, %v81
  %v125 = vmul.f32 %v62, %v81
  %v126 = vmul.f32 %v63, %v81
  %v127 = vmul.f32 %v64, %v81
  %v128 = vmul.f32 %v65, %v81
  %v129 = vmul.f32 %v66, %v81
  %v130 = vmul.f32 %v67, %v81
  %v131 = vmul.f32 %v68, %v81
  %v132 = vmul.f32 %v69, %v81
  %v133 = vmul.f32 %v70, %v81
  %v134 = vmul.f32 %v71, %v81
  %v135 = vmul.f32 %v72, %v81
  %v136 = vmul.f32 %v73, %v81
  %v137 = vmul.f32 %v74, %v81
  %v138 = vmul.f32 %v75, %v81
  %v139 = vld [vmem:[%s2] sm:$0x1]
  %v141 = vlaneseq
  %v142 = vshrl.u32 %v141, 7
  %v143 = vsub.s32 0, %v142
  %v144 = vrot.slane %v139, %v143
  %v146 = vadd.f32 %v83, %v144
  %v147 = vadd.f32 %v84, %v144
  %v148 = vadd.f32 %v85, %v144
  %v149 = vadd.f32 %v86, %v144
  %v150 = vadd.f32 %v87, %v144
  %v151 = vadd.f32 %v88, %v144
  %v152 = vadd.f32 %v89, %v144
  %v153 = vadd.f32 %v90, %v144
  %v154 = vadd.f32 %v91, %v144
  %v155 = vadd.f32 %v92, %v144
  %v156 = vadd.f32 %v93, %v144
  %v157 = vadd.f32 %v94, %v144
  %v158 = vadd.f32 %v95, %v144
  %v159 = vadd.f32 %v96, %v144
  %v160 = vadd.f32 %v97, %v144
  %v161 = vadd.f32 %v98, %v144
  %v162 = vadd.f32 %v99, %v144
  %v163 = vadd.f32 %v100, %v144
  %v164 = vadd.f32 %v101, %v144
  %v165 = vadd.f32 %v102, %v144
  %v166 = vadd.f32 %v103, %v144
  %v167 = vadd.f32 %v104, %v144
  %v168 = vadd.f32 %v105, %v144
  %v169 = vadd.f32 %v106, %v144
  %v170 = vadd.f32 %v107, %v144
  %v171 = vadd.f32 %v108, %v144
  %v172 = vadd.f32 %v109, %v144
  %v173 = vadd.f32 %v110, %v144
  %v174 = vadd.f32 %v111, %v144
  %v175 = vadd.f32 %v112, %v144
  %v176 = vadd.f32 %v113, %v144
  %v177 = vadd.f32 %v114, %v144
  %v178 = vadd.f32 %v115, %v144
  %v179 = vadd.f32 %v116, %v144
  %v180 = vadd.f32 %v117, %v144
  %v181 = vadd.f32 %v118, %v144
  %v182 = vadd.f32 %v119, %v144
  %v183 = vadd.f32 %v120, %v144
  %v184 = vadd.f32 %v121, %v144
  %v185 = vadd.f32 %v122, %v144
  %v186 = vadd.f32 %v123, %v144
  %v187 = vadd.f32 %v124, %v144
  %v188 = vadd.f32 %v125, %v144
  %v189 = vadd.f32 %v126, %v144
  %v190 = vadd.f32 %v127, %v144
  %v191 = vadd.f32 %v128, %v144
  %v192 = vadd.f32 %v129, %v144
  %v193 = vadd.f32 %v130, %v144
  %v194 = vadd.f32 %v131, %v144
  %v195 = vadd.f32 %v132, %v144
  %v196 = vadd.f32 %v133, %v144
  %v197 = vadd.f32 %v134, %v144
  %v198 = vadd.f32 %v135, %v144
  %v199 = vadd.f32 %v136, %v144
  %v200 = vadd.f32 %v137, %v144
  %v201 = vadd.f32 %v138, %v144
  %vm202 = vcmp.gt.f32.partialorder %v146, 0.0
  %vm203 = vcmp.gt.f32.partialorder %v147, 0.0
  %vm204 = vcmp.gt.f32.partialorder %v148, 0.0
  %vm205 = vcmp.gt.f32.partialorder %v149, 0.0
  %vm206 = vcmp.gt.f32.partialorder %v150, 0.0
  %vm207 = vcmp.gt.f32.partialorder %v151, 0.0
  %vm208 = vcmp.gt.f32.partialorder %v152, 0.0
  %vm209 = vcmp.gt.f32.partialorder %v153, 0.0
  %vm210 = vcmp.gt.f32.partialorder %v154, 0.0
  %vm211 = vcmp.gt.f32.partialorder %v155, 0.0
  %vm212 = vcmp.gt.f32.partialorder %v156, 0.0
  %vm213 = vcmp.gt.f32.partialorder %v157, 0.0
  %vm214 = vcmp.gt.f32.partialorder %v158, 0.0
  %vm215 = vcmp.gt.f32.partialorder %v159, 0.0
  %vm216 = vcmp.gt.f32.partialorder %v160, 0.0
  %vm217 = vcmp.gt.f32.partialorder %v161, 0.0
  %vm218 = vcmp.gt.f32.partialorder %v162, 0.0
  %vm219 = vcmp.gt.f32.partialorder %v163, 0.0
  %vm220 = vcmp.gt.f32.partialorder %v164, 0.0
  %vm221 = vcmp.gt.f32.partialorder %v165, 0.0
  %vm222 = vcmp.gt.f32.partialorder %v166, 0.0
  %vm223 = vcmp.gt.f32.partialorder %v167, 0.0
  %vm224 = vcmp.gt.f32.partialorder %v168, 0.0
  %vm225 = vcmp.gt.f32.partialorder %v169, 0.0
  %vm226 = vcmp.gt.f32.partialorder %v170, 0.0
  %vm227 = vcmp.gt.f32.partialorder %v171, 0.0
  %vm228 = vcmp.gt.f32.partialorder %v172, 0.0
  %vm229 = vcmp.gt.f32.partialorder %v173, 0.0
  %vm230 = vcmp.gt.f32.partialorder %v174, 0.0
  %vm231 = vcmp.gt.f32.partialorder %v175, 0.0
  %vm232 = vcmp.gt.f32.partialorder %v176, 0.0
  %vm233 = vcmp.gt.f32.partialorder %v177, 0.0
  %vm234 = vcmp.gt.f32.partialorder %v178, 0.0
  %vm235 = vcmp.gt.f32.partialorder %v179, 0.0
  %vm236 = vcmp.gt.f32.partialorder %v180, 0.0
  %vm237 = vcmp.gt.f32.partialorder %v181, 0.0
  %vm238 = vcmp.gt.f32.partialorder %v182, 0.0
  %vm239 = vcmp.gt.f32.partialorder %v183, 0.0
  %vm240 = vcmp.gt.f32.partialorder %v184, 0.0
  %vm241 = vcmp.gt.f32.partialorder %v185, 0.0
  %vm242 = vcmp.gt.f32.partialorder %v186, 0.0
  %vm243 = vcmp.gt.f32.partialorder %v187, 0.0
  %vm244 = vcmp.gt.f32.partialorder %v188, 0.0
  %vm245 = vcmp.gt.f32.partialorder %v189, 0.0
  %vm246 = vcmp.gt.f32.partialorder %v190, 0.0
  %vm247 = vcmp.gt.f32.partialorder %v191, 0.0
  %vm248 = vcmp.gt.f32.partialorder %v192, 0.0
  %vm249 = vcmp.gt.f32.partialorder %v193, 0.0
  %vm250 = vcmp.gt.f32.partialorder %v194, 0.0
  %vm251 = vcmp.gt.f32.partialorder %v195, 0.0
  %vm252 = vcmp.gt.f32.partialorder %v196, 0.0
  %vm253 = vcmp.gt.f32.partialorder %v197, 0.0
  %vm254 = vcmp.gt.f32.partialorder %v198, 0.0
  %vm255 = vcmp.gt.f32.partialorder %v199, 0.0
  %vm256 = vcmp.gt.f32.partialorder %v200, 0.0
  %vm257 = vcmp.gt.f32.partialorder %v201, 0.0
  %v258 = vmul.f32 %v146, 0.2
  %v259 = vmul.f32 %v147, 0.2
  %v260 = vmul.f32 %v148, 0.2
  %v261 = vmul.f32 %v149, 0.2
  %v262 = vmul.f32 %v150, 0.2
  %v263 = vmul.f32 %v151, 0.2
  %v264 = vmul.f32 %v152, 0.2
  %v265 = vmul.f32 %v153, 0.2
  %v266 = vmul.f32 %v154, 0.2
  %v267 = vmul.f32 %v155, 0.2
  %v268 = vmul.f32 %v156, 0.2
  %v269 = vmul.f32 %v157, 0.2
  %v270 = vmul.f32 %v158, 0.2
  %v271 = vmul.f32 %v159, 0.2
  %v272 = vmul.f32 %v160, 0.2
  %v273 = vmul.f32 %v161, 0.2
  %v274 = vmul.f32 %v162, 0.2
  %v275 = vmul.f32 %v163, 0.2
  %v276 = vmul.f32 %v164, 0.2
  %v277 = vmul.f32 %v165, 0.2
  %v278 = vmul.f32 %v166, 0.2
  %v279 = vmul.f32 %v167, 0.2
  %v280 = vmul.f32 %v168, 0.2
  %v281 = vmul.f32 %v169, 0.2
  %v282 = vmul.f32 %v170, 0.2
  %v283 = vmul.f32 %v171, 0.2
  %v284 = vmul.f32 %v172, 0.2
  %v285 = vmul.f32 %v173, 0.2
  %v286 = vmul.f32 %v174, 0.2
  %v287 = vmul.f32 %v175, 0.2
  %v288 = vmul.f32 %v176, 0.2
  %v289 = vmul.f32 %v177, 0.2
  %v290 = vmul.f32 %v178, 0.2
  %v291 = vmul.f32 %v179, 0.2
  %v292 = vmul.f32 %v180, 0.2
  %v293 = vmul.f32 %v181, 0.2
  %v294 = vmul.f32 %v182, 0.2
  %v295 = vmul.f32 %v183, 0.2
  %v296 = vmul.f32 %v184, 0.2
  %v297 = vmul.f32 %v185, 0.2
  %v298 = vmul.f32 %v186, 0.2
  %v299 = vmul.f32 %v187, 0.2
  %v300 = vmul.f32 %v188, 0.2
  %v301 = vmul.f32 %v189, 0.2
  %v302 = vmul.f32 %v190, 0.2
  %v303 = vmul.f32 %v191, 0.2
  %v304 = vmul.f32 %v192, 0.2
  %v305 = vmul.f32 %v193, 0.2
  %v306 = vmul.f32 %v194, 0.2
  %v307 = vmul.f32 %v195, 0.2
  %v308 = vmul.f32 %v196, 0.2
  %v309 = vmul.f32 %v197, 0.2
  %v310 = vmul.f32 %v198, 0.2
  %v311 = vmul.f32 %v199, 0.2
  %v312 = vmul.f32 %v200, 0.2
  %v313 = vmul.f32 %v201, 0.2
  %v314 = vsel %vm202, %v146, %v258
  %v315 = vsel %vm203, %v147, %v259
  %v316 = vsel %vm204, %v148, %v260
  %v317 = vsel %vm205, %v149, %v261
  %v318 = vsel %vm206, %v150, %v262
  %v319 = vsel %vm207, %v151, %v263
  %v320 = vsel %vm208, %v152, %v264
  %v321 = vsel %vm209, %v153, %v265
  %v322 = vsel %vm210, %v154, %v266
  %v323 = vsel %vm211, %v155, %v267
  %v324 = vsel %vm212, %v156, %v268
  %v325 = vsel %vm213, %v157, %v269
  %v326 = vsel %vm214, %v158, %v270
  %v327 = vsel %vm215, %v159, %v271
  %v328 = vsel %vm216, %v160, %v272
  %v329 = vsel %vm217, %v161, %v273
  %v330 = vsel %vm218, %v162, %v274
  %v331 = vsel %vm219, %v163, %v275
  %v332 = vsel %vm220, %v164, %v276
  %v333 = vsel %vm221, %v165, %v277
  %v334 = vsel %vm222, %v166, %v278
  %v335 = vsel %vm223, %v167, %v279
  %v336 = vsel %vm224, %v168, %v280
  %v337 = vsel %vm225, %v169, %v281
  %v338 = vsel %vm226, %v170, %v282
  %v339 = vsel %vm227, %v171, %v283
  %v340 = vsel %vm228, %v172, %v284
  %v341 = vsel %vm229, %v173, %v285
  %v342 = vsel %vm230, %v174, %v286
  %v343 = vsel %vm231, %v175, %v287
  %v344 = vsel %vm232, %v176, %v288
  %v345 = vsel %vm233, %v177, %v289
  %v346 = vsel %vm234, %v178, %v290
  %v347 = vsel %vm235, %v179, %v291
  %v348 = vsel %vm236, %v180, %v292
  %v349 = vsel %vm237, %v181, %v293
  %v350 = vsel %vm238, %v182, %v294
  %v351 = vsel %vm239, %v183, %v295
  %v352 = vsel %vm240, %v184, %v296
  %v353 = vsel %vm241, %v185, %v297
  %v354 = vsel %vm242, %v186, %v298
  %v355 = vsel %vm243, %v187, %v299
  %v356 = vsel %vm244, %v188, %v300
  %v357 = vsel %vm245, %v189, %v301
  %v358 = vsel %vm246, %v190, %v302
  %v359 = vsel %vm247, %v191, %v303
  %v360 = vsel %vm248, %v192, %v304
  %v361 = vsel %vm249, %v193, %v305
  %v362 = vsel %vm250, %v194, %v306
  %v363 = vsel %vm251, %v195, %v307
  %v364 = vsel %vm252, %v196, %v308
  %v365 = vsel %vm253, %v197, %v309
  %v366 = vsel %vm254, %v198, %v310
  %v367 = vsel %vm255, %v199, %v311
  %v368 = vsel %vm256, %v200, %v312
  %v369 = vsel %vm257, %v201, %v313
  %v370 = vld [vmem:[%s3] sm:$0xff]
  %v371 = vld [vmem:[%s3 + $0x8] sm:$0xff]
  %v372 = vld [vmem:[%s3 + $0x10] sm:$0xff]
  %v373 = vld [vmem:[%s3 + $0x18] sm:$0xff]
  %v374 = vld [vmem:[%s3 + $0x20] sm:$0xff]
  %v375 = vld [vmem:[%s3 + $0x28] sm:$0xff]
  %v376 = vld [vmem:[%s3 + $0x30] sm:$0xff]
  %v377 = vld [vmem:[%s3 + $0x38] sm:$0xff]
  %v378 = vld [vmem:[%s3 + $0x40] sm:$0xff]
  %v379 = vld [vmem:[%s3 + $0x48] sm:$0xff]
  %v380 = vld [vmem:[%s3 + $0x50] sm:$0xff]
  %v381 = vld [vmem:[%s3 + $0x58] sm:$0xff]
  %v382 = vld [vmem:[%s3 + $0x60] sm:$0xff]
  %v383 = vld [vmem:[%s3 + $0x68] sm:$0xff]
  %v384 = vld [vmem:[%s3 + $0x70] sm:$0xff]
  %v385 = vld [vmem:[%s3 + $0x78] sm:$0xff]
  %v386 = vld [vmem:[%s3 + $0x80] sm:$0xff]
  %v387 = vld [vmem:[%s3 + $0x88] sm:$0xff]
  %v388 = vld [vmem:[%s3 + $0x90] sm:$0xff]
  %v389 = vld [vmem:[%s3 + $0x98] sm:$0xff]
  %v390 = vld [vmem:[%s3 + $0xa0] sm:$0xff]
  %v391 = vld [vmem:[%s3 + $0xa8] sm:$0xff]
  %v392 = vld [vmem:[%s3 + $0xb0] sm:$0xff]
  %v393 = vld [vmem:[%s3 + $0xb8] sm:$0xff]
  %v394 = vld [vmem:[%s3 + $0xc0] sm:$0xff]
  %v395 = vld [vmem:[%s3 + $0xc8] sm:$0xff]
  %v396 = vld [vmem:[%s3 + $0xd0] sm:$0xff]
  %v397 = vld [vmem:[%s3 + $0xd8] sm:$0xff]
  %v398 = vld [vmem:[%s3 + $0xe0] sm:$0xff]
  %v399 = vld [vmem:[%s3 + $0xe8] sm:$0xff]
  %v400 = vld [vmem:[%s3 + $0xf0] sm:$0xff]
  %v401 = vld [vmem:[%s3 + $0xf8] sm:$0xff]
  %v402 = vld [vmem:[%s3 + $0x100] sm:$0xff]
  %v403 = vld [vmem:[%s3 + $0x108] sm:$0xff]
  %v404 = vld [vmem:[%s3 + $0x110] sm:$0xff]
  %v405 = vld [vmem:[%s3 + $0x118] sm:$0xff]
  %v406 = vld [vmem:[%s3 + $0x120] sm:$0xff]
  %v407 = vld [vmem:[%s3 + $0x128] sm:$0xff]
  %v408 = vld [vmem:[%s3 + $0x130] sm:$0xff]
  %v409 = vld [vmem:[%s3 + $0x138] sm:$0xff]
  %v410 = vld [vmem:[%s3 + $0x140] sm:$0xff]
  %v411 = vld [vmem:[%s3 + $0x148] sm:$0xff]
  %v412 = vld [vmem:[%s3 + $0x150] sm:$0xff]
  %v413 = vld [vmem:[%s3 + $0x158] sm:$0xff]
  %v414 = vld [vmem:[%s3 + $0x160] sm:$0xff]
  %v415 = vld [vmem:[%s3 + $0x168] sm:$0xff]
  %v416 = vld [vmem:[%s3 + $0x170] sm:$0xff]
  %v417 = vld [vmem:[%s3 + $0x178] sm:$0xff]
  %v418 = vld [vmem:[%s3 + $0x180] sm:$0xff]
  %v419 = vld [vmem:[%s3 + $0x188] sm:$0xff]
  %v420 = vld [vmem:[%s3 + $0x190] sm:$0xff]
  %v421 = vld [vmem:[%s3 + $0x198] sm:$0xff]
  %v422 = vld [vmem:[%s3 + $0x1a0] sm:$0xff]
  %v423 = vld [vmem:[%s3 + $0x1a8] sm:$0xff]
  %v424 = vld [vmem:[%s3 + $0x1b0] sm:$0xff]
  %v425 = vld [vmem:[%s3 + $0x1b8] sm:$0xff]
  %v426 = vmul.f32 %v314, %v370
  %v427 = vmul.f32 %v315, %v371
  %v428 = vmul.f32 %v316, %v372
  %v429 = vmul.f32 %v317, %v373
  %v430 = vmul.f32 %v318, %v374
  %v431 = vmul.f32 %v319, %v375
  %v432 = vmul.f32 %v320, %v376
  %v433 = vmul.f32 %v321, %v377
  %v434 = vmul.f32 %v322, %v378
  %v435 = vmul.f32 %v323, %v379
  %v436 = vmul.f32 %v324, %v380
  %v437 = vmul.f32 %v325, %v381
  %v438 = vmul.f32 %v326, %v382
  %v439 = vmul.f32 %v327, %v383
  %v440 = vmul.f32 %v328, %v384
  %v441 = vmul.f32 %v329, %v385
  %v442 = vmul.f32 %v330, %v386
  %v443 = vmul.f32 %v331, %v387
  %v444 = vmul.f32 %v332, %v388
  %v445 = vmul.f32 %v333, %v389
  %v446 = vmul.f32 %v334, %v390
  %v447 = vmul.f32 %v335, %v391
  %v448 = vmul.f32 %v336, %v392
  %v449 = vmul.f32 %v337, %v393
  %v450 = vmul.f32 %v338, %v394
  %v451 = vmul.f32 %v339, %v395
  %v452 = vmul.f32 %v340, %v396
  %v453 = vmul.f32 %v341, %v397
  %v454 = vmul.f32 %v342, %v398
  %v455 = vmul.f32 %v343, %v399
  %v456 = vmul.f32 %v344, %v400
  %v457 = vmul.f32 %v345, %v401
  %v458 = vmul.f32 %v346, %v402
  %v459 = vmul.f32 %v347, %v403
  %v460 = vmul.f32 %v348, %v404
  %v461 = vmul.f32 %v349, %v405
  %v462 = vmul.f32 %v350, %v406
  %v463 = vmul.f32 %v351, %v407
  %v464 = vmul.f32 %v352, %v408
  %v465 = vmul.f32 %v353, %v409
  %v466 = vmul.f32 %v354, %v410
  %v467 = vmul.f32 %v355, %v411
  %v468 = vmul.f32 %v356, %v412
  %v469 = vmul.f32 %v357, %v413
  %v470 = vmul.f32 %v358, %v414
  %v471 = vmul.f32 %v359, %v415
  %v472 = vmul.f32 %v360, %v416
  %v473 = vmul.f32 %v361, %v417
  %v474 = vmul.f32 %v362, %v418
  %v475 = vmul.f32 %v363, %v419
  %v476 = vmul.f32 %v364, %v420
  %v477 = vmul.f32 %v365, %v421
  %v478 = vmul.f32 %v366, %v422
  %v479 = vmul.f32 %v367, %v423
  %v480 = vmul.f32 %v368, %v424
  %v481 = vmul.f32 %v369, %v425
  %v482 = vld [vmem:[%s4] sm:$0xff]
  %v483 = vld [vmem:[%s4 + $0x8] sm:$0xff]
  %v484 = vld [vmem:[%s4 + $0x10] sm:$0xff]
  %v485 = vld [vmem:[%s4 + $0x18] sm:$0xff]
  %vm486 = vcmask 523264
  %v488 = vsel %vm486, %v485, 0
  %490 = vmatprep.subr.mxu0 0.0
  %491 = vmatpush1.msra.mxu0 %v426
  %492 = vmatprep.subr.mxu0 0.0
  %493 = vmatpush1.msra.mxu0 %v427
  %494 = vmatprep.subr.mxu0 0.0
  %495 = vmatpush1.msra.mxu0 %v428
  %496 = vmatprep.subr.mxu0 0.0
  %497 = vmatpush1.msra.mxu0 %v429
  %498 = vmatprep.subr.mxu0 0.0
  %499 = vmatpush1.msra.mxu0 %v430
  %500 = vmatprep.subr.mxu0 0.0
  %501 = vmatpush1.msra.mxu0 %v431
  %502 = vmatprep.subr.mxu0 0.0
  %503 = vmatpush1.msra.mxu0 %v432
  %504 = vmatprep.subr.mxu0 0.0
  %505 = vmatpush1.msra.mxu0 %v433
  %506 = vmatprep.subr.mxu0 0.0
  %507 = vmatpush1.msra.mxu0 %v434
  %508 = vmatprep.subr.mxu0 0.0
  %509 = vmatpush1.msra.mxu0 %v435
  %510 = vmatprep.subr.mxu0 0.0
  %511 = vmatpush1.msra.mxu0 %v436
  %512 = vmatprep.subr.mxu0 0.0
  %513 = vmatpush1.msra.mxu0 %v437
  %514 = vmatprep.subr.mxu0 0.0
  %515 = vmatpush1.msra.mxu0 %v438
  %516 = vmatprep.subr.mxu0 0.0
  %517 = vmatpush1.msra.mxu0 %v439
  %518 = vmatprep.subr.mxu0 0.0
  %519 = vmatpush1.msra.mxu0 %v440
  %520 = vmatprep.subr.mxu0 0.0
  %521 = vmatpush1.msra.mxu0 %v441
  %522 = vmatprep.subr.mxu0 0.0
  %523 = vmatpush1.msra.mxu0 %v442
  %524 = vmatprep.subr.mxu0 0.0
  %525 = vmatpush1.msra.mxu0 %v443
  %526 = vmatprep.subr.mxu0 0.0
  %527 = vmatpush1.msra.mxu0 %v444
  %528 = vmatprep.subr.mxu0 0.0
  %529 = vmatpush1.msra.mxu0 %v445
  %530 = vmatprep.subr.mxu0 0.0
  %531 = vmatpush1.msra.mxu0 %v446
  %532 = vmatprep.subr.mxu0 0.0
  %533 = vmatpush1.msra.mxu0 %v447
  %534 = vmatprep.subr.mxu0 0.0
  %535 = vmatpush1.msra.mxu0 %v448
  %536 = vmatprep.subr.mxu0 0.0
  %537 = vmatpush1.msra.mxu0 %v449
  %538 = vmatprep.subr.mxu0 0.0
  %539 = vmatpush1.msra.mxu0 %v450
  %540 = vmatprep.subr.mxu0 0.0
  %541 = vmatpush1.msra.mxu0 %v451
  %542 = vmatprep.subr.mxu0 0.0
  %543 = vmatpush1.msra.mxu0 %v452
  %544 = vmatprep.subr.mxu0 0.0
  %545 = vmatpush1.msra.mxu0 %v453
  %546 = vmatprep.subr.mxu0 0.0
  %547 = vmatpush1.msra.mxu0 %v454
  %548 = vmatprep.subr.mxu0 0.0
  %549 = vmatpush1.msra.mxu0 %v455
  %550 = vmatprep.subr.mxu0 0.0
  %551 = vmatpush1.msra.mxu0 %v456
  %552 = vmatprep.subr.mxu0 0.0
  %553 = vmatpush1.msra.mxu0 %v457
  %554 = vmatprep.mubr.f32.mxu0 %v483
  %555 = vmatmul.mubr.f32.gmra.mrb[0].mxu0 %v482
  %v556 = vpop.f32.mrb[0].mxu0
  %v557 = vadd.f32 0.0, %v556
  %v558 = vpop.f32.mrb[0].mxu0
  %559 = vdwg.mxu0
  %560 = vmatprep.subr.mxu0 0.0
  %561 = vmatpush1.msra.mxu0 %v458
  %562 = vmatprep.subr.mxu0 0.0
  %563 = vmatpush1.msra.mxu0 %v459
  %564 = vmatprep.subr.mxu0 0.0
  %565 = vmatpush1.msra.mxu0 %v460
  %566 = vmatprep.subr.mxu0 0.0
  %567 = vmatpush1.msra.mxu0 %v461
  %568 = vmatprep.subr.mxu0 0.0
  %569 = vmatpush1.msra.mxu0 %v462
  %570 = vmatprep.subr.mxu0 0.0
  %571 = vmatpush1.msra.mxu0 %v463
  %572 = vmatprep.subr.mxu0 0.0
  %573 = vmatpush1.msra.mxu0 %v464
  %574 = vmatprep.subr.mxu0 0.0
  %575 = vmatpush1.msra.mxu0 %v465
  %576 = vmatprep.subr.mxu0 0.0
  %577 = vmatpush1.msra.mxu0 %v466
  %578 = vmatprep.subr.mxu0 0.0
  %579 = vmatpush1.msra.mxu0 %v467
  %580 = vmatprep.subr.mxu0 0.0
  %581 = vmatpush1.msra.mxu0 %v468
  %582 = vmatprep.subr.mxu0 0.0
  %583 = vmatpush1.msra.mxu0 %v469
  %584 = vmatprep.subr.mxu0 0.0
  %585 = vmatpush1.msra.mxu0 %v470
  %586 = vmatprep.subr.mxu0 0.0
  %587 = vmatpush1.msra.mxu0 %v471
  %588 = vmatprep.subr.mxu0 0.0
  %589 = vmatpush1.msra.mxu0 %v472
  %590 = vmatprep.subr.mxu0 0.0
  %591 = vmatpush1.msra.mxu0 %v473
  %592 = vmatprep.subr.mxu0 0.0
  %593 = vmatpush1.msra.mxu0 %v474
  %594 = vmatprep.subr.mxu0 0.0
  %595 = vmatpush1.msra.mxu0 %v475
  %596 = vmatprep.subr.mxu0 0.0
  %597 = vmatpush1.msra.mxu0 %v476
  %598 = vmatprep.subr.mxu0 0.0
  %599 = vmatpush1.msra.mxu0 %v477
  %600 = vmatprep.subr.mxu0 0.0
  %601 = vmatpush1.msra.mxu0 %v478
  %602 = vmatprep.subr.mxu0 0.0
  %603 = vmatpush1.msra.mxu0 %v479
  %604 = vmatprep.subr.mxu0 0.0
  %605 = vmatpush1.msra.mxu0 %v480
  %606 = vmatprep.subr.mxu0 0.0
  %607 = vmatpush1.msra.mxu0 %v481
  %608 = vmatprep.subr.mxu0 0.0
  %609 = vmatpush1.msra.mxu0 0.0
  %610 = vmatprep.subr.mxu0 0.0
  %611 = vmatpush1.msra.mxu0 0.0
  %612 = vmatprep.subr.mxu0 0.0
  %613 = vmatpush1.msra.mxu0 0.0
  %614 = vmatprep.subr.mxu0 0.0
  %615 = vmatpush1.msra.mxu0 0.0
  %616 = vmatprep.subr.mxu0 0.0
  %617 = vmatpush1.msra.mxu0 0.0
  %618 = vmatprep.subr.mxu0 0.0
  %619 = vmatpush1.msra.mxu0 0.0
  %620 = vmatprep.subr.mxu0 0.0
  %621 = vmatpush1.msra.mxu0 0.0
  %622 = vmatprep.subr.mxu0 0.0
  %623 = vmatpush1.msra.mxu0 0.0
  %624 = vmatprep.mubr.f32.mxu0 %v488
  %625 = vmatmul.mubr.f32.gmra.mrb[0].mxu0 %v484
  %v626 = vpop.f32.mrb[0].mxu0
  %v627 = vadd.f32 %v557, %v626
  %v628 = vpop.f32.mrb[0].mxu0
  %629 = vdwg.mxu0
  %630 = vadd.xlane.f32.xlu0 %v627
  %v631 = vpop.xlane.xlu0 %630
  %v632 = vand.u32 2147483647, %v631
  %v633 = vsub.f32 0.0, %v632
  %v634 = vmul.f32 %v633, 1.442695
  %v635 = vpow.pop %v634
  %vm636 = vcmp.ge.f32.partialorder %v631, 0.0
  %v637 = vadd.f32 %v635, 1.0
  %v638 = vrcp.pop %v637
  %v639 = vmul.f32 1.0, %v638
  %v640 = vmul.f32 %v635, %v638
  %v641 = vsel %vm636, %v639, %v640
  %642 = vst [vmem:[%s5] sm:$0xff] %v641
  // Predicated region
  $region22: #{discriminator_forward.5} parent=0 // pred_check
    _
  $region23: #{discriminator_forward.5} parent=0 // pred_check_branch
    %644 = sbr.rel (0) target = $region25
  $region24: #{discriminator_forward.5} parent=0 // pred_region
    _
  $region25: #{discriminator_forward.5} parent=0 // pred_fallthru
    _
  // Predicated region
  $region26: #{discriminator_forward.5} parent=0 // pred_check
    _
  $region27: #{discriminator_forward.5} parent=0 // pred_check_branch
    %646 = sbr.rel (0) target = $region29
  $region28: #{discriminator_forward.5} parent=0 // pred_region
    _
  $region29: #{discriminator_forward.5} parent=0 // pred_fallthru
    _

// kernel: discriminator_forward.4
$region0: #{discriminator_forward.4}
  #allocation0 [shape = 'u32[]', space=smem, size = 0x4, offset = 0x4, fixed_abs, tag = 'smem constant byte address 0x4 - core index']
  #allocation1 [shape = 'u32[144,128]{1,0:T(1,128)}', space=vmem, size = 0x12000, scoped, tag = 'internal scratch']
  %s0 = inlined_call_operand.vmem [shape: bf16[448,1024], index: 0, kind: input, shape index: {}]
  %s1 = inlined_call_operand.vmem [shape: bf16[1024,128], index: 1, kind: input, shape index: {}]
  %s2 = inlined_call_operand.vmem [shape: f32[448,128], index: 2, kind: output, shape index: {0}]
  %s3 = inlined_call_operand.vmem [shape: f32[1,1,128], index: 3, kind: output, shape index: {1}]
  %s4 = inlined_call_operand.vmem [shape: f32[1,1,128], index: 4, kind: output, shape index: {2}]
  %5 = xla_tuple %s2, %s3, %s4
  %s6 = sld [smem:[#allocation0]]
  $region34: #{discriminator_forward.4} parent=0
    _
  %s8 = ssub.s32 1, %s6
  %s9 = scalar_select 0, %s8, %s6
  // Predicated region
  $region2: #{discriminator_forward.4} parent=0 // pred_check
    _
  $region3: #{discriminator_forward.4} parent=0 // pred_check_branch
    %11 = sbr.rel (0) target = $region5
  $region4: #{discriminator_forward.4} parent=0 // pred_region
    _
  $region5: #{discriminator_forward.4} parent=0 // pred_fallthru
    _
  // Predicated region
  $region6: #{discriminator_forward.4} parent=0 // pred_check
    _
  $region7: #{discriminator_forward.4} parent=0 // pred_check_branch
    %13 = sbr.rel (0) target = $region9
  $region8: #{discriminator_forward.4} parent=0 // pred_region
    _
  $region9: #{discriminator_forward.4} parent=0 // pred_fallthru
    _
  %v15 = vld [vmem:[%s0] sm:$0xff]
  %v16 = vld [vmem:[%s0 + $0x8] sm:$0xff]
  %v17 = vld [vmem:[%s0 + $0x10] sm:$0xff]
  %v18 = vld [vmem:[%s0 + $0x18] sm:$0xff]
  %v19 = vld [vmem:[%s0 + $0x20] sm:$0xff]
  %v20 = vld [vmem:[%s0 + $0x28] sm:$0xff]
  %v21 = vld [vmem:[%s0 + $0x30] sm:$0xff]
  %v22 = vld [vmem:[%s0 + $0x38] sm:$0xff]
  %v23 = vld [vmem:[%s0 + $0x40] sm:$0xff]
  %v24 = vld [vmem:[%s0 + $0x48] sm:$0xff]
  %v25 = vld [vmem:[%s0 + $0x50] sm:$0xff]
  %v26 = vld [vmem:[%s0 + $0x58] sm:$0xff]
  %v27 = vld [vmem:[%s0 + $0x60] sm:$0xff]
  %v28 = vld [vmem:[%s0 + $0x68] sm:$0xff]
  %v29 = vld [vmem:[%s0 + $0x70] sm:$0xff]
  %v30 = vld [vmem:[%s0 + $0x78] sm:$0xff]
  %v31 = vld [vmem:[%s0 + $0x80] sm:$0xff]
  %v32 = vld [vmem:[%s0 + $0x88] sm:$0xff]
  %v33 = vld [vmem:[%s0 + $0x90] sm:$0xff]
  %v34 = vld [vmem:[%s0 + $0x98] sm:$0xff]
  %v35 = vld [vmem:[%s0 + $0xa0] sm:$0xff]
  %v36 = vld [vmem:[%s0 + $0xa8] sm:$0xff]
  %v37 = vld [vmem:[%s0 + $0xb0] sm:$0xff]
  %v38 = vld [vmem:[%s0 + $0xb8] sm:$0xff]
  %v39 = vld [vmem:[%s0 + $0xc0] sm:$0xff]
  %v40 = vld [vmem:[%s0 + $0xc8] sm:$0xff]
  %v41 = vld [vmem:[%s0 + $0xd0] sm:$0xff]
  %v42 = vld [vmem:[%s0 + $0xd8] sm:$0xff]
  %v43 = vld [vmem:[%s0 + $0xe0] sm:$0xff]
  %v44 = vld [vmem:[%s0 + $0xe8] sm:$0xff]
  %v45 = vld [vmem:[%s0 + $0xf0] sm:$0xff]
  %v46 = vld [vmem:[%s0 + $0xf8] sm:$0xff]
  %v47 = vld [vmem:[%s0 + $0x100] sm:$0xff]
  %v48 = vld [vmem:[%s0 + $0x108] sm:$0xff]
  %v49 = vld [vmem:[%s0 + $0x110] sm:$0xff]
  %v50 = vld [vmem:[%s0 + $0x118] sm:$0xff]
  %v51 = vld [vmem:[%s0 + $0x120] sm:$0xff]
  %v52 = vld [vmem:[%s0 + $0x128] sm:$0xff]
  %v53 = vld [vmem:[%s0 + $0x130] sm:$0xff]
  %v54 = vld [vmem:[%s0 + $0x138] sm:$0xff]
  %v55 = vld [vmem:[%s0 + $0x140] sm:$0xff]
  %v56 = vld [vmem:[%s0 + $0x148] sm:$0xff]
  %v57 = vld [vmem:[%s0 + $0x150] sm:$0xff]
  %v58 = vld [vmem:[%s0 + $0x158] sm:$0xff]
  %v59 = vld [vmem:[%s0 + $0x160] sm:$0xff]
  %v60 = vld [vmem:[%s0 + $0x168] sm:$0xff]
  %v61 = vld [vmem:[%s0 + $0x170] sm:$0xff]
  %v62 = vld [vmem:[%s0 + $0x178] sm:$0xff]
  %v63 = vld [vmem:[%s0 + $0x180] sm:$0xff]
  %v64 = vld [vmem:[%s0 + $0x188] sm:$0xff]
  %v65 = vld [vmem:[%s0 + $0x190] sm:$0xff]
  %v66 = vld [vmem:[%s0 + $0x198] sm:$0xff]
  %v67 = vld [vmem:[%s0 + $0x1a0] sm:$0xff]
  %v68 = vld [vmem:[%s0 + $0x1a8] sm:$0xff]
  %v69 = vld [vmem:[%s0 + $0x1b0] sm:$0xff]
  %v70 = vld [vmem:[%s0 + $0x1b8] sm:$0xff]
  %v71 = vld [vmem:[%s0 + $0x1c0] sm:$0xff]
  %v72 = vld [vmem:[%s0 + $0x1c8] sm:$0xff]
  %v73 = vld [vmem:[%s0 + $0x1d0] sm:$0xff]
  %v74 = vld [vmem:[%s0 + $0x1d8] sm:$0xff]
  %v75 = vld [vmem:[%s0 + $0x1e0] sm:$0xff]
  %v76 = vld [vmem:[%s0 + $0x1e8] sm:$0xff]
  %v77 = vld [vmem:[%s0 + $0x1f0] sm:$0xff]
  %v78 = vld [vmem:[%s0 + $0x1f8] sm:$0xff]
  %v79 = vld [vmem:[%s0 + $0x200] sm:$0xff]
  %v80 = vld [vmem:[%s0 + $0x208] sm:$0xff]
  %v81 = vld [vmem:[%s0 + $0x210] sm:$0xff]
  %v82 = vld [vmem:[%s0 + $0x218] sm:$0xff]
  %v83 = vld [vmem:[%s0 + $0x220] sm:$0xff]
  %v84 = vld [vmem:[%s0 + $0x228] sm:$0xff]
  %v85 = vld [vmem:[%s0 + $0x230] sm:$0xff]
  %v86 = vld [vmem:[%s0 + $0x238] sm:$0xff]
  %v87 = vld [vmem:[%s0 + $0x240] sm:$0xff]
  %v88 = vld [vmem:[%s0 + $0x248] sm:$0xff]
  %v89 = vld [vmem:[%s0 + $0x250] sm:$0xff]
  %v90 = vld [vmem:[%s0 + $0x258] sm:$0xff]
  %v91 = vld [vmem:[%s0 + $0x260] sm:$0xff]
  %v92 = vld [vmem:[%s0 + $0x268] sm:$0xff]
  %v93 = vld [vmem:[%s0 + $0x270] sm:$0xff]
  %v94 = vld [vmem:[%s0 + $0x278] sm:$0xff]
  %v95 = vld [vmem:[%s0 + $0x280] sm:$0xff]
  %v96 = vld [vmem:[%s0 + $0x288] sm:$0xff]
  %v97 = vld [vmem:[%s0 + $0x290] sm:$0xff]
  %v98 = vld [vmem:[%s0 + $0x298] sm:$0xff]
  %v99 = vld [vmem:[%s0 + $0x2a0] sm:$0xff]
  %v100 = vld [vmem:[%s0 + $0x2a8] sm:$0xff]
  %v101 = vld [vmem:[%s0 + $0x2b0] sm:$0xff]
  %v102 = vld [vmem:[%s0 + $0x2b8] sm:$0xff]
  %v103 = vld [vmem:[%s0 + $0x2c0] sm:$0xff]
  %v104 = vld [vmem:[%s0 + $0x2c8] sm:$0xff]
  %v105 = vld [vmem:[%s0 + $0x2d0] sm:$0xff]
  %v106 = vld [vmem:[%s0 + $0x2d8] sm:$0xff]
  %v107 = vld [vmem:[%s0 + $0x2e0] sm:$0xff]
  %v108 = vld [vmem:[%s0 + $0x2e8] sm:$0xff]
  %v109 = vld [vmem:[%s0 + $0x2f0] sm:$0xff]
  %v110 = vld [vmem:[%s0 + $0x2f8] sm:$0xff]
  %v111 = vld [vmem:[%s0 + $0x300] sm:$0xff]
  %v112 = vld [vmem:[%s0 + $0x308] sm:$0xff]
  %v113 = vld [vmem:[%s0 + $0x310] sm:$0xff]
  %v114 = vld [vmem:[%s0 + $0x318] sm:$0xff]
  %v115 = vld [vmem:[%s0 + $0x320] sm:$0xff]
  %v116 = vld [vmem:[%s0 + $0x328] sm:$0xff]
  %v117 = vld [vmem:[%s0 + $0x330] sm:$0xff]
  %v118 = vld [vmem:[%s0 + $0x338] sm:$0xff]
  %v119 = vld [vmem:[%s0 + $0x340] sm:$0xff]
  %v120 = vld [vmem:[%s0 + $0x348] sm:$0xff]
  %v121 = vld [vmem:[%s0 + $0x350] sm:$0xff]
  %v122 = vld [vmem:[%s0 + $0x358] sm:$0xff]
  %v123 = vld [vmem:[%s0 + $0x360] sm:$0xff]
  %v124 = vld [vmem:[%s0 + $0x368] sm:$0xff]
  %v125 = vld [vmem:[%s0 + $0x370] sm:$0xff]
  %v126 = vld [vmem:[%s0 + $0x378] sm:$0xff]
  %v127 = vld [vmem:[%s0 + $0x380] sm:$0xff]
  %v128 = vld [vmem:[%s0 + $0x388] sm:$0xff]
  %v129 = vld [vmem:[%s0 + $0x390] sm:$0xff]
  %v130 = vld [vmem:[%s0 + $0x398] sm:$0xff]
  %v131 = vld [vmem:[%s0 + $0x3a0] sm:$0xff]
  %v132 = vld [vmem:[%s0 + $0x3a8] sm:$0xff]
  %v133 = vld [vmem:[%s0 + $0x3b0] sm:$0xff]
  %v134 = vld [vmem:[%s0 + $0x3b8] sm:$0xff]
  %v135 = vld [vmem:[%s0 + $0x3c0] sm:$0xff]
  %v136 = vld [vmem:[%s0 + $0x3c8] sm:$0xff]
  %v137 = vld [vmem:[%s0 + $0x3d0] sm:$0xff]
  %v138 = vld [vmem:[%s0 + $0x3d8] sm:$0xff]
  %v139 = vld [vmem:[%s0 + $0x3e0] sm:$0xff]
  %v140 = vld [vmem:[%s0 + $0x3e8] sm:$0xff]
  %v141 = vld [vmem:[%s0 + $0x3f0] sm:$0xff]
  %v142 = vld [vmem:[%s0 + $0x3f8] sm:$0xff]
  %v143 = vld [vmem:[%s0 + $0x400] sm:$0xff]
  %v144 = vld [vmem:[%s0 + $0x408] sm:$0xff]
  %v145 = vld [vmem:[%s0 + $0x410] sm:$0xff]
  %v146 = vld [vmem:[%s0 + $0x418] sm:$0xff]
  %v147 = vld [vmem:[%s0 + $0x420] sm:$0xff]
  %v148 = vld [vmem:[%s0 + $0x428] sm:$0xff]
  %v149 = vld [vmem:[%s0 + $0x430] sm:$0xff]
  %v150 = vld [vmem:[%s0 + $0x438] sm:$0xff]
  %v151 = vld [vmem:[%s0 + $0x440] sm:$0xff]
  %v152 = vld [vmem:[%s0 + $0x448] sm:$0xff]
  %v153 = vld [vmem:[%s0 + $0x450] sm:$0xff]
  %v154 = vld [vmem:[%s0 + $0x458] sm:$0xff]
  %v155 = vld [vmem:[%s0 + $0x460] sm:$0xff]
  %v156 = vld [vmem:[%s0 + $0x468] sm:$0xff]
  %v157 = vld [vmem:[%s0 + $0x470] sm:$0xff]
  %v158 = vld [vmem:[%s0 + $0x478] sm:$0xff]
  %v159 = vld [vmem:[%s0 + $0x480] sm:$0xff]
  %v160 = vld [vmem:[%s0 + $0x488] sm:$0xff]
  %v161 = vld [vmem:[%s0 + $0x490] sm:$0xff]
  %v162 = vld [vmem:[%s0 + $0x498] sm:$0xff]
  %v163 = vld [vmem:[%s0 + $0x4a0] sm:$0xff]
  %v164 = vld [vmem:[%s0 + $0x4a8] sm:$0xff]
  %v165 = vld [vmem:[%s0 + $0x4b0] sm:$0xff]
  %v166 = vld [vmem:[%s0 + $0x4b8] sm:$0xff]
  %v167 = vld [vmem:[%s0 + $0x4c0] sm:$0xff]
  %v168 = vld [vmem:[%s0 + $0x4c8] sm:$0xff]
  %v169 = vld [vmem:[%s0 + $0x4d0] sm:$0xff]
  %v170 = vld [vmem:[%s0 + $0x4d8] sm:$0xff]
  %v171 = vld [vmem:[%s0 + $0x4e0] sm:$0xff]
  %v172 = vld [vmem:[%s0 + $0x4e8] sm:$0xff]
  %v173 = vld [vmem:[%s0 + $0x4f0] sm:$0xff]
  %v174 = vld [vmem:[%s0 + $0x4f8] sm:$0xff]
  %v175 = vld [vmem:[%s0 + $0x500] sm:$0xff]
  %v176 = vld [vmem:[%s0 + $0x508] sm:$0xff]
  %v177 = vld [vmem:[%s0 + $0x510] sm:$0xff]
  %v178 = vld [vmem:[%s0 + $0x518] sm:$0xff]
  %v179 = vld [vmem:[%s0 + $0x520] sm:$0xff]
  %v180 = vld [vmem:[%s0 + $0x528] sm:$0xff]
  %v181 = vld [vmem:[%s0 + $0x530] sm:$0xff]
  %v182 = vld [vmem:[%s0 + $0x538] sm:$0xff]
  %v183 = vld [vmem:[%s0 + $0x540] sm:$0xff]
  %v184 = vld [vmem:[%s0 + $0x548] sm:$0xff]
  %v185 = vld [vmem:[%s0 + $0x550] sm:$0xff]
  %v186 = vld [vmem:[%s0 + $0x558] sm:$0xff]
  %v187 = vld [vmem:[%s0 + $0x560] sm:$0xff]
  %v188 = vld [vmem:[%s0 + $0x568] sm:$0xff]
  %v189 = vld [vmem:[%s0 + $0x570] sm:$0xff]
  %v190 = vld [vmem:[%s0 + $0x578] sm:$0xff]
  %v191 = vld [vmem:[%s0 + $0x580] sm:$0xff]
  %v192 = vld [vmem:[%s0 + $0x588] sm:$0xff]
  %v193 = vld [vmem:[%s0 + $0x590] sm:$0xff]
  %v194 = vld [vmem:[%s0 + $0x598] sm:$0xff]
  %v195 = vld [vmem:[%s0 + $0x5a0] sm:$0xff]
  %v196 = vld [vmem:[%s0 + $0x5a8] sm:$0xff]
  %v197 = vld [vmem:[%s0 + $0x5b0] sm:$0xff]
  %v198 = vld [vmem:[%s0 + $0x5b8] sm:$0xff]
  %v199 = vld [vmem:[%s0 + $0x5c0] sm:$0xff]
  %v200 = vld [vmem:[%s0 + $0x5c8] sm:$0xff]
  %v201 = vld [vmem:[%s0 + $0x5d0] sm:$0xff]
  %v202 = vld [vmem:[%s0 + $0x5d8] sm:$0xff]
  %v203 = vld [vmem:[%s0 + $0x5e0] sm:$0xff]
  %v204 = vld [vmem:[%s0 + $0x5e8] sm:$0xff]
  %v205 = vld [vmem:[%s0 + $0x5f0] sm:$0xff]
  %v206 = vld [vmem:[%s0 + $0x5f8] sm:$0xff]
  %v207 = vld [vmem:[%s0 + $0x600] sm:$0xff]
  %v208 = vld [vmem:[%s0 + $0x608] sm:$0xff]
  %v209 = vld [vmem:[%s0 + $0x610] sm:$0xff]
  %v210 = vld [vmem:[%s0 + $0x618] sm:$0xff]
  %v211 = vld [vmem:[%s0 + $0x620] sm:$0xff]
  %v212 = vld [vmem:[%s0 + $0x628] sm:$0xff]
  %v213 = vld [vmem:[%s0 + $0x630] sm:$0xff]
  %v214 = vld [vmem:[%s0 + $0x638] sm:$0xff]
  %v215 = vld [vmem:[%s0 + $0x640] sm:$0xff]
  %v216 = vld [vmem:[%s0 + $0x648] sm:$0xff]
  %v217 = vld [vmem:[%s0 + $0x650] sm:$0xff]
  %v218 = vld [vmem:[%s0 + $0x658] sm:$0xff]
  %v219 = vld [vmem:[%s0 + $0x660] sm:$0xff]
  %v220 = vld [vmem:[%s0 + $0x668] sm:$0xff]
  %v221 = vld [vmem:[%s0 + $0x670] sm:$0xff]
  %v222 = vld [vmem:[%s0 + $0x678] sm:$0xff]
  %v223 = vld [vmem:[%s0 + $0x680] sm:$0xff]
  %v224 = vld [vmem:[%s0 + $0x688] sm:$0xff]
  %v225 = vld [vmem:[%s0 + $0x690] sm:$0xff]
  %v226 = vld [vmem:[%s0 + $0x698] sm:$0xff]
  %v227 = vld [vmem:[%s0 + $0x6a0] sm:$0xff]
  %v228 = vld [vmem:[%s0 + $0x6a8] sm:$0xff]
  %v229 = vld [vmem:[%s0 + $0x6b0] sm:$0xff]
  %v230 = vld [vmem:[%s0 + $0x6b8] sm:$0xff]
  %v231 = vld [vmem:[%s0 + $0x6c0] sm:$0xff]
  %v232 = vld [vmem:[%s0 + $0x6c8] sm:$0xff]
  %v233 = vld [vmem:[%s0 + $0x6d0] sm:$0xff]
  %v234 = vld [vmem:[%s0 + $0x6d8] sm:$0xff]
  %v235 = vld [vmem:[%s0 + $0x6e0] sm:$0xff]
  %v236 = vld [vmem:[%s0 + $0x6e8] sm:$0xff]
  %v237 = vld [vmem:[%s0 + $0x6f0] sm:$0xff]
  %v238 = vld [vmem:[%s0 + $0x6f8] sm:$0xff]
  %v239 = vld [vmem:[%s1] sm:$0xf]
  %v240 = vld [vmem:[%s1 + $0x4] sm:$0xf]
  %v241 = vld [vmem:[%s1 + $0x8] sm:$0xf]
  %v242 = vld [vmem:[%s1 + $0xc] sm:$0xf]
  %v243 = vld [vmem:[%s1 + $0x10] sm:$0xf]
  %v244 = vld [vmem:[%s1 + $0x14] sm:$0xf]
  %v245 = vld [vmem:[%s1 + $0x18] sm:$0xf]
  %v246 = vld [vmem:[%s1 + $0x1c] sm:$0xf]
  %v247 = vld [vmem:[%s1 + $0x20] sm:$0xf]
  %v248 = vld [vmem:[%s1 + $0x24] sm:$0xf]
  %v249 = vld [vmem:[%s1 + $0x28] sm:$0xf]
  %v250 = vld [vmem:[%s1 + $0x2c] sm:$0xf]
  %v251 = vld [vmem:[%s1 + $0x30] sm:$0xf]
  %v252 = vld [vmem:[%s1 + $0x34] sm:$0xf]
  %v253 = vld [vmem:[%s1 + $0x38] sm:$0xf]
  %v254 = vld [vmem:[%s1 + $0x3c] sm:$0xf]
  %v255 = vld [vmem:[%s1 + $0x40] sm:$0xf]
  %v256 = vld [vmem:[%s1 + $0x44] sm:$0xf]
  %v257 = vld [vmem:[%s1 + $0x48] sm:$0xf]
  %v258 = vld [vmem:[%s1 + $0x4c] sm:$0xf]
  %v259 = vld [vmem:[%s1 + $0x50] sm:$0xf]
  %v260 = vld [vmem:[%s1 + $0x54] sm:$0xf]
  %v261 = vld [vmem:[%s1 + $0x58] sm:$0xf]
  %v262 = vld [vmem:[%s1 + $0x5c] sm:$0xf]
  %v263 = vld [vmem:[%s1 + $0x60] sm:$0xf]
  %v264 = vld [vmem:[%s1 + $0x64] sm:$0xf]
  %v265 = vld [vmem:[%s1 + $0x68] sm:$0xf]
  %v266 = vld [vmem:[%s1 + $0x6c] sm:$0xf]
  %v267 = vld [vmem:[%s1 + $0x70] sm:$0xf]
  %v268 = vld [vmem:[%s1 + $0x74] sm:$0xf]
  %v269 = vld [vmem:[%s1 + $0x78] sm:$0xf]
  %v270 = vld [vmem:[%s1 + $0x7c] sm:$0xf]
  %v271 = vld [vmem:[%s1 + $0x80] sm:$0xf]
  %v272 = vld [vmem:[%s1 + $0x84] sm:$0xf]
  %v273 = vld [vmem:[%s1 + $0x88] sm:$0xf]
  %v274 = vld [vmem:[%s1 + $0x8c] sm:$0xf]
  %v275 = vld [vmem:[%s1 + $0x90] sm:$0xf]
  %v276 = vld [vmem:[%s1 + $0x94] sm:$0xf]
  %v277 = vld [vmem:[%s1 + $0x98] sm:$0xf]
  %v278 = vld [vmem:[%s1 + $0x9c] sm:$0xf]
  %v279 = vld [vmem:[%s1 + $0xa0] sm:$0xf]
  %v280 = vld [vmem:[%s1 + $0xa4] sm:$0xf]
  %v281 = vld [vmem:[%s1 + $0xa8] sm:$0xf]
  %v282 = vld [vmem:[%s1 + $0xac] sm:$0xf]
  %v283 = vld [vmem:[%s1 + $0xb0] sm:$0xf]
  %v284 = vld [vmem:[%s1 + $0xb4] sm:$0xf]
  %v285 = vld [vmem:[%s1 + $0xb8] sm:$0xf]
  %v286 = vld [vmem:[%s1 + $0xbc] sm:$0xf]
  %v287 = vld [vmem:[%s1 + $0xc0] sm:$0xf]
  %v288 = vld [vmem:[%s1 + $0xc4] sm:$0xf]
  %v289 = vld [vmem:[%s1 + $0xc8] sm:$0xf]
  %v290 = vld [vmem:[%s1 + $0xcc] sm:$0xf]
  %v291 = vld [vmem:[%s1 + $0xd0] sm:$0xf]
  %v292 = vld [vmem:[%s1 + $0xd4] sm:$0xf]
  %v293 = vld [vmem:[%s1 + $0xd8] sm:$0xf]
  %v294 = vld [vmem:[%s1 + $0xdc] sm:$0xf]
  %v295 = vld [vmem:[%s1 + $0xe0] sm:$0xf]
  %v296 = vld [vmem:[%s1 + $0xe4] sm:$0xf]
  %v297 = vld [vmem:[%s1 + $0xe8] sm:$0xf]
  %v298 = vld [vmem:[%s1 + $0xec] sm:$0xf]
  %v299 = vld [vmem:[%s1 + $0xf0] sm:$0xf]
  %v300 = vld [vmem:[%s1 + $0xf4] sm:$0xf]
  %v301 = vld [vmem:[%s1 + $0xf8] sm:$0xf]
  %v302 = vld [vmem:[%s1 + $0xfc] sm:$0xf]
  %v303 = vld [vmem:[%s1 + $0x100] sm:$0xf]
  %v304 = vld [vmem:[%s1 + $0x104] sm:$0xf]
  %v305 = vld [vmem:[%s1 + $0x108] sm:$0xf]
  %v306 = vld [vmem:[%s1 + $0x10c] sm:$0xf]
  %v307 = vld [vmem:[%s1 + $0x110] sm:$0xf]
  %v308 = vld [vmem:[%s1 + $0x114] sm:$0xf]
  %v309 = vld [vmem:[%s1 + $0x118] sm:$0xf]
  %v310 = vld [vmem:[%s1 + $0x11c] sm:$0xf]
  %v311 = vld [vmem:[%s1 + $0x120] sm:$0xf]
  %v312 = vld [vmem:[%s1 + $0x124] sm:$0xf]
  %v313 = vld [vmem:[%s1 + $0x128] sm:$0xf]
  %v314 = vld [vmem:[%s1 + $0x12c] sm:$0xf]
  %v315 = vld [vmem:[%s1 + $0x130] sm:$0xf]
  %v316 = vld [vmem:[%s1 + $0x134] sm:$0xf]
  %v317 = vld [vmem:[%s1 + $0x138] sm:$0xf]
  %v318 = vld [vmem:[%s1 + $0x13c] sm:$0xf]
  %v319 = vld [vmem:[%s1 + $0x140] sm:$0xf]
  %v320 = vld [vmem:[%s1 + $0x144] sm:$0xf]
  %v321 = vld [vmem:[%s1 + $0x148] sm:$0xf]
  %v322 = vld [vmem:[%s1 + $0x14c] sm:$0xf]
  %v323 = vld [vmem:[%s1 + $0x150] sm:$0xf]
  %v324 = vld [vmem:[%s1 + $0x154] sm:$0xf]
  %v325 = vld [vmem:[%s1 + $0x158] sm:$0xf]
  %v326 = vld [vmem:[%s1 + $0x15c] sm:$0xf]
  %v327 = vld [vmem:[%s1 + $0x160] sm:$0xf]
  %v328 = vld [vmem:[%s1 + $0x164] sm:$0xf]
  %v329 = vld [vmem:[%s1 + $0x168] sm:$0xf]
  %v330 = vld [vmem:[%s1 + $0x16c] sm:$0xf]
  %v331 = vld [vmem:[%s1 + $0x170] sm:$0xf]
  %v332 = vld [vmem:[%s1 + $0x174] sm:$0xf]
  %v333 = vld [vmem:[%s1 + $0x178] sm:$0xf]
  %v334 = vld [vmem:[%s1 + $0x17c] sm:$0xf]
  %v335 = vld [vmem:[%s1 + $0x180] sm:$0xf]
  %v336 = vld [vmem:[%s1 + $0x184] sm:$0xf]
  %v337 = vld [vmem:[%s1 + $0x188] sm:$0xf]
  %v338 = vld [vmem:[%s1 + $0x18c] sm:$0xf]
  %v339 = vld [vmem:[%s1 + $0x190] sm:$0xf]
  %v340 = vld [vmem:[%s1 + $0x194] sm:$0xf]
  %v341 = vld [vmem:[%s1 + $0x198] sm:$0xf]
  %v342 = vld [vmem:[%s1 + $0x19c] sm:$0xf]
  %v343 = vld [vmem:[%s1 + $0x1a0] sm:$0xf]
  %v344 = vld [vmem:[%s1 + $0x1a4] sm:$0xf]
  %v345 = vld [vmem:[%s1 + $0x1a8] sm:$0xf]
  %v346 = vld [vmem:[%s1 + $0x1ac] sm:$0xf]
  %v347 = vld [vmem:[%s1 + $0x1b0] sm:$0xf]
  %v348 = vld [vmem:[%s1 + $0x1b4] sm:$0xf]
  %v349 = vld [vmem:[%s1 + $0x1b8] sm:$0xf]
  %v350 = vld [vmem:[%s1 + $0x1bc] sm:$0xf]
  %v351 = vld [vmem:[%s1 + $0x1c0] sm:$0xf]
  %v352 = vld [vmem:[%s1 + $0x1c4] sm:$0xf]
  %v353 = vld [vmem:[%s1 + $0x1c8] sm:$0xf]
  %v354 = vld [vmem:[%s1 + $0x1cc] sm:$0xf]
  %v355 = vld [vmem:[%s1 + $0x1d0] sm:$0xf]
  %v356 = vld [vmem:[%s1 + $0x1d4] sm:$0xf]
  %v357 = vld [vmem:[%s1 + $0x1d8] sm:$0xf]
  %v358 = vld [vmem:[%s1 + $0x1dc] sm:$0xf]
  %v359 = vld [vmem:[%s1 + $0x1e0] sm:$0xf]
  %v360 = vld [vmem:[%s1 + $0x1e4] sm:$0xf]
  %v361 = vld [vmem:[%s1 + $0x1e8] sm:$0xf]
  %v362 = vld [vmem:[%s1 + $0x1ec] sm:$0xf]
  %v363 = vld [vmem:[%s1 + $0x1f0] sm:$0xf]
  %v364 = vld [vmem:[%s1 + $0x1f4] sm:$0xf]
  %v365 = vld [vmem:[%s1 + $0x1f8] sm:$0xf]
  %v366 = vld [vmem:[%s1 + $0x1fc] sm:$0xf]
  %v591 = vunpack.c.l.b16 %v15
  %v592 = vunpack.c.h.b16 %v15
  %v593 = vunpack.c.l.b16 %v16
  %v594 = vunpack.c.h.b16 %v16
  %v595 = vunpack.c.l.b16 %v17
  %v596 = vunpack.c.h.b16 %v17
  %v597 = vunpack.c.l.b16 %v18
  %v598 = vunpack.c.h.b16 %v18
  %v599 = vunpack.c.l.b16 %v19
  %v600 = vunpack.c.h.b16 %v19
  %v601 = vunpack.c.l.b16 %v20
  %v602 = vunpack.c.h.b16 %v20
  %v603 = vunpack.c.l.b16 %v21
  %v604 = vunpack.c.h.b16 %v21
  %v605 = vunpack.c.l.b16 %v22
  %v606 = vunpack.c.h.b16 %v22
  %v607 = vunpack.c.l.b16 %v23
  %v608 = vunpack.c.h.b16 %v23
  %v609 = vunpack.c.l.b16 %v24
  %v610 = vunpack.c.h.b16 %v24
  %v611 = vunpack.c.l.b16 %v25
  %v612 = vunpack.c.h.b16 %v25
  %v613 = vunpack.c.l.b16 %v26
  %v614 = vunpack.c.h.b16 %v26
  %v615 = vunpack.c.l.b16 %v27
  %v616 = vunpack.c.h.b16 %v27
  %v617 = vunpack.c.l.b16 %v28
  %v618 = vunpack.c.h.b16 %v28
  %v619 = vunpack.c.l.b16 %v29
  %v620 = vunpack.c.h.b16 %v29
  %v621 = vunpack.c.l.b16 %v30
  %v622 = vunpack.c.h.b16 %v30
  %v623 = vunpack.c.l.b16 %v31
  %v624 = vunpack.c.h.b16 %v31
  %v625 = vunpack.c.l.b16 %v32
  %v626 = vunpack.c.h.b16 %v32
  %v627 = vunpack.c.l.b16 %v33
  %v628 = vunpack.c.h.b16 %v33
  %v629 = vunpack.c.l.b16 %v34
  %v630 = vunpack.c.h.b16 %v34
  %v631 = vunpack.c.l.b16 %v35
  %v632 = vunpack.c.h.b16 %v35
  %v633 = vunpack.c.l.b16 %v36
  %v634 = vunpack.c.h.b16 %v36
  %v635 = vunpack.c.l.b16 %v37
  %v636 = vunpack.c.h.b16 %v37
  %v637 = vunpack.c.l.b16 %v38
  %v638 = vunpack.c.h.b16 %v38
  %v639 = vunpack.c.l.b16 %v39
  %v640 = vunpack.c.h.b16 %v39
  %v641 = vunpack.c.l.b16 %v40
  %v642 = vunpack.c.h.b16 %v40
  %v643 = vunpack.c.l.b16 %v41
  %v644 = vunpack.c.h.b16 %v41
  %v645 = vunpack.c.l.b16 %v42
  %v646 = vunpack.c.h.b16 %v42
  %v647 = vunpack.c.l.b16 %v43
  %v648 = vunpack.c.h.b16 %v43
  %v649 = vunpack.c.l.b16 %v44
  %v650 = vunpack.c.h.b16 %v44
  %v651 = vunpack.c.l.b16 %v45
  %v652 = vunpack.c.h.b16 %v45
  %v653 = vunpack.c.l.b16 %v46
  %v654 = vunpack.c.h.b16 %v46
  %v655 = vunpack.c.l.b16 %v47
  %v656 = vunpack.c.h.b16 %v47
  %v657 = vunpack.c.l.b16 %v48
  %v658 = vunpack.c.h.b16 %v48
  %v659 = vunpack.c.l.b16 %v49
  %v660 = vunpack.c.h.b16 %v49
  %v661 = vunpack.c.l.b16 %v50
  %v662 = vunpack.c.h.b16 %v50
  %v663 = vunpack.c.l.b16 %v51
  %v664 = vunpack.c.h.b16 %v51
  %v665 = vunpack.c.l.b16 %v52
  %v666 = vunpack.c.h.b16 %v52
  %v667 = vunpack.c.l.b16 %v53
  %v668 = vunpack.c.h.b16 %v53
  %v669 = vunpack.c.l.b16 %v54
  %v670 = vunpack.c.h.b16 %v54
  %v671 = vunpack.c.l.b16 %v55
  %v672 = vunpack.c.h.b16 %v55
  %v673 = vunpack.c.l.b16 %v56
  %v674 = vunpack.c.h.b16 %v56
  %v675 = vunpack.c.l.b16 %v57
  %v676 = vunpack.c.h.b16 %v57
  %v677 = vunpack.c.l.b16 %v58
  %v678 = vunpack.c.h.b16 %v58
  %v679 = vunpack.c.l.b16 %v59
  %v680 = vunpack.c.h.b16 %v59
  %v681 = vunpack.c.l.b16 %v60
  %v682 = vunpack.c.h.b16 %v60
  %v683 = vunpack.c.l.b16 %v61
  %v684 = vunpack.c.h.b16 %v61
  %v685 = vunpack.c.l.b16 %v62
  %v686 = vunpack.c.h.b16 %v62
  %v687 = vunpack.c.l.b16 %v63
  %v688 = vunpack.c.h.b16 %v63
  %v689 = vunpack.c.l.b16 %v64
  %v690 = vunpack.c.h.b16 %v64
  %v691 = vunpack.c.l.b16 %v65
  %v692 = vunpack.c.h.b16 %v65
  %v693 = vunpack.c.l.b16 %v66
  %v694 = vunpack.c.h.b16 %v66
  %v695 = vunpack.c.l.b16 %v67
  %v696 = vunpack.c.h.b16 %v67
  %v697 = vunpack.c.l.b16 %v68
  %v698 = vunpack.c.h.b16 %v68
  %v699 = vunpack.c.l.b16 %v69
  %v700 = vunpack.c.h.b16 %v69
  %v701 = vunpack.c.l.b16 %v70
  %v702 = vunpack.c.h.b16 %v70
  %v703 = vunpack.c.l.b16 %v71
  %v704 = vunpack.c.h.b16 %v71
  %v705 = vunpack.c.l.b16 %v72
  %v706 = vunpack.c.h.b16 %v72
  %v707 = vunpack.c.l.b16 %v73
  %v708 = vunpack.c.h.b16 %v73
  %v709 = vunpack.c.l.b16 %v74
  %v710 = vunpack.c.h.b16 %v74
  %v711 = vunpack.c.l.b16 %v75
  %v712 = vunpack.c.h.b16 %v75
  %v713 = vunpack.c.l.b16 %v76
  %v714 = vunpack.c.h.b16 %v76
  %v715 = vunpack.c.l.b16 %v77
  %v716 = vunpack.c.h.b16 %v77
  %v717 = vunpack.c.l.b16 %v78
  %v718 = vunpack.c.h.b16 %v78
  %v719 = vunpack.c.l.b16 %v79
  %v720 = vunpack.c.h.b16 %v79
  %v721 = vunpack.c.l.b16 %v80
  %v722 = vunpack.c.h.b16 %v80
  %v723 = vunpack.c.l.b16 %v81
  %v724 = vunpack.c.h.b16 %v81
  %v725 = vunpack.c.l.b16 %v82
  %v726 = vunpack.c.h.b16 %v82
  %v727 = vunpack.c.l.b16 %v83
  %v728 = vunpack.c.h.b16 %v83
  %v729 = vunpack.c.l.b16 %v84
  %v730 = vunpack.c.h.b16 %v84
  %v731 = vunpack.c.l.b16 %v85
  %v732 = vunpack.c.h.b16 %v85
  %v733 = vunpack.c.l.b16 %v86
  %v734 = vunpack.c.h.b16 %v86
  %v735 = vunpack.c.l.b16 %v87
  %v736 = vunpack.c.h.b16 %v87
  %v737 = vunpack.c.l.b16 %v88
  %v738 = vunpack.c.h.b16 %v88
  %v739 = vunpack.c.l.b16 %v89
  %v740 = vunpack.c.h.b16 %v89
  %v741 = vunpack.c.l.b16 %v90
  %v742 = vunpack.c.h.b16 %v90
  %v743 = vunpack.c.l.b16 %v91
  %v744 = vunpack.c.h.b16 %v91
  %v745 = vunpack.c.l.b16 %v92
  %v746 = vunpack.c.h.b16 %v92
  %v747 = vunpack.c.l.b16 %v93
  %v748 = vunpack.c.h.b16 %v93
  %v749 = vunpack.c.l.b16 %v94
  %v750 = vunpack.c.h.b16 %v94
  %v751 = vunpack.c.l.b16 %v95
  %v752 = vunpack.c.h.b16 %v95
  %v753 = vunpack.c.l.b16 %v96
  %v754 = vunpack.c.h.b16 %v96
  %v755 = vunpack.c.l.b16 %v97
  %v756 = vunpack.c.h.b16 %v97
  %v757 = vunpack.c.l.b16 %v98
  %v758 = vunpack.c.h.b16 %v98
  %v759 = vunpack.c.l.b16 %v99
  %v760 = vunpack.c.h.b16 %v99
  %v761 = vunpack.c.l.b16 %v100
  %v762 = vunpack.c.h.b16 %v100
  %v763 = vunpack.c.l.b16 %v101
  %v764 = vunpack.c.h.b16 %v101
  %v765 = vunpack.c.l.b16 %v102
  %v766 = vunpack.c.h.b16 %v102
  %v767 = vunpack.c.l.b16 %v103
  %v768 = vunpack.c.h.b16 %v103
  %v769 = vunpack.c.l.b16 %v104
  %v770 = vunpack.c.h.b16 %v104
  %v771 = vunpack.c.l.b16 %v105
  %v772 = vunpack.c.h.b16 %v105
  %v773 = vunpack.c.l.b16 %v106
  %v774 = vunpack.c.h.b16 %v106
  %v775 = vunpack.c.l.b16 %v107
  %v776 = vunpack.c.h.b16 %v107
  %v777 = vunpack.c.l.b16 %v108
  %v778 = vunpack.c.h.b16 %v108
  %v779 = vunpack.c.l.b16 %v109
  %v780 = vunpack.c.h.b16 %v109
  %v781 = vunpack.c.l.b16 %v110
  %v782 = vunpack.c.h.b16 %v110
  %v783 = vunpack.c.l.b16 %v111
  %v784 = vunpack.c.h.b16 %v111
  %v785 = vunpack.c.l.b16 %v112
  %v786 = vunpack.c.h.b16 %v112
  %v787 = vunpack.c.l.b16 %v113
  %v788 = vunpack.c.h.b16 %v113
  %v789 = vunpack.c.l.b16 %v114
  %v790 = vunpack.c.h.b16 %v114
  %v791 = vunpack.c.l.b16 %v115
  %v792 = vunpack.c.h.b16 %v115
  %v793 = vunpack.c.l.b16 %v116
  %v794 = vunpack.c.h.b16 %v116
  %v795 = vunpack.c.l.b16 %v117
  %v796 = vunpack.c.h.b16 %v117
  %v797 = vunpack.c.l.b16 %v118
  %v798 = vunpack.c.h.b16 %v118
  %v799 = vunpack.c.l.b16 %v119
  %v800 = vunpack.c.h.b16 %v119
  %v801 = vunpack.c.l.b16 %v120
  %v802 = vunpack.c.h.b16 %v120
  %v803 = vunpack.c.l.b16 %v121
  %v804 = vunpack.c.h.b16 %v121
  %v805 = vunpack.c.l.b16 %v122
  %v806 = vunpack.c.h.b16 %v122
  %v807 = vunpack.c.l.b16 %v123
  %v808 = vunpack.c.h.b16 %v123
  %v809 = vunpack.c.l.b16 %v124
  %v810 = vunpack.c.h.b16 %v124
  %v811 = vunpack.c.l.b16 %v125
  %v812 = vunpack.c.h.b16 %v125
  %v813 = vunpack.c.l.b16 %v126
  %v814 = vunpack.c.h.b16 %v126
  %v815 = vunpack.c.l.b16 %v127
  %v816 = vunpack.c.h.b16 %v127
  %v817 = vunpack.c.l.b16 %v128
  %v818 = vunpack.c.h.b16 %v128
  %v819 = vunpack.c.l.b16 %v129
  %v820 = vunpack.c.h.b16 %v129
  %v821 = vunpack.c.l.b16 %v130
  %v822 = vunpack.c.h.b16 %v130
  %v823 = vunpack.c.l.b16 %v131
  %v824 = vunpack.c.h.b16 %v131
  %v825 = vunpack.c.l.b16 %v132
  %v826 = vunpack.c.h.b16 %v132
  %v827 = vunpack.c.l.b16 %v133
  %v828 = vunpack.c.h.b16 %v133
  %v829 = vunpack.c.l.b16 %v134
  %v830 = vunpack.c.h.b16 %v134
  %v831 = vunpack.c.l.b16 %v135
  %v832 = vunpack.c.h.b16 %v135
  %v833 = vunpack.c.l.b16 %v136
  %v834 = vunpack.c.h.b16 %v136
  %v835 = vunpack.c.l.b16 %v137
  %v836 = vunpack.c.h.b16 %v137
  %v837 = vunpack.c.l.b16 %v138
  %v838 = vunpack.c.h.b16 %v138
  %v839 = vunpack.c.l.b16 %v139
  %v840 = vunpack.c.h.b16 %v139
  %v841 = vunpack.c.l.b16 %v140
  %v842 = vunpack.c.h.b16 %v140
  %v843 = vunpack.c.l.b16 %v141
  %v844 = vunpack.c.h.b16 %v141
  %v845 = vunpack.c.l.b16 %v142
  %v846 = vunpack.c.h.b16 %v142
  %v847 = vunpack.c.l.b16 %v143
  %v848 = vunpack.c.h.b16 %v143
  %v849 = vunpack.c.l.b16 %v144
  %v850 = vunpack.c.h.b16 %v144
  %v851 = vunpack.c.l.b16 %v145
  %v852 = vunpack.c.h.b16 %v145
  %v853 = vunpack.c.l.b16 %v146
  %v854 = vunpack.c.h.b16 %v146
  %v855 = vunpack.c.l.b16 %v147
  %v856 = vunpack.c.h.b16 %v147
  %v857 = vunpack.c.l.b16 %v148
  %v858 = vunpack.c.h.b16 %v148
  %v859 = vunpack.c.l.b16 %v149
  %v860 = vunpack.c.h.b16 %v149
  %v861 = vunpack.c.l.b16 %v150
  %v862 = vunpack.c.h.b16 %v150
  %v863 = vunpack.c.l.b16 %v151
  %v864 = vunpack.c.h.b16 %v151
  %v865 = vunpack.c.l.b16 %v152
  %v866 = vunpack.c.h.b16 %v152
  %v867 = vunpack.c.l.b16 %v153
  %v868 = vunpack.c.h.b16 %v153
  %v869 = vunpack.c.l.b16 %v154
  %v870 = vunpack.c.h.b16 %v154
  %v871 = vunpack.c.l.b16 %v155
  %v872 = vunpack.c.h.b16 %v155
  %v873 = vunpack.c.l.b16 %v156
  %v874 = vunpack.c.h.b16 %v156
  %v875 = vunpack.c.l.b16 %v157
  %v876 = vunpack.c.h.b16 %v157
  %v877 = vunpack.c.l.b16 %v158
  %v878 = vunpack.c.h.b16 %v158
  %v879 = vunpack.c.l.b16 %v159
  %v880 = vunpack.c.h.b16 %v159
  %v881 = vunpack.c.l.b16 %v160
  %v882 = vunpack.c.h.b16 %v160
  %v883 = vunpack.c.l.b16 %v161
  %v884 = vunpack.c.h.b16 %v161
  %v885 = vunpack.c.l.b16 %v162
  %v886 = vunpack.c.h.b16 %v162
  %v887 = vunpack.c.l.b16 %v163
  %v888 = vunpack.c.h.b16 %v163
  %v889 = vunpack.c.l.b16 %v164
  %v890 = vunpack.c.h.b16 %v164
  %v891 = vunpack.c.l.b16 %v165
  %v892 = vunpack.c.h.b16 %v165
  %v893 = vunpack.c.l.b16 %v166
  %v894 = vunpack.c.h.b16 %v166
  %v895 = vunpack.c.l.b16 %v167
  %v896 = vunpack.c.h.b16 %v167
  %v897 = vunpack.c.l.b16 %v168
  %v898 = vunpack.c.h.b16 %v168
  %v899 = vunpack.c.l.b16 %v169
  %v900 = vunpack.c.h.b16 %v169
  %v901 = vunpack.c.l.b16 %v170
  %v902 = vunpack.c.h.b16 %v170
  %v903 = vunpack.c.l.b16 %v171
  %v904 = vunpack.c.h.b16 %v171
  %v905 = vunpack.c.l.b16 %v172
  %v906 = vunpack.c.h.b16 %v172
  %v907 = vunpack.c.l.b16 %v173
  %v908 = vunpack.c.h.b16 %v173
  %v909 = vunpack.c.l.b16 %v174
  %v910 = vunpack.c.h.b16 %v174
  %v911 = vunpack.c.l.b16 %v175
  %v912 = vunpack.c.h.b16 %v175
  %v913 = vunpack.c.l.b16 %v176
  %v914 = vunpack.c.h.b16 %v176
  %v915 = vunpack.c.l.b16 %v177
  %v916 = vunpack.c.h.b16 %v177
  %v917 = vunpack.c.l.b16 %v178
  %v918 = vunpack.c.h.b16 %v178
  %v919 = vunpack.c.l.b16 %v179
  %v920 = vunpack.c.h.b16 %v179
  %v921 = vunpack.c.l.b16 %v180
  %v922 = vunpack.c.h.b16 %v180
  %v923 = vunpack.c.l.b16 %v181
  %v924 = vunpack.c.h.b16 %v181
  %v925 = vunpack.c.l.b16 %v182
  %v926 = vunpack.c.h.b16 %v182
  %v927 = vunpack.c.l.b16 %v183
  %v928 = vunpack.c.h.b16 %v183
  %v929 = vunpack.c.l.b16 %v184
  %v930 = vunpack.c.h.b16 %v184
  %v931 = vunpack.c.l.b16 %v185
  %v932 = vunpack.c.h.b16 %v185
  %v933 = vunpack.c.l.b16 %v186
  %v934 = vunpack.c.h.b16 %v186
  %v935 = vunpack.c.l.b16 %v187
  %v936 = vunpack.c.h.b16 %v187
  %v937 = vunpack.c.l.b16 %v188
  %v938 = vunpack.c.h.b16 %v188
  %v939 = vunpack.c.l.b16 %v189
  %v940 = vunpack.c.h.b16 %v189
  %v941 = vunpack.c.l.b16 %v190
  %v942 = vunpack.c.h.b16 %v190
  %v943 = vunpack.c.l.b16 %v191
  %v944 = vunpack.c.h.b16 %v191
  %v945 = vunpack.c.l.b16 %v192
  %v946 = vunpack.c.h.b16 %v192
  %v947 = vunpack.c.l.b16 %v193
  %v948 = vunpack.c.h.b16 %v193
  %v949 = vunpack.c.l.b16 %v194
  %v950 = vunpack.c.h.b16 %v194
  %v951 = vunpack.c.l.b16 %v195
  %v952 = vunpack.c.h.b16 %v195
  %v953 = vunpack.c.l.b16 %v196
  %v954 = vunpack.c.h.b16 %v196
  %v955 = vunpack.c.l.b16 %v197
  %v956 = vunpack.c.h.b16 %v197
  %v957 = vunpack.c.l.b16 %v198
  %v958 = vunpack.c.h.b16 %v198
  %v959 = vunpack.c.l.b16 %v199
  %v960 = vunpack.c.h.b16 %v199
  %v961 = vunpack.c.l.b16 %v200
  %v962 = vunpack.c.h.b16 %v200
  %v963 = vunpack.c.l.b16 %v201
  %v964 = vunpack.c.h.b16 %v201
  %v965 = vunpack.c.l.b16 %v202
  %v966 = vunpack.c.h.b16 %v202
  %v967 = vunpack.c.l.b16 %v203
  %v968 = vunpack.c.h.b16 %v203
  %v969 = vunpack.c.l.b16 %v204
  %v970 = vunpack.c.h.b16 %v204
  %v971 = vunpack.c.l.b16 %v205
  %v972 = vunpack.c.h.b16 %v205
  %v973 = vunpack.c.l.b16 %v206
  %v974 = vunpack.c.h.b16 %v206
  %v975 = vunpack.c.l.b16 %v207
  %v976 = vunpack.c.h.b16 %v207
  %v977 = vunpack.c.l.b16 %v208
  %v978 = vunpack.c.h.b16 %v208
  %v979 = vunpack.c.l.b16 %v209
  %v980 = vunpack.c.h.b16 %v209
  %v981 = vunpack.c.l.b16 %v210
  %v982 = vunpack.c.h.b16 %v210
  %v983 = vunpack.c.l.b16 %v211
  %v984 = vunpack.c.h.b16 %v211
  %v985 = vunpack.c.l.b16 %v212
  %v986 = vunpack.c.h.b16 %v212
  %v987 = vunpack.c.l.b16 %v213
  %v988 = vunpack.c.h.b16 %v213
  %v989 = vunpack.c.l.b16 %v214
  %v990 = vunpack.c.h.b16 %v214
  %v991 = vunpack.c.l.b16 %v215
  %v992 = vunpack.c.h.b16 %v215
  %v993 = vunpack.c.l.b16 %v216
  %v994 = vunpack.c.h.b16 %v216
  %v995 = vunpack.c.l.b16 %v217
  %v996 = vunpack.c.h.b16 %v217
  %v997 = vunpack.c.l.b16 %v218
  %v998 = vunpack.c.h.b16 %v218
  %v999 = vunpack.c.l.b16 %v219
  %v1000 = vunpack.c.h.b16 %v219
  %v1001 = vunpack.c.l.b16 %v220
  %v1002 = vunpack.c.h.b16 %v220
  %v1003 = vunpack.c.l.b16 %v221
  %v1004 = vunpack.c.h.b16 %v221
  %v1005 = vunpack.c.l.b16 %v222
  %v1006 = vunpack.c.h.b16 %v222
  %v1007 = vunpack.c.l.b16 %v223
  %v1008 = vunpack.c.h.b16 %v223
  %v1009 = vunpack.c.l.b16 %v224
  %v1010 = vunpack.c.h.b16 %v224
  %v1011 = vunpack.c.l.b16 %v225
  %v1012 = vunpack.c.h.b16 %v225
  %v1013 = vunpack.c.l.b16 %v226
  %v1014 = vunpack.c.h.b16 %v226
  %v1015 = vunpack.c.l.b16 %v227
  %v1016 = vunpack.c.h.b16 %v227
  %v1017 = vunpack.c.l.b16 %v228
  %v1018 = vunpack.c.h.b16 %v228
  %v1019 = vunpack.c.l.b16 %v229
  %v1020 = vunpack.c.h.b16 %v229
  %v1021 = vunpack.c.l.b16 %v230
  %v1022 = vunpack.c.h.b16 %v230
  %v1023 = vunpack.c.l.b16 %v231
  %v1024 = vunpack.c.h.b16 %v231
  %v1025 = vunpack.c.l.b16 %v232
  %v1026 = vunpack.c.h.b16 %v232
  %v1027 = vunpack.c.l.b16 %v233
  %v1028 = vunpack.c.h.b16 %v233
  %v1029 = vunpack.c.l.b16 %v234
  %v1030 = vunpack.c.h.b16 %v234
  %v1031 = vunpack.c.l.b16 %v235
  %v1032 = vunpack.c.h.b16 %v235
  %v1033 = vunpack.c.l.b16 %v236
  %v1034 = vunpack.c.h.b16 %v236
  %v1035 = vunpack.c.l.b16 %v237
  %v1036 = vunpack.c.h.b16 %v237
  %v1037 = vunpack.c.l.b16 %v238
  %v1038 = vunpack.c.h.b16 %v238
  %v1039 = vpack.c.b16 %v599, %v591
  %v1040 = vpack.c.b16 %v600, %v592
  %v1041 = vpack.c.b16 %v601, %v593
  %v1042 = vpack.c.b16 %v602, %v594
  %v1043 = vpack.c.b16 %v603, %v595
  %v1044 = vpack.c.b16 %v604, %v596
  %v1045 = vpack.c.b16 %v605, %v597
  %v1046 = vpack.c.b16 %v606, %v598
  %v1047 = vpack.c.b16 %v615, %v607
  %v1048 = vpack.c.b16 %v616, %v608
  %v1049 = vpack.c.b16 %v617, %v609
  %v1050 = vpack.c.b16 %v618, %v610
  %v1051 = vpack.c.b16 %v619, %v611
  %v1052 = vpack.c.b16 %v620, %v612
  %v1053 = vpack.c.b16 %v621, %v613
  %v1054 = vpack.c.b16 %v622, %v614
  %v1055 = vpack.c.b16 %v631, %v623
  %v1056 = vpack.c.b16 %v632, %v624
  %v1057 = vpack.c.b16 %v633, %v625
  %v1058 = vpack.c.b16 %v634, %v626
  %v1059 = vpack.c.b16 %v635, %v627
  %v1060 = vpack.c.b16 %v636, %v628
  %v1061 = vpack.c.b16 %v637, %v629
  %v1062 = vpack.c.b16 %v638, %v630
  %v1063 = vpack.c.b16 %v647, %v639
  %v1064 = vpack.c.b16 %v648, %v640
  %v1065 = vpack.c.b16 %v649, %v641
  %v1066 = vpack.c.b16 %v650, %v642
  %v1067 = vpack.c.b16 %v651, %v643
  %v1068 = vpack.c.b16 %v652, %v644
  %v1069 = vpack.c.b16 %v653, %v645
  %v1070 = vpack.c.b16 %v654, %v646
  %v1071 = vpack.c.b16 %v663, %v655
  %v1072 = vpack.c.b16 %v664, %v656
  %v1073 = vpack.c.b16 %v665, %v657
  %v1074 = vpack.c.b16 %v666, %v658
  %v1075 = vpack.c.b16 %v667, %v659
  %v1076 = vpack.c.b16 %v668, %v660
  %v1077 = vpack.c.b16 %v669, %v661
  %v1078 = vpack.c.b16 %v670, %v662
  %v1079 = vpack.c.b16 %v679, %v671
  %v1080 = vpack.c.b16 %v680, %v672
  %v1081 = vpack.c.b16 %v681, %v673
  %v1082 = vpack.c.b16 %v682, %v674
  %v1083 = vpack.c.b16 %v683, %v675
  %v1084 = vpack.c.b16 %v684, %v676
  %v1085 = vpack.c.b16 %v685, %v677
  %v1086 = vpack.c.b16 %v686, %v678
  %v1087 = vpack.c.b16 %v695, %v687
  %v1088 = vpack.c.b16 %v696, %v688
  %v1089 = vpack.c.b16 %v697, %v689
  %v1090 = vpack.c.b16 %v698, %v690
  %v1091 = vpack.c.b16 %v699, %v691
  %v1092 = vpack.c.b16 %v700, %v692
  %v1093 = vpack.c.b16 %v701, %v693
  %v1094 = vpack.c.b16 %v702, %v694
  %v1095 = vpack.c.b16 %v711, %v703
  %v1096 = vpack.c.b16 %v712, %v704
  %v1097 = vpack.c.b16 %v713, %v705
  %v1098 = vpack.c.b16 %v714, %v706
  %v1099 = vpack.c.b16 %v715, %v707
  %v1100 = vpack.c.b16 %v716, %v708
  %v1101 = vpack.c.b16 %v717, %v709
  %v1102 = vpack.c.b16 %v718, %v710
  %v1103 = vpack.c.b16 %v727, %v719
  %v1104 = vpack.c.b16 %v728, %v720
  %v1105 = vpack.c.b16 %v729, %v721
  %v1106 = vpack.c.b16 %v730, %v722
  %v1107 = vpack.c.b16 %v731, %v723
  %v1108 = vpack.c.b16 %v732, %v724
  %v1109 = vpack.c.b16 %v733, %v725
  %v1110 = vpack.c.b16 %v734, %v726
  %v1111 = vpack.c.b16 %v743, %v735
  %v1112 = vpack.c.b16 %v744, %v736
  %v1113 = vpack.c.b16 %v745, %v737
  %v1114 = vpack.c.b16 %v746, %v738
  %v1115 = vpack.c.b16 %v747, %v739
  %v1116 = vpack.c.b16 %v748, %v740
  %v1117 = vpack.c.b16 %v749, %v741
  %v1118 = vpack.c.b16 %v750, %v742
  %v1119 = vpack.c.b16 %v759, %v751
  %v1120 = vpack.c.b16 %v760, %v752
  %v1121 = vpack.c.b16 %v761, %v753
  %v1122 = vpack.c.b16 %v762, %v754
  %v1123 = vpack.c.b16 %v763, %v755
  %v1124 = vpack.c.b16 %v764, %v756
  %v1125 = vpack.c.b16 %v765, %v757
  %v1126 = vpack.c.b16 %v766, %v758
  %v1127 = vpack.c.b16 %v775, %v767
  %v1128 = vpack.c.b16 %v776, %v768
  %v1129 = vpack.c.b16 %v777, %v769
  %v1130 = vpack.c.b16 %v778, %v770
  %v1131 = vpack.c.b16 %v779, %v771
  %v1132 = vpack.c.b16 %v780, %v772
  %v1133 = vpack.c.b16 %v781, %v773
  %v1134 = vpack.c.b16 %v782, %v774
  %v1135 = vpack.c.b16 %v791, %v783
  %v1136 = vpack.c.b16 %v792, %v784
  %v1137 = vpack.c.b16 %v793, %v785
  %v1138 = vpack.c.b16 %v794, %v786
  %v1139 = vpack.c.b16 %v795, %v787
  %v1140 = vpack.c.b16 %v796, %v788
  %v1141 = vpack.c.b16 %v797, %v789
  %v1142 = vpack.c.b16 %v798, %v790
  %v1143 = vpack.c.b16 %v807, %v799
  %v1144 = vpack.c.b16 %v808, %v800
  %v1145 = vpack.c.b16 %v809, %v801
  %v1146 = vpack.c.b16 %v810, %v802
  %v1147 = vpack.c.b16 %v811, %v803
  %v1148 = vpack.c.b16 %v812, %v804
  %v1149 = vpack.c.b16 %v813, %v805
  %v1150 = vpack.c.b16 %v814, %v806
  %v1151 = vpack.c.b16 %v823, %v815
  %v1152 = vpack.c.b16 %v824, %v816
  %v1153 = vpack.c.b16 %v825, %v817
  %v1154 = vpack.c.b16 %v826, %v818
  %v1155 = vpack.c.b16 %v827, %v819
  %v1156 = vpack.c.b16 %v828, %v820
  %v1157 = vpack.c.b16 %v829, %v821
  %v1158 = vpack.c.b16 %v830, %v822
  %v1159 = vpack.c.b16 %v839, %v831
  %v1160 = vpack.c.b16 %v840, %v832
  %v1161 = vpack.c.b16 %v841, %v833
  %v1162 = vpack.c.b16 %v842, %v834
  %v1163 = vpack.c.b16 %v843, %v835
  %v1164 = vpack.c.b16 %v844, %v836
  %v1165 = vpack.c.b16 %v845, %v837
  %v1166 = vpack.c.b16 %v846, %v838
  %v1167 = vpack.c.b16 %v855, %v847
  %v1168 = vpack.c.b16 %v856, %v848
  %v1169 = vpack.c.b16 %v857, %v849
  %v1170 = vpack.c.b16 %v858, %v850
  %v1171 = vpack.c.b16 %v859, %v851
  %v1172 = vpack.c.b16 %v860, %v852
  %v1173 = vpack.c.b16 %v861, %v853
  %v1174 = vpack.c.b16 %v862, %v854
  %v1175 = vpack.c.b16 %v871, %v863
  %v1176 = vpack.c.b16 %v872, %v864
  %v1177 = vpack.c.b16 %v873, %v865
  %v1178 = vpack.c.b16 %v874, %v866
  %v1179 = vpack.c.b16 %v875, %v867
  %v1180 = vpack.c.b16 %v876, %v868
  %v1181 = vpack.c.b16 %v877, %v869
  %v1182 = vpack.c.b16 %v878, %v870
  %v1183 = vpack.c.b16 %v887, %v879
  %v1184 = vpack.c.b16 %v888, %v880
  %v1185 = vpack.c.b16 %v889, %v881
  %v1186 = vpack.c.b16 %v890, %v882
  %v1187 = vpack.c.b16 %v891, %v883
  %v1188 = vpack.c.b16 %v892, %v884
  %v1189 = vpack.c.b16 %v893, %v885
  %v1190 = vpack.c.b16 %v894, %v886
  %v1191 = vpack.c.b16 %v903, %v895
  %v1192 = vpack.c.b16 %v904, %v896
  %v1193 = vpack.c.b16 %v905, %v897
  %v1194 = vpack.c.b16 %v906, %v898
  %v1195 = vpack.c.b16 %v907, %v899
  %v1196 = vpack.c.b16 %v908, %v900
  %v1197 = vpack.c.b16 %v909, %v901
  %v1198 = vpack.c.b16 %v910, %v902
  %v1199 = vpack.c.b16 %v919, %v911
  %v1200 = vpack.c.b16 %v920, %v912
  %v1201 = vpack.c.b16 %v921, %v913
  %v1202 = vpack.c.b16 %v922, %v914
  %v1203 = vpack.c.b16 %v923, %v915
  %v1204 = vpack.c.b16 %v924, %v916
  %v1205 = vpack.c.b16 %v925, %v917
  %v1206 = vpack.c.b16 %v926, %v918
  %v1207 = vpack.c.b16 %v935, %v927
  %v1208 = vpack.c.b16 %v936, %v928
  %v1209 = vpack.c.b16 %v937, %v929
  %v1210 = vpack.c.b16 %v938, %v930
  %v1211 = vpack.c.b16 %v939, %v931
  %v1212 = vpack.c.b16 %v940, %v932
  %v1213 = vpack.c.b16 %v941, %v933
  %v1214 = vpack.c.b16 %v942, %v934
  %v1215 = vpack.c.b16 %v951, %v943
  %v1216 = vpack.c.b16 %v952, %v944
  %v1217 = vpack.c.b16 %v953, %v945
  %v1218 = vpack.c.b16 %v954, %v946
  %v1219 = vpack.c.b16 %v955, %v947
  %v1220 = vpack.c.b16 %v956, %v948
  %v1221 = vpack.c.b16 %v957, %v949
  %v1222 = vpack.c.b16 %v958, %v950
  %v1223 = vpack.c.b16 %v967, %v959
  %v1224 = vpack.c.b16 %v968, %v960
  %v1225 = vpack.c.b16 %v969, %v961
  %v1226 = vpack.c.b16 %v970, %v962
  %v1227 = vpack.c.b16 %v971, %v963
  %v1228 = vpack.c.b16 %v972, %v964
  %v1229 = vpack.c.b16 %v973, %v965
  %v1230 = vpack.c.b16 %v974, %v966
  %v1231 = vpack.c.b16 %v983, %v975
  %v1232 = vpack.c.b16 %v984, %v976
  %v1233 = vpack.c.b16 %v985, %v977
  %v1234 = vpack.c.b16 %v986, %v978
  %v1235 = vpack.c.b16 %v987, %v979
  %v1236 = vpack.c.b16 %v988, %v980
  %v1237 = vpack.c.b16 %v989, %v981
  %v1238 = vpack.c.b16 %v990, %v982
  %v1239 = vpack.c.b16 %v999, %v991
  %v1240 = vpack.c.b16 %v1000, %v992
  %v1241 = vpack.c.b16 %v1001, %v993
  %v1242 = vpack.c.b16 %v1002, %v994
  %v1243 = vpack.c.b16 %v1003, %v995
  %v1244 = vpack.c.b16 %v1004, %v996
  %v1245 = vpack.c.b16 %v1005, %v997
  %v1246 = vpack.c.b16 %v1006, %v998
  %v1247 = vpack.c.b16 %v1015, %v1007
  %v1248 = vpack.c.b16 %v1016, %v1008
  %v1249 = vpack.c.b16 %v1017, %v1009
  %v1250 = vpack.c.b16 %v1018, %v1010
  %v1251 = vpack.c.b16 %v1019, %v1011
  %v1252 = vpack.c.b16 %v1020, %v1012
  %v1253 = vpack.c.b16 %v1021, %v1013
  %v1254 = vpack.c.b16 %v1022, %v1014
  %v1255 = vpack.c.b16 %v1031, %v1023
  %v1256 = vpack.c.b16 %v1032, %v1024
  %v1257 = vpack.c.b16 %v1033, %v1025
  %v1258 = vpack.c.b16 %v1034, %v1026
  %v1259 = vpack.c.b16 %v1035, %v1027
  %v1260 = vpack.c.b16 %v1036, %v1028
  %v1261 = vpack.c.b16 %v1037, %v1029
  %v1262 = vpack.c.b16 %v1038, %v1030
  %v1615 = vunpack.c.l.b16 %v239
  %v1616 = vunpack.c.l.b16 %v240
  %v1617 = vunpack.c.l.b16 %v241
  %v1618 = vunpack.c.l.b16 %v242
  %v1619 = vunpack.c.l.b16 %v243
  %v1620 = vunpack.c.l.b16 %v244
  %v1621 = vunpack.c.l.b16 %v245
  %v1622 = vunpack.c.l.b16 %v246
  %v1623 = vunpack.c.l.b16 %v247
  %v1624 = vunpack.c.l.b16 %v248
  %v1625 = vunpack.c.l.b16 %v249
  %v1626 = vunpack.c.l.b16 %v250
  %v1627 = vunpack.c.l.b16 %v251
  %v1628 = vunpack.c.l.b16 %v252
  %v1629 = vunpack.c.l.b16 %v253
  %v1630 = vunpack.c.l.b16 %v254
  %v1631 = vunpack.c.l.b16 %v255
  %v1632 = vunpack.c.l.b16 %v256
  %v1633 = vunpack.c.l.b16 %v257
  %v1634 = vunpack.c.l.b16 %v258
  %v1635 = vunpack.c.l.b16 %v259
  %v1636 = vunpack.c.l.b16 %v260
  %v1637 = vunpack.c.l.b16 %v261
  %v1638 = vunpack.c.l.b16 %v262
  %v1639 = vunpack.c.l.b16 %v263
  %v1640 = vunpack.c.l.b16 %v264
  %v1641 = vunpack.c.l.b16 %v265
  %v1642 = vunpack.c.l.b16 %v266
  %v1643 = vunpack.c.l.b16 %v267
  %v1644 = vunpack.c.l.b16 %v268
  %v1645 = vunpack.c.l.b16 %v269
  %v1646 = vunpack.c.l.b16 %v270
  %v1647 = vunpack.c.l.b16 %v271
  %v1648 = vunpack.c.l.b16 %v272
  %v1649 = vunpack.c.l.b16 %v273
  %v1650 = vunpack.c.l.b16 %v274
  %v1651 = vunpack.c.l.b16 %v275
  %v1652 = vunpack.c.l.b16 %v276
  %v1653 = vunpack.c.l.b16 %v277
  %v1654 = vunpack.c.l.b16 %v278
  %v1655 = vunpack.c.l.b16 %v279
  %v1656 = vunpack.c.l.b16 %v280
  %v1657 = vunpack.c.l.b16 %v281
  %v1658 = vunpack.c.l.b16 %v282
  %v1659 = vunpack.c.l.b16 %v283
  %v1660 = vunpack.c.l.b16 %v284
  %v1661 = vunpack.c.l.b16 %v285
  %v1662 = vunpack.c.l.b16 %v286
  %v1663 = vunpack.c.l.b16 %v287
  %v1664 = vunpack.c.l.b16 %v288
  %v1665 = vunpack.c.l.b16 %v289
  %v1666 = vunpack.c.l.b16 %v290
  %v1667 = vunpack.c.l.b16 %v291
  %v1668 = vunpack.c.l.b16 %v292
  %v1669 = vunpack.c.l.b16 %v293
  %v1670 = vunpack.c.l.b16 %v294
  %v1671 = vunpack.c.l.b16 %v295
  %v1672 = vunpack.c.l.b16 %v296
  %v1673 = vunpack.c.l.b16 %v297
  %v1674 = vunpack.c.l.b16 %v298
  %v1675 = vunpack.c.l.b16 %v299
  %v1676 = vunpack.c.l.b16 %v300
  %v1677 = vunpack.c.l.b16 %v301
  %v1678 = vunpack.c.l.b16 %v302
  %v1679 = vunpack.c.l.b16 %v303
  %v1680 = vunpack.c.l.b16 %v304
  %v1681 = vunpack.c.l.b16 %v305
  %v1682 = vunpack.c.l.b16 %v306
  %v1683 = vunpack.c.l.b16 %v307
  %v1684 = vunpack.c.l.b16 %v308
  %v1685 = vunpack.c.l.b16 %v309
  %v1686 = vunpack.c.l.b16 %v310
  %v1687 = vunpack.c.l.b16 %v311
  %v1688 = vunpack.c.l.b16 %v312
  %v1689 = vunpack.c.l.b16 %v313
  %v1690 = vunpack.c.l.b16 %v314
  %v1691 = vunpack.c.l.b16 %v315
  %v1692 = vunpack.c.l.b16 %v316
  %v1693 = vunpack.c.l.b16 %v317
  %v1694 = vunpack.c.l.b16 %v318
  %v1695 = vunpack.c.l.b16 %v319
  %v1696 = vunpack.c.l.b16 %v320
  %v1697 = vunpack.c.l.b16 %v321
  %v1698 = vunpack.c.l.b16 %v322
  %v1699 = vunpack.c.l.b16 %v323
  %v1700 = vunpack.c.l.b16 %v324
  %v1701 = vunpack.c.l.b16 %v325
  %v1702 = vunpack.c.l.b16 %v326
  %v1703 = vunpack.c.l.b16 %v327
  %v1704 = vunpack.c.l.b16 %v328
  %v1705 = vunpack.c.l.b16 %v329
  %v1706 = vunpack.c.l.b16 %v330
  %v1707 = vunpack.c.l.b16 %v331
  %v1708 = vunpack.c.l.b16 %v332
  %v1709 = vunpack.c.l.b16 %v333
  %v1710 = vunpack.c.l.b16 %v334
  %v1711 = vunpack.c.l.b16 %v335
  %v1712 = vunpack.c.l.b16 %v336
  %v1713 = vunpack.c.l.b16 %v337
  %v1714 = vunpack.c.l.b16 %v338
  %v1715 = vunpack.c.l.b16 %v339
  %v1716 = vunpack.c.l.b16 %v340
  %v1717 = vunpack.c.l.b16 %v341
  %v1718 = vunpack.c.l.b16 %v342
  %v1719 = vunpack.c.l.b16 %v343
  %v1720 = vunpack.c.l.b16 %v344
  %v1721 = vunpack.c.l.b16 %v345
  %v1722 = vunpack.c.l.b16 %v346
  %v1723 = vunpack.c.l.b16 %v347
  %v1724 = vunpack.c.l.b16 %v348
  %v1725 = vunpack.c.l.b16 %v349
  %v1726 = vunpack.c.l.b16 %v350
  %v1727 = vunpack.c.l.b16 %v351
  %v1728 = vunpack.c.l.b16 %v352
  %v1729 = vunpack.c.l.b16 %v353
  %v1730 = vunpack.c.l.b16 %v354
  %v1731 = vunpack.c.l.b16 %v355
  %v1732 = vunpack.c.l.b16 %v356
  %v1733 = vunpack.c.l.b16 %v357
  %v1734 = vunpack.c.l.b16 %v358
  %v1735 = vunpack.c.l.b16 %v359
  %v1736 = vunpack.c.l.b16 %v360
  %v1737 = vunpack.c.l.b16 %v361
  %v1738 = vunpack.c.l.b16 %v362
  %v1739 = vunpack.c.l.b16 %v363
  %v1740 = vunpack.c.l.b16 %v364
  %v1741 = vunpack.c.l.b16 %v365
  %v1742 = vunpack.c.l.b16 %v366
  %v1743 = vpack.c.b16 %v1616, %v1615
  %v1744 = vpack.c.b16 %v1618, %v1617
  %v1745 = vpack.c.b16 %v1620, %v1619
  %v1746 = vpack.c.b16 %v1622, %v1621
  %v1747 = vpack.c.b16 %v1624, %v1623
  %v1748 = vpack.c.b16 %v1626, %v1625
  %v1749 = vpack.c.b16 %v1628, %v1627
  %v1750 = vpack.c.b16 %v1630, %v1629
  %v1751 = vpack.c.b16 %v1632, %v1631
  %v1752 = vpack.c.b16 %v1634, %v1633
  %v1753 = vpack.c.b16 %v1636, %v1635
  %v1754 = vpack.c.b16 %v1638, %v1637
  %v1755 = vpack.c.b16 %v1640, %v1639
  %v1756 = vpack.c.b16 %v1642, %v1641
  %v1757 = vpack.c.b16 %v1644, %v1643
  %v1758 = vpack.c.b16 %v1646, %v1645
  %v1759 = vpack.c.b16 %v1648, %v1647
  %v1760 = vpack.c.b16 %v1650, %v1649
  %v1761 = vpack.c.b16 %v1652, %v1651
  %v1762 = vpack.c.b16 %v1654, %v1653
  %v1763 = vpack.c.b16 %v1656, %v1655
  %v1764 = vpack.c.b16 %v1658, %v1657
  %v1765 = vpack.c.b16 %v1660, %v1659
  %v1766 = vpack.c.b16 %v1662, %v1661
  %v1767 = vpack.c.b16 %v1664, %v1663
  %v1768 = vpack.c.b16 %v1666, %v1665
  %v1769 = vpack.c.b16 %v1668, %v1667
  %v1770 = vpack.c.b16 %v1670, %v1669
  %v1771 = vpack.c.b16 %v1672, %v1671
  %v1772 = vpack.c.b16 %v1674, %v1673
  %v1773 = vpack.c.b16 %v1676, %v1675
  %v1774 = vpack.c.b16 %v1678, %v1677
  %v1775 = vpack.c.b16 %v1680, %v1679
  %v1776 = vpack.c.b16 %v1682, %v1681
  %v1777 = vpack.c.b16 %v1684, %v1683
  %v1778 = vpack.c.b16 %v1686, %v1685
  %v1779 = vpack.c.b16 %v1688, %v1687
  %v1780 = vpack.c.b16 %v1690, %v1689
  %v1781 = vpack.c.b16 %v1692, %v1691
  %v1782 = vpack.c.b16 %v1694, %v1693
  %v1783 = vpack.c.b16 %v1696, %v1695
  %v1784 = vpack.c.b16 %v1698, %v1697
  %v1785 = vpack.c.b16 %v1700, %v1699
  %v1786 = vpack.c.b16 %v1702, %v1701
  %v1787 = vpack.c.b16 %v1704, %v1703
  %v1788 = vpack.c.b16 %v1706, %v1705
  %v1789 = vpack.c.b16 %v1708, %v1707
  %v1790 = vpack.c.b16 %v1710, %v1709
  %v1791 = vpack.c.b16 %v1712, %v1711
  %v1792 = vpack.c.b16 %v1714, %v1713
  %v1793 = vpack.c.b16 %v1716, %v1715
  %v1794 = vpack.c.b16 %v1718, %v1717
  %v1795 = vpack.c.b16 %v1720, %v1719
  %v1796 = vpack.c.b16 %v1722, %v1721
  %v1797 = vpack.c.b16 %v1724, %v1723
  %v1798 = vpack.c.b16 %v1726, %v1725
  %v1799 = vpack.c.b16 %v1728, %v1727
  %v1800 = vpack.c.b16 %v1730, %v1729
  %v1801 = vpack.c.b16 %v1732, %v1731
  %v1802 = vpack.c.b16 %v1734, %v1733
  %v1803 = vpack.c.b16 %v1736, %v1735
  %v1804 = vpack.c.b16 %v1738, %v1737
  %v1805 = vpack.c.b16 %v1740, %v1739
  %v1806 = vpack.c.b16 %v1742, %v1741
  %1871 = vmatprep.subr.bf16.mxu0 0
  %1872 = vmatpush1.bf16.msra.mxu0 %v1743
  %1873 = vmatprep.subr.bf16.mxu0 0
  %1874 = vmatpush1.bf16.msra.mxu0 %v1744
  %1875 = vmatprep.subr.bf16.mxu0 0
  %1876 = vmatpush1.bf16.msra.mxu0 %v1745
  %1877 = vmatprep.subr.bf16.mxu0 0
  %1878 = vmatpush1.bf16.msra.mxu0 %v1746
  %1879 = vmatprep.subr.bf16.mxu0 0
  %1880 = vmatpush1.bf16.msra.mxu0 %v1747
  %1881 = vmatprep.subr.bf16.mxu0 0
  %1882 = vmatpush1.bf16.msra.mxu0 %v1748
  %1883 = vmatprep.subr.bf16.mxu0 0
  %1884 = vmatpush1.bf16.msra.mxu0 %v1749
  %1885 = vmatprep.subr.bf16.mxu0 0
  %1886 = vmatpush1.bf16.msra.mxu0 %v1750
  %1887 = vmatprep.subr.bf16.mxu0 0
  %1888 = vmatpush1.bf16.msra.mxu0 %v1751
  %1889 = vmatprep.subr.bf16.mxu0 0
  %1890 = vmatpush1.bf16.msra.mxu0 %v1752
  %1891 = vmatprep.subr.bf16.mxu0 0
  %1892 = vmatpush1.bf16.msra.mxu0 %v1753
  %1893 = vmatprep.subr.bf16.mxu0 0
  %1894 = vmatpush1.bf16.msra.mxu0 %v1754
  %1895 = vmatprep.subr.bf16.mxu0 0
  %1896 = vmatpush1.bf16.msra.mxu0 %v1755
  %1897 = vmatprep.subr.bf16.mxu0 0
  %1898 = vmatpush1.bf16.msra.mxu0 %v1756
  %1899 = vmatprep.subr.bf16.mxu0 0
  %1900 = vmatpush1.bf16.msra.mxu0 %v1757
  %1901 = vmatprep.subr.bf16.mxu0 0
  %1902 = vmatpush1.bf16.msra.mxu0 %v1758
  %1903 = vmatprep.mubr.bf16.mxu0 %v1040
  %1904 = vmatmul.mubr.bf16.gmra.mrb[0].mxu0 %v1039
  %v1905 = vpop.f32.mrb[0].mxu0
  %v1906 = vadd.f32 0.0, %v1905
  %v1907 = vpop.f32.mrb[0].mxu0
  %v1908 = vpop.f32.mrb[0].mxu0
  %v1909 = vadd.f32 0.0, %v1908
  %v1910 = vpop.f32.mrb[0].mxu0
  %1911 = vmatprep.mubr.bf16.mxu0 %v1048
  %1912 = vmatmul.mubr.bf16.gmra.mrb[0].mxu0 %v1047
  %v1913 = vpop.f32.mrb[0].mxu0
  %v1914 = vadd.f32 0.0, %v1913
  %v1915 = vpop.f32.mrb[0].mxu0
  %v1916 = vpop.f32.mrb[0].mxu0
  %v1917 = vadd.f32 0.0, %v1916
  %v1918 = vpop.f32.mrb[0].mxu0
  %1919 = vmatprep.mubr.bf16.mxu0 %v1056
  %1920 = vmatmul.mubr.bf16.gmra.mrb[0].mxu0 %v1055
  %v1921 = vpop.f32.mrb[0].mxu0
  %v1922 = vadd.f32 0.0, %v1921
  %v1923 = vpop.f32.mrb[0].mxu0
  %v1924 = vpop.f32.mrb[0].mxu0
  %v1925 = vadd.f32 0.0, %v1924
  %v1926 = vpop.f32.mrb[0].mxu0
  %1927 = vmatprep.mubr.bf16.mxu0 %v1064
  %1928 = vmatmul.mubr.bf16.gmra.mrb[0].mxu0 %v1063
  %v1929 = vpop.f32.mrb[0].mxu0
  %v1930 = vadd.f32 0.0, %v1929
  %v1931 = vpop.f32.mrb[0].mxu0
  %v1932 = vpop.f32.mrb[0].mxu0
  %v1933 = vadd.f32 0.0, %v1932
  %v1934 = vpop.f32.mrb[0].mxu0
  %1935 = vmatprep.mubr.bf16.mxu0 %v1072
  %1936 = vmatmul.mubr.bf16.gmra.mrb[0].mxu0 %v1071
  %v1937 = vpop.f32.mrb[0].mxu0
  %v1938 = vadd.f32 0.0, %v1937
  %v1939 = vpop.f32.mrb[0].mxu0
  %v1940 = vpop.f32.mrb[0].mxu0
  %v1941 = vadd.f32 0.0, %v1940
  %v1942 = vpop.f32.mrb[0].mxu0
  %1943 = vmatprep.mubr.bf16.mxu0 %v1080
  %1944 = vmatmul.mubr.bf16.gmra.mrb[0].mxu0 %v1079
  %v1945 = vpop.f32.mrb[0].mxu0
  %v1946 = vadd.f32 0.0, %v1945
  %v1947 = vpop.f32.mrb[0].mxu0
  %v1948 = vpop.f32.mrb[0].mxu0
  %v1949 = vadd.f32 0.0, %v1948
  %v1950 = vpop.f32.mrb[0].mxu0
  %1951 = vmatprep.mubr.bf16.mxu0 %v1088
  %1952 = vmatmul.mubr.bf16.gmra.mrb[0].mxu0 %v1087
  %v1953 = vpop.f32.mrb[0].mxu0
  %v1954 = vadd.f32 0.0, %v1953
  %v1955 = vpop.f32.mrb[0].mxu0
  %v1956 = vpop.f32.mrb[0].mxu0
  %v1957 = vadd.f32 0.0, %v1956
  %v1958 = vpop.f32.mrb[0].mxu0
  %1959 = vmatprep.mubr.bf16.mxu0 %v1096
  %1960 = vmatmul.mubr.bf16.gmra.mrb[0].mxu0 %v1095
  %v1961 = vpop.f32.mrb[0].mxu0
  %v1962 = vadd.f32 0.0, %v1961
  %v1963 = vpop.f32.mrb[0].mxu0
  %v1964 = vpop.f32.mrb[0].mxu0
  %v1965 = vadd.f32 0.0, %v1964
  %v1966 = vpop.f32.mrb[0].mxu0
  %1967 = vmatprep.mubr.bf16.mxu0 %v1104
  %1968 = vmatmul.mubr.bf16.gmra.mrb[0].mxu0 %v1103
  %v1969 = vpop.f32.mrb[0].mxu0
  %v1970 = vadd.f32 0.0, %v1969
  %v1971 = vpop.f32.mrb[0].mxu0
  %v1972 = vpop.f32.mrb[0].mxu0
  %v1973 = vadd.f32 0.0, %v1972
  %v1974 = vpop.f32.mrb[0].mxu0
  %1975 = vmatprep.mubr.bf16.mxu0 %v1112
  %1976 = vmatmul.mubr.bf16.gmra.mrb[0].mxu0 %v1111
  %v1977 = vpop.f32.mrb[0].mxu0
  %v1978 = vadd.f32 0.0, %v1977
  %v1979 = vpop.f32.mrb[0].mxu0
  %v1980 = vpop.f32.mrb[0].mxu0
  %v1981 = vadd.f32 0.0, %v1980
  %v1982 = vpop.f32.mrb[0].mxu0
  %1983 = vmatprep.mubr.bf16.mxu0 %v1120
  %1984 = vmatmul.mubr.bf16.gmra.mrb[0].mxu0 %v1119
  %v1985 = vpop.f32.mrb[0].mxu0
  %v1986 = vadd.f32 0.0, %v1985
  %v1987 = vpop.f32.mrb[0].mxu0
  %v1988 = vpop.f32.mrb[0].mxu0
  %v1989 = vadd.f32 0.0, %v1988
  %v1990 = vpop.f32.mrb[0].mxu0
  %1991 = vmatprep.mubr.bf16.mxu0 %v1128
  %1992 = vmatmul.mubr.bf16.gmra.mrb[0].mxu0 %v1127
  %v1993 = vpop.f32.mrb[0].mxu0
  %v1994 = vadd.f32 0.0, %v1993
  %v1995 = vpop.f32.mrb[0].mxu0
  %v1996 = vpop.f32.mrb[0].mxu0
  %v1997 = vadd.f32 0.0, %v1996
  %v1998 = vpop.f32.mrb[0].mxu0
  %1999 = vmatprep.mubr.bf16.mxu0 %v1136
  %2000 = vmatmul.mubr.bf16.gmra.mrb[0].mxu0 %v1135
  %v2001 = vpop.f32.mrb[0].mxu0
  %v2002 = vadd.f32 0.0, %v2001
  %v2003 = vpop.f32.mrb[0].mxu0
  %v2004 = vpop.f32.mrb[0].mxu0
  %v2005 = vadd.f32 0.0, %v2004
  %v2006 = vpop.f32.mrb[0].mxu0
  %2007 = vmatprep.mubr.bf16.mxu0 %v1144
  %2008 = vmatmul.mubr.bf16.gmra.mrb[0].mxu0 %v1143
  %v2009 = vpop.f32.mrb[0].mxu0
  %v2010 = vadd.f32 0.0, %v2009
  %v2011 = vpop.f32.mrb[0].mxu0
  %v2012 = vpop.f32.mrb[0].mxu0
  %v2013 = vadd.f32 0.0, %v2012
  %v2014 = vpop.f32.mrb[0].mxu0
  %2015 = vmatprep.mubr.bf16.mxu0 %v1152
  %2016 = vmatmul.mubr.bf16.gmra.mrb[0].mxu0 %v1151
  %v2017 = vpop.f32.mrb[0].mxu0
  %v2018 = vadd.f32 0.0, %v2017
  %v2019 = vpop.f32.mrb[0].mxu0
  %v2020 = vpop.f32.mrb[0].mxu0
  %v2021 = vadd.f32 0.0, %v2020
  %v2022 = vpop.f32.mrb[0].mxu0
  %2023 = vmatprep.mubr.bf16.mxu0 %v1160
  %2024 = vmatmul.mubr.bf16.gmra.mrb[0].mxu0 %v1159
  %v2025 = vpop.f32.mrb[0].mxu0
  %v2026 = vadd.f32 0.0, %v2025
  %v2027 = vpop.f32.mrb[0].mxu0
  %v2028 = vpop.f32.mrb[0].mxu0
  %v2029 = vadd.f32 0.0, %v2028
  %v2030 = vpop.f32.mrb[0].mxu0
  %2031 = vmatprep.mubr.bf16.mxu0 %v1168
  %2032 = vmatmul.mubr.bf16.gmra.mrb[0].mxu0 %v1167
  %v2033 = vpop.f32.mrb[0].mxu0
  %v2034 = vadd.f32 0.0, %v2033
  %v2035 = vpop.f32.mrb[0].mxu0
  %v2036 = vpop.f32.mrb[0].mxu0
  %v2037 = vadd.f32 0.0, %v2036
  %v2038 = vpop.f32.mrb[0].mxu0
  %2039 = vmatprep.mubr.bf16.mxu0 %v1176
  %2040 = vmatmul.mubr.bf16.gmra.mrb[0].mxu0 %v1175
  %v2041 = vpop.f32.mrb[0].mxu0
  %v2042 = vadd.f32 0.0, %v2041
  %v2043 = vpop.f32.mrb[0].mxu0
  %v2044 = vpop.f32.mrb[0].mxu0
  %v2045 = vadd.f32 0.0, %v2044
  %v2046 = vpop.f32.mrb[0].mxu0
  %2047 = vmatprep.mubr.bf16.mxu0 %v1184
  %2048 = vmatmul.mubr.bf16.gmra.mrb[0].mxu0 %v1183
  %v2049 = vpop.f32.mrb[0].mxu0
  %v2050 = vadd.f32 0.0, %v2049
  %v2051 = vpop.f32.mrb[0].mxu0
  %v2052 = vpop.f32.mrb[0].mxu0
  %v2053 = vadd.f32 0.0, %v2052
  %v2054 = vpop.f32.mrb[0].mxu0
  %2055 = vmatprep.mubr.bf16.mxu0 %v1192
  %2056 = vmatmul.mubr.bf16.gmra.mrb[0].mxu0 %v1191
  %v2057 = vpop.f32.mrb[0].mxu0
  %v2058 = vadd.f32 0.0, %v2057
  %v2059 = vpop.f32.mrb[0].mxu0
  %v2060 = vpop.f32.mrb[0].mxu0
  %v2061 = vadd.f32 0.0, %v2060
  %v2062 = vpop.f32.mrb[0].mxu0
  %2063 = vmatprep.mubr.bf16.mxu0 %v1200
  %2064 = vmatmul.mubr.bf16.gmra.mrb[0].mxu0 %v1199
  %v2065 = vpop.f32.mrb[0].mxu0
  %v2066 = vadd.f32 0.0, %v2065
  %v2067 = vpop.f32.mrb[0].mxu0
  %v2068 = vpop.f32.mrb[0].mxu0
  %v2069 = vadd.f32 0.0, %v2068
  %v2070 = vpop.f32.mrb[0].mxu0
  %2071 = vmatprep.mubr.bf16.mxu0 %v1208
  %2072 = vmatmul.mubr.bf16.gmra.mrb[0].mxu0 %v1207
  %v2073 = vpop.f32.mrb[0].mxu0
  %v2074 = vadd.f32 0.0, %v2073
  %v2075 = vpop.f32.mrb[0].mxu0
  %v2076 = vpop.f32.mrb[0].mxu0
  %v2077 = vadd.f32 0.0, %v2076
  %v2078 = vpop.f32.mrb[0].mxu0
  %2079 = vmatprep.mubr.bf16.mxu0 %v1216
  %2080 = vmatmul.mubr.bf16.gmra.mrb[0].mxu0 %v1215
  %v2081 = vpop.f32.mrb[0].mxu0
  %v2082 = vadd.f32 0.0, %v2081
  %v2083 = vpop.f32.mrb[0].mxu0
  %v2084 = vpop.f32.mrb[0].mxu0
  %v2085 = vadd.f32 0.0, %v2084
  %v2086 = vpop.f32.mrb[0].mxu0
  %2087 = vmatprep.mubr.bf16.mxu0 %v1224
  %2088 = vmatmul.mubr.bf16.gmra.mrb[0].mxu0 %v1223
  %v2089 = vpop.f32.mrb[0].mxu0
  %v2090 = vadd.f32 0.0, %v2089
  %v2091 = vpop.f32.mrb[0].mxu0
  %v2092 = vpop.f32.mrb[0].mxu0
  %v2093 = vadd.f32 0.0, %v2092
  %v2094 = vpop.f32.mrb[0].mxu0
  %2095 = vmatprep.mubr.bf16.mxu0 %v1232
  %2096 = vmatmul.mubr.bf16.gmra.mrb[0].mxu0 %v1231
  %v2097 = vpop.f32.mrb[0].mxu0
  %v2098 = vadd.f32 0.0, %v2097
  %v2099 = vpop.f32.mrb[0].mxu0
  %v2100 = vpop.f32.mrb[0].mxu0
  %v2101 = vadd.f32 0.0, %v2100
  %v2102 = vpop.f32.mrb[0].mxu0
  %2103 = vmatprep.mubr.bf16.mxu0 %v1240
  %2104 = vmatmul.mubr.bf16.gmra.mrb[0].mxu0 %v1239
  %v2105 = vpop.f32.mrb[0].mxu0
  %v2106 = vadd.f32 0.0, %v2105
  %v2107 = vpop.f32.mrb[0].mxu0
  %v2108 = vpop.f32.mrb[0].mxu0
  %v2109 = vadd.f32 0.0, %v2108
  %v2110 = vpop.f32.mrb[0].mxu0
  %2111 = vmatprep.mubr.bf16.mxu0 %v1248
  %2112 = vmatmul.mubr.bf16.gmra.mrb[0].mxu0 %v1247
  %v2113 = vpop.f32.mrb[0].mxu0
  %v2114 = vadd.f32 0.0, %v2113
  %v2115 = vpop.f32.mrb[0].mxu0
  %v2116 = vpop.f32.mrb[0].mxu0
  %v2117 = vadd.f32 0.0, %v2116
  %v2118 = vpop.f32.mrb[0].mxu0
  %2119 = vmatprep.mubr.bf16.mxu0 %v1256
  %2120 = vmatmul.mubr.bf16.gmra.mrb[0].mxu0 %v1255
  %v2121 = vpop.f32.mrb[0].mxu0
  %v2122 = vadd.f32 0.0, %v2121
  %v2123 = vpop.f32.mrb[0].mxu0
  %v2124 = vpop.f32.mrb[0].mxu0
  %v2125 = vadd.f32 0.0, %v2124
  %v2126 = vpop.f32.mrb[0].mxu0
  %2127 = vdwg.mxu0
  %2128 = vmatprep.subr.bf16.mxu0 0
  %2129 = vmatpush1.bf16.msra.mxu0 %v1759
  %2130 = vmatprep.subr.bf16.mxu0 0
  %2131 = vmatpush1.bf16.msra.mxu0 %v1760
  %2132 = vmatprep.subr.bf16.mxu0 0
  %2133 = vmatpush1.bf16.msra.mxu0 %v1761
  %2134 = vmatprep.subr.bf16.mxu0 0
  %2135 = vmatpush1.bf16.msra.mxu0 %v1762
  %2136 = vmatprep.subr.bf16.mxu0 0
  %2137 = vmatpush1.bf16.msra.mxu0 %v1763
  %2138 = vmatprep.subr.bf16.mxu0 0
  %2139 = vmatpush1.bf16.msra.mxu0 %v1764
  %2140 = vmatprep.subr.bf16.mxu0 0
  %2141 = vmatpush1.bf16.msra.mxu0 %v1765
  %2142 = vmatprep.subr.bf16.mxu0 0
  %2143 = vmatpush1.bf16.msra.mxu0 %v1766
  %2144 = vmatprep.subr.bf16.mxu0 0
  %2145 = vmatpush1.bf16.msra.mxu0 %v1767
  %2146 = vmatprep.subr.bf16.mxu0 0
  %2147 = vmatpush1.bf16.msra.mxu0 %v1768
  %2148 = vmatprep.subr.bf16.mxu0 0
  %2149 = vmatpush1.bf16.msra.mxu0 %v1769
  %2150 = vmatprep.subr.bf16.mxu0 0
  %2151 = vmatpush1.bf16.msra.mxu0 %v1770
  %2152 = vmatprep.subr.bf16.mxu0 0
  %2153 = vmatpush1.bf16.msra.mxu0 %v1771
  %2154 = vmatprep.subr.bf16.mxu0 0
  %2155 = vmatpush1.bf16.msra.mxu0 %v1772
  %2156 = vmatprep.subr.bf16.mxu0 0
  %2157 = vmatpush1.bf16.msra.mxu0 %v1773
  %2158 = vmatprep.subr.bf16.mxu0 0
  %2159 = vmatpush1.bf16.msra.mxu0 %v1774
  %2160 = vmatprep.mubr.bf16.mxu0 %v1042
  %2161 = vmatmul.mubr.bf16.gmra.mrb[0].mxu0 %v1041
  %v2162 = vpop.f32.mrb[0].mxu0
  %v2163 = vadd.f32 %v1906, %v2162
  %v2164 = vpop.f32.mrb[0].mxu0
  %v2165 = vpop.f32.mrb[0].mxu0
  %v2166 = vadd.f32 %v1909, %v2165
  %v2167 = vpop.f32.mrb[0].mxu0
  %2168 = vmatprep.mubr.bf16.mxu0 %v1050
  %2169 = vmatmul.mubr.bf16.gmra.mrb[0].mxu0 %v1049
  %v2170 = vpop.f32.mrb[0].mxu0
  %v2171 = vadd.f32 %v1914, %v2170
  %v2172 = vpop.f32.mrb[0].mxu0
  %v2173 = vpop.f32.mrb[0].mxu0
  %v2174 = vadd.f32 %v1917, %v2173
  %v2175 = vpop.f32.mrb[0].mxu0
  %2176 = vmatprep.mubr.bf16.mxu0 %v1058
  %2177 = vmatmul.mubr.bf16.gmra.mrb[0].mxu0 %v1057
  %v2178 = vpop.f32.mrb[0].mxu0
  %v2179 = vadd.f32 %v1922, %v2178
  %v2180 = vpop.f32.mrb[0].mxu0
  %v2181 = vpop.f32.mrb[0].mxu0
  %v2182 = vadd.f32 %v1925, %v2181
  %v2183 = vpop.f32.mrb[0].mxu0
  %2184 = vmatprep.mubr.bf16.mxu0 %v1066
  %2185 = vmatmul.mubr.bf16.gmra.mrb[0].mxu0 %v1065
  %v2186 = vpop.f32.mrb[0].mxu0
  %v2187 = vadd.f32 %v1930, %v2186
  %v2188 = vpop.f32.mrb[0].mxu0
  %v2189 = vpop.f32.mrb[0].mxu0
  %v2190 = vadd.f32 %v1933, %v2189
  %v2191 = vpop.f32.mrb[0].mxu0
  %2192 = vmatprep.mubr.bf16.mxu0 %v1074
  %2193 = vmatmul.mubr.bf16.gmra.mrb[0].mxu0 %v1073
  %v2194 = vpop.f32.mrb[0].mxu0
  %v2195 = vadd.f32 %v1938, %v2194
  %v2196 = vpop.f32.mrb[0].mxu0
  %v2197 = vpop.f32.mrb[0].mxu0
  %v2198 = vadd.f32 %v1941, %v2197
  %v2199 = vpop.f32.mrb[0].mxu0
  %2200 = vmatprep.mubr.bf16.mxu0 %v1082
  %2201 = vmatmul.mubr.bf16.gmra.mrb[0].mxu0 %v1081
  %v2202 = vpop.f32.mrb[0].mxu0
  %v2203 = vadd.f32 %v1946, %v2202
  %v2204 = vpop.f32.mrb[0].mxu0
  %v2205 = vpop.f32.mrb[0].mxu0
  %v2206 = vadd.f32 %v1949, %v2205
  %v2207 = vpop.f32.mrb[0].mxu0
  %2208 = vmatprep.mubr.bf16.mxu0 %v1090
  %2209 = vmatmul.mubr.bf16.gmra.mrb[0].mxu0 %v1089
  %v2210 = vpop.f32.mrb[0].mxu0
  %v2211 = vadd.f32 %v1954, %v2210
  %v2212 = vpop.f32.mrb[0].mxu0
  %v2213 = vpop.f32.mrb[0].mxu0
  %v2214 = vadd.f32 %v1957, %v2213
  %v2215 = vpop.f32.mrb[0].mxu0
  %2216 = vmatprep.mubr.bf16.mxu0 %v1098
  %2217 = vmatmul.mubr.bf16.gmra.mrb[0].mxu0 %v1097
  %v2218 = vpop.f32.mrb[0].mxu0
  %v2219 = vadd.f32 %v1962, %v2218
  %v2220 = vpop.f32.mrb[0].mxu0
  %v2221 = vpop.f32.mrb[0].mxu0
  %v2222 = vadd.f32 %v1965, %v2221
  %v2223 = vpop.f32.mrb[0].mxu0
  %2224 = vmatprep.mubr.bf16.mxu0 %v1106
  %2225 = vmatmul.mubr.bf16.gmra.mrb[0].mxu0 %v1105
  %v2226 = vpop.f32.mrb[0].mxu0
  %v2227 = vadd.f32 %v1970, %v2226
  %v2228 = vpop.f32.mrb[0].mxu0
  %v2229 = vpop.f32.mrb[0].mxu0
  %v2230 = vadd.f32 %v1973, %v2229
  %v2231 = vpop.f32.mrb[0].mxu0
  %2232 = vmatprep.mubr.bf16.mxu0 %v1114
  %2233 = vmatmul.mubr.bf16.gmra.mrb[0].mxu0 %v1113
  %v2234 = vpop.f32.mrb[0].mxu0
  %v2235 = vadd.f32 %v1978, %v2234
  %v2236 = vpop.f32.mrb[0].mxu0
  %v2237 = vpop.f32.mrb[0].mxu0
  %v2238 = vadd.f32 %v1981, %v2237
  %v2239 = vpop.f32.mrb[0].mxu0
  %2240 = vmatprep.mubr.bf16.mxu0 %v1122
  %2241 = vmatmul.mubr.bf16.gmra.mrb[0].mxu0 %v1121
  %v2242 = vpop.f32.mrb[0].mxu0
  %v2243 = vadd.f32 %v1986, %v2242
  %v2244 = vpop.f32.mrb[0].mxu0
  %v2245 = vpop.f32.mrb[0].mxu0
  %v2246 = vadd.f32 %v1989, %v2245
  %v2247 = vpop.f32.mrb[0].mxu0
  %2248 = vmatprep.mubr.bf16.mxu0 %v1130
  %2249 = vmatmul.mubr.bf16.gmra.mrb[0].mxu0 %v1129
  %v2250 = vpop.f32.mrb[0].mxu0
  %v2251 = vadd.f32 %v1994, %v2250
  %v2252 = vpop.f32.mrb[0].mxu0
  %v2253 = vpop.f32.mrb[0].mxu0
  %v2254 = vadd.f32 %v1997, %v2253
  %v2255 = vpop.f32.mrb[0].mxu0
  %2256 = vmatprep.mubr.bf16.mxu0 %v1138
  %2257 = vmatmul.mubr.bf16.gmra.mrb[0].mxu0 %v1137
  %v2258 = vpop.f32.mrb[0].mxu0
  %v2259 = vadd.f32 %v2002, %v2258
  %v2260 = vpop.f32.mrb[0].mxu0
  %v2261 = vpop.f32.mrb[0].mxu0
  %v2262 = vadd.f32 %v2005, %v2261
  %v2263 = vpop.f32.mrb[0].mxu0
  %2264 = vmatprep.mubr.bf16.mxu0 %v1146
  %2265 = vmatmul.mubr.bf16.gmra.mrb[0].mxu0 %v1145
  %v2266 = vpop.f32.mrb[0].mxu0
  %v2267 = vadd.f32 %v2010, %v2266
  %v2268 = vpop.f32.mrb[0].mxu0
  %v2269 = vpop.f32.mrb[0].mxu0
  %v2270 = vadd.f32 %v2013, %v2269
  %v2271 = vpop.f32.mrb[0].mxu0
  %2272 = vmatprep.mubr.bf16.mxu0 %v1154
  %2273 = vmatmul.mubr.bf16.gmra.mrb[0].mxu0 %v1153
  %v2274 = vpop.f32.mrb[0].mxu0
  %v2275 = vadd.f32 %v2018, %v2274
  %v2276 = vpop.f32.mrb[0].mxu0
  %v2277 = vpop.f32.mrb[0].mxu0
  %v2278 = vadd.f32 %v2021, %v2277
  %v2279 = vpop.f32.mrb[0].mxu0
  %2280 = vmatprep.mubr.bf16.mxu0 %v1162
  %2281 = vmatmul.mubr.bf16.gmra.mrb[0].mxu0 %v1161
  %v2282 = vpop.f32.mrb[0].mxu0
  %v2283 = vadd.f32 %v2026, %v2282
  %v2284 = vpop.f32.mrb[0].mxu0
  %v2285 = vpop.f32.mrb[0].mxu0
  %v2286 = vadd.f32 %v2029, %v2285
  %v2287 = vpop.f32.mrb[0].mxu0
  %2288 = vmatprep.mubr.bf16.mxu0 %v1170
  %2289 = vmatmul.mubr.bf16.gmra.mrb[0].mxu0 %v1169
  %v2290 = vpop.f32.mrb[0].mxu0
  %v2291 = vadd.f32 %v2034, %v2290
  %v2292 = vpop.f32.mrb[0].mxu0
  %v2293 = vpop.f32.mrb[0].mxu0
  %v2294 = vadd.f32 %v2037, %v2293
  %v2295 = vpop.f32.mrb[0].mxu0
  %2296 = vmatprep.mubr.bf16.mxu0 %v1178
  %2297 = vmatmul.mubr.bf16.gmra.mrb[0].mxu0 %v1177
  %v2298 = vpop.f32.mrb[0].mxu0
  %v2299 = vadd.f32 %v2042, %v2298
  %v2300 = vpop.f32.mrb[0].mxu0
  %v2301 = vpop.f32.mrb[0].mxu0
  %v2302 = vadd.f32 %v2045, %v2301
  %v2303 = vpop.f32.mrb[0].mxu0
  %2304 = vmatprep.mubr.bf16.mxu0 %v1186
  %2305 = vmatmul.mubr.bf16.gmra.mrb[0].mxu0 %v1185
  %v2306 = vpop.f32.mrb[0].mxu0
  %v2307 = vadd.f32 %v2050, %v2306
  %v2308 = vpop.f32.mrb[0].mxu0
  %v2309 = vpop.f32.mrb[0].mxu0
  %v2310 = vadd.f32 %v2053, %v2309
  %v2311 = vpop.f32.mrb[0].mxu0
  %2312 = vmatprep.mubr.bf16.mxu0 %v1194
  %2313 = vmatmul.mubr.bf16.gmra.mrb[0].mxu0 %v1193
  %v2314 = vpop.f32.mrb[0].mxu0
  %v2315 = vadd.f32 %v2058, %v2314
  %v2316 = vpop.f32.mrb[0].mxu0
  %v2317 = vpop.f32.mrb[0].mxu0
  %v2318 = vadd.f32 %v2061, %v2317
  %v2319 = vpop.f32.mrb[0].mxu0
  %2320 = vmatprep.mubr.bf16.mxu0 %v1202
  %2321 = vmatmul.mubr.bf16.gmra.mrb[0].mxu0 %v1201
  %v2322 = vpop.f32.mrb[0].mxu0
  %v2323 = vadd.f32 %v2066, %v2322
  %v2324 = vpop.f32.mrb[0].mxu0
  %v2325 = vpop.f32.mrb[0].mxu0
  %v2326 = vadd.f32 %v2069, %v2325
  %v2327 = vpop.f32.mrb[0].mxu0
  %2328 = vmatprep.mubr.bf16.mxu0 %v1210
  %2329 = vmatmul.mubr.bf16.gmra.mrb[0].mxu0 %v1209
  %v2330 = vpop.f32.mrb[0].mxu0
  %v2331 = vadd.f32 %v2074, %v2330
  %v2332 = vpop.f32.mrb[0].mxu0
  %v2333 = vpop.f32.mrb[0].mxu0
  %v2334 = vadd.f32 %v2077, %v2333
  %v2335 = vpop.f32.mrb[0].mxu0
  %2336 = vmatprep.mubr.bf16.mxu0 %v1218
  %2337 = vmatmul.mubr.bf16.gmra.mrb[0].mxu0 %v1217
  %v2338 = vpop.f32.mrb[0].mxu0
  %v2339 = vadd.f32 %v2082, %v2338
  %v2340 = vpop.f32.mrb[0].mxu0
  %v2341 = vpop.f32.mrb[0].mxu0
  %v2342 = vadd.f32 %v2085, %v2341
  %v2343 = vpop.f32.mrb[0].mxu0
  %2344 = vmatprep.mubr.bf16.mxu0 %v1226
  %2345 = vmatmul.mubr.bf16.gmra.mrb[0].mxu0 %v1225
  %v2346 = vpop.f32.mrb[0].mxu0
  %v2347 = vadd.f32 %v2090, %v2346
  %v2348 = vpop.f32.mrb[0].mxu0
  %v2349 = vpop.f32.mrb[0].mxu0
  %v2350 = vadd.f32 %v2093, %v2349
  %v2351 = vpop.f32.mrb[0].mxu0
  %2352 = vmatprep.mubr.bf16.mxu0 %v1234
  %2353 = vmatmul.mubr.bf16.gmra.mrb[0].mxu0 %v1233
  %v2354 = vpop.f32.mrb[0].mxu0
  %v2355 = vadd.f32 %v2098, %v2354
  %v2356 = vpop.f32.mrb[0].mxu0
  %v2357 = vpop.f32.mrb[0].mxu0
  %v2358 = vadd.f32 %v2101, %v2357
  %v2359 = vpop.f32.mrb[0].mxu0
  %2360 = vmatprep.mubr.bf16.mxu0 %v1242
  %2361 = vmatmul.mubr.bf16.gmra.mrb[0].mxu0 %v1241
  %v2362 = vpop.f32.mrb[0].mxu0
  %v2363 = vadd.f32 %v2106, %v2362
  %v2364 = vpop.f32.mrb[0].mxu0
  %v2365 = vpop.f32.mrb[0].mxu0
  %v2366 = vadd.f32 %v2109, %v2365
  %v2367 = vpop.f32.mrb[0].mxu0
  %2368 = vmatprep.mubr.bf16.mxu0 %v1250
  %2369 = vmatmul.mubr.bf16.gmra.mrb[0].mxu0 %v1249
  %v2370 = vpop.f32.mrb[0].mxu0
  %v2371 = vadd.f32 %v2114, %v2370
  %v2372 = vpop.f32.mrb[0].mxu0
  %v2373 = vpop.f32.mrb[0].mxu0
  %v2374 = vadd.f32 %v2117, %v2373
  %v2375 = vpop.f32.mrb[0].mxu0
  %2376 = vmatprep.mubr.bf16.mxu0 %v1258
  %2377 = vmatmul.mubr.bf16.gmra.mrb[0].mxu0 %v1257
  %v2378 = vpop.f32.mrb[0].mxu0
  %v2379 = vadd.f32 %v2122, %v2378
  %v2380 = vpop.f32.mrb[0].mxu0
  %v2381 = vpop.f32.mrb[0].mxu0
  %v2382 = vadd.f32 %v2125, %v2381
  %v2383 = vpop.f32.mrb[0].mxu0
  %2384 = vdwg.mxu0
  %2385 = vmatprep.subr.bf16.mxu0 0
  %2386 = vmatpush1.bf16.msra.mxu0 %v1775
  %2387 = vmatprep.subr.bf16.mxu0 0
  %2388 = vmatpush1.bf16.msra.mxu0 %v1776
  %2389 = vmatprep.subr.bf16.mxu0 0
  %2390 = vmatpush1.bf16.msra.mxu0 %v1777
  %2391 = vmatprep.subr.bf16.mxu0 0
  %2392 = vmatpush1.bf16.msra.mxu0 %v1778
  %2393 = vmatprep.subr.bf16.mxu0 0
  %2394 = vmatpush1.bf16.msra.mxu0 %v1779
  %2395 = vmatprep.subr.bf16.mxu0 0
  %2396 = vmatpush1.bf16.msra.mxu0 %v1780
  %2397 = vmatprep.subr.bf16.mxu0 0
  %2398 = vmatpush1.bf16.msra.mxu0 %v1781
  %2399 = vmatprep.subr.bf16.mxu0 0
  %2400 = vmatpush1.bf16.msra.mxu0 %v1782
  %2401 = vmatprep.subr.bf16.mxu0 0
  %2402 = vmatpush1.bf16.msra.mxu0 %v1783
  %2403 = vmatprep.subr.bf16.mxu0 0
  %2404 = vmatpush1.bf16.msra.mxu0 %v1784
  %2405 = vmatprep.subr.bf16.mxu0 0
  %2406 = vmatpush1.bf16.msra.mxu0 %v1785
  %2407 = vmatprep.subr.bf16.mxu0 0
  %2408 = vmatpush1.bf16.msra.mxu0 %v1786
  %2409 = vmatprep.subr.bf16.mxu0 0
  %2410 = vmatpush1.bf16.msra.mxu0 %v1787
  %2411 = vmatprep.subr.bf16.mxu0 0
  %2412 = vmatpush1.bf16.msra.mxu0 %v1788
  %2413 = vmatprep.subr.bf16.mxu0 0
  %2414 = vmatpush1.bf16.msra.mxu0 %v1789
  %2415 = vmatprep.subr.bf16.mxu0 0
  %2416 = vmatpush1.bf16.msra.mxu0 %v1790
  %2417 = vmatprep.mubr.bf16.mxu0 %v1044
  %2418 = vmatmul.mubr.bf16.gmra.mrb[0].mxu0 %v1043
  %v2419 = vpop.f32.mrb[0].mxu0
  %v2420 = vadd.f32 %v2163, %v2419
  %v2421 = vpop.f32.mrb[0].mxu0
  %v2422 = vpop.f32.mrb[0].mxu0
  %v2423 = vadd.f32 %v2166, %v2422
  %v2424 = vpop.f32.mrb[0].mxu0
  %2425 = vmatprep.mubr.bf16.mxu0 %v1052
  %2426 = vmatmul.mubr.bf16.gmra.mrb[0].mxu0 %v1051
  %v2427 = vpop.f32.mrb[0].mxu0
  %v2428 = vadd.f32 %v2171, %v2427
  %v2429 = vpop.f32.mrb[0].mxu0
  %v2430 = vpop.f32.mrb[0].mxu0
  %v2431 = vadd.f32 %v2174, %v2430
  %v2432 = vpop.f32.mrb[0].mxu0
  %2433 = vmatprep.mubr.bf16.mxu0 %v1060
  %2434 = vmatmul.mubr.bf16.gmra.mrb[0].mxu0 %v1059
  %v2435 = vpop.f32.mrb[0].mxu0
  %v2436 = vadd.f32 %v2179, %v2435
  %v2437 = vpop.f32.mrb[0].mxu0
  %v2438 = vpop.f32.mrb[0].mxu0
  %v2439 = vadd.f32 %v2182, %v2438
  %v2440 = vpop.f32.mrb[0].mxu0
  %2441 = vmatprep.mubr.bf16.mxu0 %v1068
  %2442 = vmatmul.mubr.bf16.gmra.mrb[0].mxu0 %v1067
  %v2443 = vpop.f32.mrb[0].mxu0
  %v2444 = vadd.f32 %v2187, %v2443
  %v2445 = vpop.f32.mrb[0].mxu0
  %v2446 = vpop.f32.mrb[0].mxu0
  %v2447 = vadd.f32 %v2190, %v2446
  %v2448 = vpop.f32.mrb[0].mxu0
  %2449 = vmatprep.mubr.bf16.mxu0 %v1076
  %2450 = vmatmul.mubr.bf16.gmra.mrb[0].mxu0 %v1075
  %v2451 = vpop.f32.mrb[0].mxu0
  %v2452 = vadd.f32 %v2195, %v2451
  %v2453 = vpop.f32.mrb[0].mxu0
  %v2454 = vpop.f32.mrb[0].mxu0
  %v2455 = vadd.f32 %v2198, %v2454
  %v2456 = vpop.f32.mrb[0].mxu0
  %2457 = vmatprep.mubr.bf16.mxu0 %v1084
  %2458 = vmatmul.mubr.bf16.gmra.mrb[0].mxu0 %v1083
  %v2459 = vpop.f32.mrb[0].mxu0
  %v2460 = vadd.f32 %v2203, %v2459
  %v2461 = vpop.f32.mrb[0].mxu0
  %v2462 = vpop.f32.mrb[0].mxu0
  %v2463 = vadd.f32 %v2206, %v2462
  %v2464 = vpop.f32.mrb[0].mxu0
  %2465 = vmatprep.mubr.bf16.mxu0 %v1092
  %2466 = vmatmul.mubr.bf16.gmra.mrb[0].mxu0 %v1091
  %v2467 = vpop.f32.mrb[0].mxu0
  %v2468 = vadd.f32 %v2211, %v2467
  %v2469 = vpop.f32.mrb[0].mxu0
  %v2470 = vpop.f32.mrb[0].mxu0
  %v2471 = vadd.f32 %v2214, %v2470
  %v2472 = vpop.f32.mrb[0].mxu0
  %2473 = vmatprep.mubr.bf16.mxu0 %v1100
  %2474 = vmatmul.mubr.bf16.gmra.mrb[0].mxu0 %v1099
  %v2475 = vpop.f32.mrb[0].mxu0
  %v2476 = vadd.f32 %v2219, %v2475
  %v2477 = vpop.f32.mrb[0].mxu0
  %v2478 = vpop.f32.mrb[0].mxu0
  %v2479 = vadd.f32 %v2222, %v2478
  %v2480 = vpop.f32.mrb[0].mxu0
  %2481 = vmatprep.mubr.bf16.mxu0 %v1108
  %2482 = vmatmul.mubr.bf16.gmra.mrb[0].mxu0 %v1107
  %v2483 = vpop.f32.mrb[0].mxu0
  %v2484 = vadd.f32 %v2227, %v2483
  %v2485 = vpop.f32.mrb[0].mxu0
  %v2486 = vpop.f32.mrb[0].mxu0
  %v2487 = vadd.f32 %v2230, %v2486
  %v2488 = vpop.f32.mrb[0].mxu0
  %2489 = vmatprep.mubr.bf16.mxu0 %v1116
  %2490 = vmatmul.mubr.bf16.gmra.mrb[0].mxu0 %v1115
  %v2491 = vpop.f32.mrb[0].mxu0
  %v2492 = vadd.f32 %v2235, %v2491
  %v2493 = vpop.f32.mrb[0].mxu0
  %v2494 = vpop.f32.mrb[0].mxu0
  %v2495 = vadd.f32 %v2238, %v2494
  %v2496 = vpop.f32.mrb[0].mxu0
  %2497 = vmatprep.mubr.bf16.mxu0 %v1124
  %2498 = vmatmul.mubr.bf16.gmra.mrb[0].mxu0 %v1123
  %v2499 = vpop.f32.mrb[0].mxu0
  %v2500 = vadd.f32 %v2243, %v2499
  %v2501 = vpop.f32.mrb[0].mxu0
  %v2502 = vpop.f32.mrb[0].mxu0
  %v2503 = vadd.f32 %v2246, %v2502
  %v2504 = vpop.f32.mrb[0].mxu0
  %2505 = vmatprep.mubr.bf16.mxu0 %v1132
  %2506 = vmatmul.mubr.bf16.gmra.mrb[0].mxu0 %v1131
  %v2507 = vpop.f32.mrb[0].mxu0
  %v2508 = vadd.f32 %v2251, %v2507
  %v2509 = vpop.f32.mrb[0].mxu0
  %v2510 = vpop.f32.mrb[0].mxu0
  %v2511 = vadd.f32 %v2254, %v2510
  %v2512 = vpop.f32.mrb[0].mxu0
  %2513 = vmatprep.mubr.bf16.mxu0 %v1140
  %2514 = vmatmul.mubr.bf16.gmra.mrb[0].mxu0 %v1139
  %v2515 = vpop.f32.mrb[0].mxu0
  %v2516 = vadd.f32 %v2259, %v2515
  %v2517 = vpop.f32.mrb[0].mxu0
  %v2518 = vpop.f32.mrb[0].mxu0
  %v2519 = vadd.f32 %v2262, %v2518
  %v2520 = vpop.f32.mrb[0].mxu0
  %2521 = vmatprep.mubr.bf16.mxu0 %v1148
  %2522 = vmatmul.mubr.bf16.gmra.mrb[0].mxu0 %v1147
  %v2523 = vpop.f32.mrb[0].mxu0
  %v2524 = vadd.f32 %v2267, %v2523
  %v2525 = vpop.f32.mrb[0].mxu0
  %v2526 = vpop.f32.mrb[0].mxu0
  %v2527 = vadd.f32 %v2270, %v2526
  %v2528 = vpop.f32.mrb[0].mxu0
  %2529 = vmatprep.mubr.bf16.mxu0 %v1156
  %2530 = vmatmul.mubr.bf16.gmra.mrb[0].mxu0 %v1155
  %v2531 = vpop.f32.mrb[0].mxu0
  %v2532 = vadd.f32 %v2275, %v2531
  %v2533 = vpop.f32.mrb[0].mxu0
  %v2534 = vpop.f32.mrb[0].mxu0
  %v2535 = vadd.f32 %v2278, %v2534
  %v2536 = vpop.f32.mrb[0].mxu0
  %2537 = vmatprep.mubr.bf16.mxu0 %v1164
  %2538 = vmatmul.mubr.bf16.gmra.mrb[0].mxu0 %v1163
  %v2539 = vpop.f32.mrb[0].mxu0
  %v2540 = vadd.f32 %v2283, %v2539
  %v2541 = vpop.f32.mrb[0].mxu0
  %v2542 = vpop.f32.mrb[0].mxu0
  %v2543 = vadd.f32 %v2286, %v2542
  %v2544 = vpop.f32.mrb[0].mxu0
  %2545 = vmatprep.mubr.bf16.mxu0 %v1172
  %2546 = vmatmul.mubr.bf16.gmra.mrb[0].mxu0 %v1171
  %v2547 = vpop.f32.mrb[0].mxu0
  %v2548 = vadd.f32 %v2291, %v2547
  %v2549 = vpop.f32.mrb[0].mxu0
  %v2550 = vpop.f32.mrb[0].mxu0
  %v2551 = vadd.f32 %v2294, %v2550
  %v2552 = vpop.f32.mrb[0].mxu0
  %2553 = vmatprep.mubr.bf16.mxu0 %v1180
  %2554 = vmatmul.mubr.bf16.gmra.mrb[0].mxu0 %v1179
  %v2555 = vpop.f32.mrb[0].mxu0
  %v2556 = vadd.f32 %v2299, %v2555
  %v2557 = vpop.f32.mrb[0].mxu0
  %v2558 = vpop.f32.mrb[0].mxu0
  %v2559 = vadd.f32 %v2302, %v2558
  %v2560 = vpop.f32.mrb[0].mxu0
  %2561 = vmatprep.mubr.bf16.mxu0 %v1188
  %2562 = vmatmul.mubr.bf16.gmra.mrb[0].mxu0 %v1187
  %v2563 = vpop.f32.mrb[0].mxu0
  %v2564 = vadd.f32 %v2307, %v2563
  %v2565 = vpop.f32.mrb[0].mxu0
  %v2566 = vpop.f32.mrb[0].mxu0
  %v2567 = vadd.f32 %v2310, %v2566
  %v2568 = vpop.f32.mrb[0].mxu0
  %2569 = vmatprep.mubr.bf16.mxu0 %v1196
  %2570 = vmatmul.mubr.bf16.gmra.mrb[0].mxu0 %v1195
  %v2571 = vpop.f32.mrb[0].mxu0
  %v2572 = vadd.f32 %v2315, %v2571
  %v2573 = vpop.f32.mrb[0].mxu0
  %v2574 = vpop.f32.mrb[0].mxu0
  %v2575 = vadd.f32 %v2318, %v2574
  %v2576 = vpop.f32.mrb[0].mxu0
  %2577 = vmatprep.mubr.bf16.mxu0 %v1204
  %2578 = vmatmul.mubr.bf16.gmra.mrb[0].mxu0 %v1203
  %v2579 = vpop.f32.mrb[0].mxu0
  %v2580 = vadd.f32 %v2323, %v2579
  %v2581 = vpop.f32.mrb[0].mxu0
  %v2582 = vpop.f32.mrb[0].mxu0
  %v2583 = vadd.f32 %v2326, %v2582
  %v2584 = vpop.f32.mrb[0].mxu0
  %2585 = vmatprep.mubr.bf16.mxu0 %v1212
  %2586 = vmatmul.mubr.bf16.gmra.mrb[0].mxu0 %v1211
  %v2587 = vpop.f32.mrb[0].mxu0
  %v2588 = vadd.f32 %v2331, %v2587
  %v2589 = vpop.f32.mrb[0].mxu0
  %v2590 = vpop.f32.mrb[0].mxu0
  %v2591 = vadd.f32 %v2334, %v2590
  %v2592 = vpop.f32.mrb[0].mxu0
  %2593 = vmatprep.mubr.bf16.mxu0 %v1220
  %2594 = vmatmul.mubr.bf16.gmra.mrb[0].mxu0 %v1219
  %v2595 = vpop.f32.mrb[0].mxu0
  %v2596 = vadd.f32 %v2339, %v2595
  %v2597 = vpop.f32.mrb[0].mxu0
  %v2598 = vpop.f32.mrb[0].mxu0
  %v2599 = vadd.f32 %v2342, %v2598
  %v2600 = vpop.f32.mrb[0].mxu0
  %2601 = vmatprep.mubr.bf16.mxu0 %v1228
  %2602 = vmatmul.mubr.bf16.gmra.mrb[0].mxu0 %v1227
  %v2603 = vpop.f32.mrb[0].mxu0
  %v2604 = vadd.f32 %v2347, %v2603
  %v2605 = vpop.f32.mrb[0].mxu0
  %v2606 = vpop.f32.mrb[0].mxu0
  %v2607 = vadd.f32 %v2350, %v2606
  %v2608 = vpop.f32.mrb[0].mxu0
  %2609 = vmatprep.mubr.bf16.mxu0 %v1236
  %2610 = vmatmul.mubr.bf16.gmra.mrb[0].mxu0 %v1235
  %v2611 = vpop.f32.mrb[0].mxu0
  %v2612 = vadd.f32 %v2355, %v2611
  %v2613 = vpop.f32.mrb[0].mxu0
  %v2614 = vpop.f32.mrb[0].mxu0
  %v2615 = vadd.f32 %v2358, %v2614
  %v2616 = vpop.f32.mrb[0].mxu0
  %2617 = vmatprep.mubr.bf16.mxu0 %v1244
  %2618 = vmatmul.mubr.bf16.gmra.mrb[0].mxu0 %v1243
  %v2619 = vpop.f32.mrb[0].mxu0
  %v2620 = vadd.f32 %v2363, %v2619
  %v2621 = vpop.f32.mrb[0].mxu0
  %v2622 = vpop.f32.mrb[0].mxu0
  %v2623 = vadd.f32 %v2366, %v2622
  %v2624 = vpop.f32.mrb[0].mxu0
  %2625 = vmatprep.mubr.bf16.mxu0 %v1252
  %2626 = vmatmul.mubr.bf16.gmra.mrb[0].mxu0 %v1251
  %v2627 = vpop.f32.mrb[0].mxu0
  %v2628 = vadd.f32 %v2371, %v2627
  %v2629 = vpop.f32.mrb[0].mxu0
  %v2630 = vpop.f32.mrb[0].mxu0
  %v2631 = vadd.f32 %v2374, %v2630
  %v2632 = vpop.f32.mrb[0].mxu0
  %2633 = vmatprep.mubr.bf16.mxu0 %v1260
  %2634 = vmatmul.mubr.bf16.gmra.mrb[0].mxu0 %v1259
  %v2635 = vpop.f32.mrb[0].mxu0
  %v2636 = vadd.f32 %v2379, %v2635
  %v2637 = vpop.f32.mrb[0].mxu0
  %v2638 = vpop.f32.mrb[0].mxu0
  %v2639 = vadd.f32 %v2382, %v2638
  %v2640 = vpop.f32.mrb[0].mxu0
  %2641 = vdwg.mxu0
  %2642 = vmatprep.subr.bf16.mxu0 0
  %2643 = vmatpush1.bf16.msra.mxu0 %v1791
  %2644 = vmatprep.subr.bf16.mxu0 0
  %2645 = vmatpush1.bf16.msra.mxu0 %v1792
  %2646 = vmatprep.subr.bf16.mxu0 0
  %2647 = vmatpush1.bf16.msra.mxu0 %v1793
  %2648 = vmatprep.subr.bf16.mxu0 0
  %2649 = vmatpush1.bf16.msra.mxu0 %v1794
  %2650 = vmatprep.subr.bf16.mxu0 0
  %2651 = vmatpush1.bf16.msra.mxu0 %v1795
  %2652 = vmatprep.subr.bf16.mxu0 0
  %2653 = vmatpush1.bf16.msra.mxu0 %v1796
  %2654 = vmatprep.subr.bf16.mxu0 0
  %2655 = vmatpush1.bf16.msra.mxu0 %v1797
  %2656 = vmatprep.subr.bf16.mxu0 0
  %2657 = vmatpush1.bf16.msra.mxu0 %v1798
  %2658 = vmatprep.subr.bf16.mxu0 0
  %2659 = vmatpush1.bf16.msra.mxu0 %v1799
  %2660 = vmatprep.subr.bf16.mxu0 0
  %2661 = vmatpush1.bf16.msra.mxu0 %v1800
  %2662 = vmatprep.subr.bf16.mxu0 0
  %2663 = vmatpush1.bf16.msra.mxu0 %v1801
  %2664 = vmatprep.subr.bf16.mxu0 0
  %2665 = vmatpush1.bf16.msra.mxu0 %v1802
  %2666 = vmatprep.subr.bf16.mxu0 0
  %2667 = vmatpush1.bf16.msra.mxu0 %v1803
  %2668 = vmatprep.subr.bf16.mxu0 0
  %2669 = vmatpush1.bf16.msra.mxu0 %v1804
  %2670 = vmatprep.subr.bf16.mxu0 0
  %2671 = vmatpush1.bf16.msra.mxu0 %v1805
  %2672 = vmatprep.subr.bf16.mxu0 0
  %2673 = vmatpush1.bf16.msra.mxu0 %v1806
  %2674 = vmatprep.mubr.bf16.mxu0 %v1046
  %2675 = vmatmul.mubr.bf16.gmra.mrb[0].mxu0 %v1045
  %v2676 = vpop.f32.mrb[0].mxu0
  %v2677 = vadd.f32 %v2420, %v2676
  %v2678 = vpop.f32.mrb[0].mxu0
  %v2679 = vpop.f32.mrb[0].mxu0
  %v2680 = vadd.f32 %v2423, %v2679
  %v2681 = vpop.f32.mrb[0].mxu0
  %2682 = vmatprep.mubr.bf16.mxu0 %v1054
  %2683 = vmatmul.mubr.bf16.gmra.mrb[0].mxu0 %v1053
  %v2684 = vpop.f32.mrb[0].mxu0
  %v2685 = vadd.f32 %v2428, %v2684
  %v2686 = vpop.f32.mrb[0].mxu0
  %v2687 = vpop.f32.mrb[0].mxu0
  %v2688 = vadd.f32 %v2431, %v2687
  %v2689 = vpop.f32.mrb[0].mxu0
  %2690 = vmatprep.mubr.bf16.mxu0 %v1062
  %2691 = vmatmul.mubr.bf16.gmra.mrb[0].mxu0 %v1061
  %v2692 = vpop.f32.mrb[0].mxu0
  %v2693 = vadd.f32 %v2436, %v2692
  %v2694 = vpop.f32.mrb[0].mxu0
  %v2695 = vpop.f32.mrb[0].mxu0
  %v2696 = vadd.f32 %v2439, %v2695
  %v2697 = vpop.f32.mrb[0].mxu0
  %2698 = vmatprep.mubr.bf16.mxu0 %v1070
  %2699 = vmatmul.mubr.bf16.gmra.mrb[0].mxu0 %v1069
  %v2700 = vpop.f32.mrb[0].mxu0
  %v2701 = vadd.f32 %v2444, %v2700
  %v2702 = vpop.f32.mrb[0].mxu0
  %v2703 = vpop.f32.mrb[0].mxu0
  %v2704 = vadd.f32 %v2447, %v2703
  %v2705 = vpop.f32.mrb[0].mxu0
  %2706 = vmatprep.mubr.bf16.mxu0 %v1078
  %2707 = vmatmul.mubr.bf16.gmra.mrb[0].mxu0 %v1077
  %v2708 = vpop.f32.mrb[0].mxu0
  %v2709 = vadd.f32 %v2452, %v2708
  %v2710 = vpop.f32.mrb[0].mxu0
  %v2711 = vpop.f32.mrb[0].mxu0
  %v2712 = vadd.f32 %v2455, %v2711
  %v2713 = vpop.f32.mrb[0].mxu0
  %2714 = vmatprep.mubr.bf16.mxu0 %v1086
  %2715 = vmatmul.mubr.bf16.gmra.mrb[0].mxu0 %v1085
  %v2716 = vpop.f32.mrb[0].mxu0
  %v2717 = vadd.f32 %v2460, %v2716
  %v2718 = vpop.f32.mrb[0].mxu0
  %v2719 = vpop.f32.mrb[0].mxu0
  %v2720 = vadd.f32 %v2463, %v2719
  %v2721 = vpop.f32.mrb[0].mxu0
  %2722 = vmatprep.mubr.bf16.mxu0 %v1094
  %2723 = vmatmul.mubr.bf16.gmra.mrb[0].mxu0 %v1093
  %v2724 = vpop.f32.mrb[0].mxu0
  %v2725 = vadd.f32 %v2468, %v2724
  %v2726 = vpop.f32.mrb[0].mxu0
  %v2727 = vpop.f32.mrb[0].mxu0
  %v2728 = vadd.f32 %v2471, %v2727
  %v2729 = vpop.f32.mrb[0].mxu0
  %2730 = vmatprep.mubr.bf16.mxu0 %v1102
  %2731 = vmatmul.mubr.bf16.gmra.mrb[0].mxu0 %v1101
  %v2732 = vpop.f32.mrb[0].mxu0
  %v2733 = vadd.f32 %v2476, %v2732
  %v2734 = vpop.f32.mrb[0].mxu0
  %v2735 = vpop.f32.mrb[0].mxu0
  %v2736 = vadd.f32 %v2479, %v2735
  %v2737 = vpop.f32.mrb[0].mxu0
  %2738 = vmatprep.mubr.bf16.mxu0 %v1110
  %2739 = vmatmul.mubr.bf16.gmra.mrb[0].mxu0 %v1109
  %v2740 = vpop.f32.mrb[0].mxu0
  %v2741 = vadd.f32 %v2484, %v2740
  %v2742 = vpop.f32.mrb[0].mxu0
  %v2743 = vpop.f32.mrb[0].mxu0
  %v2744 = vadd.f32 %v2487, %v2743
  %v2745 = vpop.f32.mrb[0].mxu0
  %2746 = vmatprep.mubr.bf16.mxu0 %v1118
  %2747 = vmatmul.mubr.bf16.gmra.mrb[0].mxu0 %v1117
  %v2748 = vpop.f32.mrb[0].mxu0
  %v2749 = vadd.f32 %v2492, %v2748
  %v2750 = vpop.f32.mrb[0].mxu0
  %v2751 = vpop.f32.mrb[0].mxu0
  %v2752 = vadd.f32 %v2495, %v2751
  %v2753 = vpop.f32.mrb[0].mxu0
  %2754 = vmatprep.mubr.bf16.mxu0 %v1126
  %2755 = vmatmul.mubr.bf16.gmra.mrb[0].mxu0 %v1125
  %v2756 = vpop.f32.mrb[0].mxu0
  %v2757 = vadd.f32 %v2500, %v2756
  %v2758 = vpop.f32.mrb[0].mxu0
  %v2759 = vpop.f32.mrb[0].mxu0
  %v2760 = vadd.f32 %v2503, %v2759
  %v2761 = vpop.f32.mrb[0].mxu0
  %2762 = vmatprep.mubr.bf16.mxu0 %v1134
  %2763 = vmatmul.mubr.bf16.gmra.mrb[0].mxu0 %v1133
  %v2764 = vpop.f32.mrb[0].mxu0
  %v2765 = vadd.f32 %v2508, %v2764
  %v2766 = vpop.f32.mrb[0].mxu0
  %v2767 = vpop.f32.mrb[0].mxu0
  %v2768 = vadd.f32 %v2511, %v2767
  %v2769 = vpop.f32.mrb[0].mxu0
  %2770 = vmatprep.mubr.bf16.mxu0 %v1142
  %2771 = vmatmul.mubr.bf16.gmra.mrb[0].mxu0 %v1141
  %v2772 = vpop.f32.mrb[0].mxu0
  %v2773 = vadd.f32 %v2516, %v2772
  %v2774 = vpop.f32.mrb[0].mxu0
  %v2775 = vpop.f32.mrb[0].mxu0
  %v2776 = vadd.f32 %v2519, %v2775
  %v2777 = vpop.f32.mrb[0].mxu0
  %2778 = vmatprep.mubr.bf16.mxu0 %v1150
  %2779 = vmatmul.mubr.bf16.gmra.mrb[0].mxu0 %v1149
  %v2780 = vpop.f32.mrb[0].mxu0
  %v2781 = vadd.f32 %v2524, %v2780
  %v2782 = vpop.f32.mrb[0].mxu0
  %v2783 = vpop.f32.mrb[0].mxu0
  %v2784 = vadd.f32 %v2527, %v2783
  %v2785 = vpop.f32.mrb[0].mxu0
  %2786 = vmatprep.mubr.bf16.mxu0 %v1158
  %2787 = vmatmul.mubr.bf16.gmra.mrb[0].mxu0 %v1157
  %v2788 = vpop.f32.mrb[0].mxu0
  %v2789 = vadd.f32 %v2532, %v2788
  %v2790 = vpop.f32.mrb[0].mxu0
  %v2791 = vpop.f32.mrb[0].mxu0
  %v2792 = vadd.f32 %v2535, %v2791
  %v2793 = vpop.f32.mrb[0].mxu0
  %2794 = vmatprep.mubr.bf16.mxu0 %v1166
  %2795 = vmatmul.mubr.bf16.gmra.mrb[0].mxu0 %v1165
  %v2796 = vpop.f32.mrb[0].mxu0
  %v2797 = vadd.f32 %v2540, %v2796
  %v2798 = vpop.f32.mrb[0].mxu0
  %v2799 = vpop.f32.mrb[0].mxu0
  %v2800 = vadd.f32 %v2543, %v2799
  %v2801 = vpop.f32.mrb[0].mxu0
  %2802 = vmatprep.mubr.bf16.mxu0 %v1174
  %2803 = vmatmul.mubr.bf16.gmra.mrb[0].mxu0 %v1173
  %v2804 = vpop.f32.mrb[0].mxu0
  %v2805 = vadd.f32 %v2548, %v2804
  %v2806 = vpop.f32.mrb[0].mxu0
  %v2807 = vpop.f32.mrb[0].mxu0
  %v2808 = vadd.f32 %v2551, %v2807
  %v2809 = vpop.f32.mrb[0].mxu0
  %2810 = vmatprep.mubr.bf16.mxu0 %v1182
  %2811 = vmatmul.mubr.bf16.gmra.mrb[0].mxu0 %v1181
  %v2812 = vpop.f32.mrb[0].mxu0
  %v2813 = vadd.f32 %v2556, %v2812
  %v2814 = vpop.f32.mrb[0].mxu0
  %v2815 = vpop.f32.mrb[0].mxu0
  %v2816 = vadd.f32 %v2559, %v2815
  %v2817 = vpop.f32.mrb[0].mxu0
  %2818 = vmatprep.mubr.bf16.mxu0 %v1190
  %2819 = vmatmul.mubr.bf16.gmra.mrb[0].mxu0 %v1189
  %v2820 = vpop.f32.mrb[0].mxu0
  %v2821 = vadd.f32 %v2564, %v2820
  %v2822 = vpop.f32.mrb[0].mxu0
  %v2823 = vpop.f32.mrb[0].mxu0
  %v2824 = vadd.f32 %v2567, %v2823
  %v2825 = vpop.f32.mrb[0].mxu0
  %2826 = vmatprep.mubr.bf16.mxu0 %v1198
  %2827 = vmatmul.mubr.bf16.gmra.mrb[0].mxu0 %v1197
  %v2828 = vpop.f32.mrb[0].mxu0
  %v2829 = vadd.f32 %v2572, %v2828
  %v2830 = vpop.f32.mrb[0].mxu0
  %v2831 = vpop.f32.mrb[0].mxu0
  %v2832 = vadd.f32 %v2575, %v2831
  %v2833 = vpop.f32.mrb[0].mxu0
  %2834 = vmatprep.mubr.bf16.mxu0 %v1206
  %2835 = vmatmul.mubr.bf16.gmra.mrb[0].mxu0 %v1205
  %v2836 = vpop.f32.mrb[0].mxu0
  %v2837 = vadd.f32 %v2580, %v2836
  %v2838 = vpop.f32.mrb[0].mxu0
  %v2839 = vpop.f32.mrb[0].mxu0
  %v2840 = vadd.f32 %v2583, %v2839
  %v2841 = vpop.f32.mrb[0].mxu0
  %2842 = vmatprep.mubr.bf16.mxu0 %v1214
  %2843 = vmatmul.mubr.bf16.gmra.mrb[0].mxu0 %v1213
  %v2844 = vpop.f32.mrb[0].mxu0
  %v2845 = vadd.f32 %v2588, %v2844
  %v2846 = vpop.f32.mrb[0].mxu0
  %v2847 = vpop.f32.mrb[0].mxu0
  %v2848 = vadd.f32 %v2591, %v2847
  %v2849 = vpop.f32.mrb[0].mxu0
  %2850 = vmatprep.mubr.bf16.mxu0 %v1222
  %2851 = vmatmul.mubr.bf16.gmra.mrb[0].mxu0 %v1221
  %v2852 = vpop.f32.mrb[0].mxu0
  %v2853 = vadd.f32 %v2596, %v2852
  %v2854 = vpop.f32.mrb[0].mxu0
  %v2855 = vpop.f32.mrb[0].mxu0
  %v2856 = vadd.f32 %v2599, %v2855
  %v2857 = vpop.f32.mrb[0].mxu0
  %2858 = vmatprep.mubr.bf16.mxu0 %v1230
  %2859 = vmatmul.mubr.bf16.gmra.mrb[0].mxu0 %v1229
  %v2860 = vpop.f32.mrb[0].mxu0
  %v2861 = vadd.f32 %v2604, %v2860
  %v2862 = vpop.f32.mrb[0].mxu0
  %v2863 = vpop.f32.mrb[0].mxu0
  %v2864 = vadd.f32 %v2607, %v2863
  %v2865 = vpop.f32.mrb[0].mxu0
  %2866 = vmatprep.mubr.bf16.mxu0 %v1238
  %2867 = vmatmul.mubr.bf16.gmra.mrb[0].mxu0 %v1237
  %v2868 = vpop.f32.mrb[0].mxu0
  %v2869 = vadd.f32 %v2612, %v2868
  %v2870 = vpop.f32.mrb[0].mxu0
  %v2871 = vpop.f32.mrb[0].mxu0
  %v2872 = vadd.f32 %v2615, %v2871
  %v2873 = vpop.f32.mrb[0].mxu0
  %2874 = vmatprep.mubr.bf16.mxu0 %v1246
  %2875 = vmatmul.mubr.bf16.gmra.mrb[0].mxu0 %v1245
  %v2876 = vpop.f32.mrb[0].mxu0
  %v2877 = vadd.f32 %v2620, %v2876
  %v2878 = vpop.f32.mrb[0].mxu0
  %v2879 = vpop.f32.mrb[0].mxu0
  %v2880 = vadd.f32 %v2623, %v2879
  %v2881 = vpop.f32.mrb[0].mxu0
  %2882 = vmatprep.mubr.bf16.mxu0 %v1254
  %2883 = vmatmul.mubr.bf16.gmra.mrb[0].mxu0 %v1253
  %v2884 = vpop.f32.mrb[0].mxu0
  %v2885 = vadd.f32 %v2628, %v2884
  %v2886 = vpop.f32.mrb[0].mxu0
  %v2887 = vpop.f32.mrb[0].mxu0
  %v2888 = vadd.f32 %v2631, %v2887
  %v2889 = vpop.f32.mrb[0].mxu0
  %2890 = vmatprep.mubr.bf16.mxu0 %v1262
  %2891 = vmatmul.mubr.bf16.gmra.mrb[0].mxu0 %v1261
  %v2892 = vpop.f32.mrb[0].mxu0
  %v2893 = vadd.f32 %v2636, %v2892
  %v2894 = vpop.f32.mrb[0].mxu0
  %v2895 = vpop.f32.mrb[0].mxu0
  %v2896 = vadd.f32 %v2639, %v2895
  %v2897 = vpop.f32.mrb[0].mxu0
  %2898 = vdwg.mxu0
  %2899 = vst [vmem:[%s2] sm:$0xff] %v2677
  %2900 = vst [vmem:[%s2 + $0x8] sm:$0xff] %v2680
  %2901 = vst [vmem:[%s2 + $0x10] sm:$0xff] %v2685
  %2902 = vst [vmem:[%s2 + $0x18] sm:$0xff] %v2688
  %2903 = vst [vmem:[%s2 + $0x20] sm:$0xff] %v2693
  %2904 = vst [vmem:[%s2 + $0x28] sm:$0xff] %v2696
  %2905 = vst [vmem:[%s2 + $0x30] sm:$0xff] %v2701
  %2906 = vst [vmem:[%s2 + $0x38] sm:$0xff] %v2704
  %2907 = vst [vmem:[%s2 + $0x40] sm:$0xff] %v2709
  %2908 = vst [vmem:[%s2 + $0x48] sm:$0xff] %v2712
  %2909 = vst [vmem:[%s2 + $0x50] sm:$0xff] %v2717
  %2910 = vst [vmem:[%s2 + $0x58] sm:$0xff] %v2720
  %2911 = vst [vmem:[%s2 + $0x60] sm:$0xff] %v2725
  %2912 = vst [vmem:[%s2 + $0x68] sm:$0xff] %v2728
  %2913 = vst [vmem:[%s2 + $0x70] sm:$0xff] %v2733
  %2914 = vst [vmem:[%s2 + $0x78] sm:$0xff] %v2736
  %2915 = vst [vmem:[%s2 + $0x80] sm:$0xff] %v2741
  %2916 = vst [vmem:[%s2 + $0x88] sm:$0xff] %v2744
  %2917 = vst [vmem:[%s2 + $0x90] sm:$0xff] %v2749
  %2918 = vst [vmem:[%s2 + $0x98] sm:$0xff] %v2752
  %2919 = vst [vmem:[%s2 + $0xa0] sm:$0xff] %v2757
  %2920 = vst [vmem:[%s2 + $0xa8] sm:$0xff] %v2760
  %2921 = vst [vmem:[%s2 + $0xb0] sm:$0xff] %v2765
  %2922 = vst [vmem:[%s2 + $0xb8] sm:$0xff] %v2768
  %2923 = vst [vmem:[%s2 + $0xc0] sm:$0xff] %v2773
  %2924 = vst [vmem:[%s2 + $0xc8] sm:$0xff] %v2776
  %2925 = vst [vmem:[%s2 + $0xd0] sm:$0xff] %v2781
  %2926 = vst [vmem:[%s2 + $0xd8] sm:$0xff] %v2784
  %2927 = vst [vmem:[%s2 + $0xe0] sm:$0xff] %v2789
  %2928 = vst [vmem:[%s2 + $0xe8] sm:$0xff] %v2792
  %2929 = vst [vmem:[%s2 + $0xf0] sm:$0xff] %v2797
  %2930 = vst [vmem:[%s2 + $0xf8] sm:$0xff] %v2800
  %2931 = vst [vmem:[%s2 + $0x100] sm:$0xff] %v2805
  %2932 = vst [vmem:[%s2 + $0x108] sm:$0xff] %v2808
  %2933 = vst [vmem:[%s2 + $0x110] sm:$0xff] %v2813
  %2934 = vst [vmem:[%s2 + $0x118] sm:$0xff] %v2816
  %2935 = vst [vmem:[%s2 + $0x120] sm:$0xff] %v2821
  %2936 = vst [vmem:[%s2 + $0x128] sm:$0xff] %v2824
  %2937 = vst [vmem:[%s2 + $0x130] sm:$0xff] %v2829
  %2938 = vst [vmem:[%s2 + $0x138] sm:$0xff] %v2832
  %2939 = vst [vmem:[%s2 + $0x140] sm:$0xff] %v2837
  %2940 = vst [vmem:[%s2 + $0x148] sm:$0xff] %v2840
  %2941 = vst [vmem:[%s2 + $0x150] sm:$0xff] %v2845
  %2942 = vst [vmem:[%s2 + $0x158] sm:$0xff] %v2848
  %2943 = vst [vmem:[%s2 + $0x160] sm:$0xff] %v2853
  %2944 = vst [vmem:[%s2 + $0x168] sm:$0xff] %v2856
  %2945 = vst [vmem:[%s2 + $0x170] sm:$0xff] %v2861
  %2946 = vst [vmem:[%s2 + $0x178] sm:$0xff] %v2864
  %2947 = vst [vmem:[%s2 + $0x180] sm:$0xff] %v2869
  %2948 = vst [vmem:[%s2 + $0x188] sm:$0xff] %v2872
  %2949 = vst [vmem:[%s2 + $0x190] sm:$0xff] %v2877
  %2950 = vst [vmem:[%s2 + $0x198] sm:$0xff] %v2880
  %2951 = vst [vmem:[%s2 + $0x1a0] sm:$0xff] %v2885
  %2952 = vst [vmem:[%s2 + $0x1a8] sm:$0xff] %v2888
  %2953 = vst [vmem:[%s2 + $0x1b0] sm:$0xff] %v2893
  %2954 = vst [vmem:[%s2 + $0x1b8] sm:$0xff] %v2896
  %v2955 = vadd.f32 %v2677, %v2680
  %v2956 = vadd.f32 %v2955, %v2685
  %v2957 = vadd.f32 %v2956, %v2688
  %v2958 = vadd.f32 %v2957, %v2693
  %v2959 = vadd.f32 %v2958, %v2696
  %v2960 = vadd.f32 %v2959, %v2701
  %v2961 = vadd.f32 %v2960, %v2704
  %v2962 = vadd.f32 %v2961, %v2709
  %v2963 = vadd.f32 %v2962, %v2712
  %v2964 = vadd.f32 %v2963, %v2717
  %v2965 = vadd.f32 %v2964, %v2720
  %v2966 = vadd.f32 %v2965, %v2725
  %v2967 = vadd.f32 %v2966, %v2728
  %v2968 = vadd.f32 %v2967, %v2733
  %v2969 = vadd.f32 %v2968, %v2736
  %v2970 = vadd.f32 %v2969, %v2741
  %v2971 = vadd.f32 %v2970, %v2744
  %v2972 = vadd.f32 %v2971, %v2749
  %v2973 = vadd.f32 %v2972, %v2752
  %v2974 = vadd.f32 %v2973, %v2757
  %v2975 = vadd.f32 %v2974, %v2760
  %v2976 = vadd.f32 %v2975, %v2765
  %v2977 = vadd.f32 %v2976, %v2768
  %v2978 = vadd.f32 %v2977, %v2773
  %v2979 = vadd.f32 %v2978, %v2776
  %v2980 = vadd.f32 %v2979, %v2781
  %v2981 = vadd.f32 %v2980, %v2784
  %v2982 = vadd.f32 %v2981, %v2789
  %v2983 = vadd.f32 %v2982, %v2792
  %v2984 = vadd.f32 %v2983, %v2797
  %v2985 = vadd.f32 %v2984, %v2800
  %v2986 = vadd.f32 %v2985, %v2805
  %v2987 = vadd.f32 %v2986, %v2808
  %v2988 = vadd.f32 %v2987, %v2813
  %v2989 = vadd.f32 %v2988, %v2816
  %v2990 = vadd.f32 %v2989, %v2821
  %v2991 = vadd.f32 %v2990, %v2824
  %v2992 = vadd.f32 %v2991, %v2829
  %v2993 = vadd.f32 %v2992, %v2832
  %v2994 = vadd.f32 %v2993, %v2837
  %v2995 = vadd.f32 %v2994, %v2840
  %v2996 = vadd.f32 %v2995, %v2845
  %v2997 = vadd.f32 %v2996, %v2848
  %v2998 = vadd.f32 %v2997, %v2853
  %v2999 = vadd.f32 %v2998, %v2856
  %v3000 = vadd.f32 %v2999, %v2861
  %v3001 = vadd.f32 %v3000, %v2864
  %v3002 = vadd.f32 %v3001, %v2869
  %v3003 = vadd.f32 %v3002, %v2872
  %v3004 = vadd.f32 %v3003, %v2877
  %v3005 = vadd.f32 %v3004, %v2880
  %v3006 = vadd.f32 %v3005, %v2885
  %v3007 = vadd.f32 %v3006, %v2888
  %v3008 = vadd.f32 %v3007, %v2893
  %v3009 = vadd.f32 %v3008, %v2896
  %v3010 = vrot.slane %v3009, 4
  %v3011 = vadd.f32 %v3009, %v3010
  %v3012 = vrot.slane %v3011, 2
  %v3013 = vadd.f32 %v3011, %v3012
  %v3014 = vrot.slane %v3013, 1
  %v3015 = vadd.f32 %v3013, %v3014
  %3016 = vst [vmem:[%s3] sm:$0x1] %v3015
  %v3017 = vmul.f32 %v2677, %v2677
  %v3018 = vmul.f32 %v2680, %v2680
  %v3019 = vmul.f32 %v2685, %v2685
  %v3020 = vmul.f32 %v2688, %v2688
  %v3021 = vmul.f32 %v2693, %v2693
  %v3022 = vmul.f32 %v2696, %v2696
  %v3023 = vmul.f32 %v2701, %v2701
  %v3024 = vmul.f32 %v2704, %v2704
  %v3025 = vmul.f32 %v2709, %v2709
  %v3026 = vmul.f32 %v2712, %v2712
  %v3027 = vmul.f32 %v2717, %v2717
  %v3028 = vmul.f32 %v2720, %v2720
  %v3029 = vmul.f32 %v2725, %v2725
  %v3030 = vmul.f32 %v2728, %v2728
  %v3031 = vmul.f32 %v2733, %v2733
  %v3032 = vmul.f32 %v2736, %v2736
  %v3033 = vmul.f32 %v2741, %v2741
  %v3034 = vmul.f32 %v2744, %v2744
  %v3035 = vmul.f32 %v2749, %v2749
  %v3036 = vmul.f32 %v2752, %v2752
  %v3037 = vmul.f32 %v2757, %v2757
  %v3038 = vmul.f32 %v2760, %v2760
  %v3039 = vmul.f32 %v2765, %v2765
  %v3040 = vmul.f32 %v2768, %v2768
  %v3041 = vmul.f32 %v2773, %v2773
  %v3042 = vmul.f32 %v2776, %v2776
  %v3043 = vmul.f32 %v2781, %v2781
  %v3044 = vmul.f32 %v2784, %v2784
  %v3045 = vmul.f32 %v2789, %v2789
  %v3046 = vmul.f32 %v2792, %v2792
  %v3047 = vmul.f32 %v2797, %v2797
  %v3048 = vmul.f32 %v2800, %v2800
  %v3049 = vmul.f32 %v2805, %v2805
  %v3050 = vmul.f32 %v2808, %v2808
  %v3051 = vmul.f32 %v2813, %v2813
  %v3052 = vmul.f32 %v2816, %v2816
  %v3053 = vmul.f32 %v2821, %v2821
  %v3054 = vmul.f32 %v2824, %v2824
  %v3055 = vmul.f32 %v2829, %v2829
  %v3056 = vmul.f32 %v2832, %v2832
  %v3057 = vmul.f32 %v2837, %v2837
  %v3058 = vmul.f32 %v2840, %v2840
  %v3059 = vmul.f32 %v2845, %v2845
  %v3060 = vmul.f32 %v2848, %v2848
  %v3061 = vmul.f32 %v2853, %v2853
  %v3062 = vmul.f32 %v2856, %v2856
  %v3063 = vmul.f32 %v2861, %v2861
  %v3064 = vmul.f32 %v2864, %v2864
  %v3065 = vmul.f32 %v2869, %v2869
  %v3066 = vmul.f32 %v2872, %v2872
  %v3067 = vmul.f32 %v2877, %v2877
  %v3068 = vmul.f32 %v2880, %v2880
  %v3069 = vmul.f32 %v2885, %v2885
  %v3070 = vmul.f32 %v2888, %v2888
  %v3071 = vmul.f32 %v2893, %v2893
  %v3072 = vmul.f32 %v2896, %v2896
  %v3073 = vadd.f32 %v3017, %v3018
  %v3074 = vadd.f32 %v3073, %v3019
  %v3075 = vadd.f32 %v3074, %v3020
  %v3076 = vadd.f32 %v3075, %v3021
  %v3077 = vadd.f32 %v3076, %v3022
  %v3078 = vadd.f32 %v3077, %v3023
  %v3079 = vadd.f32 %v3078, %v3024
  %v3080 = vadd.f32 %v3079, %v3025
  %v3081 = vadd.f32 %v3080, %v3026
  %v3082 = vadd.f32 %v3081, %v3027
  %v3083 = vadd.f32 %v3082, %v3028
  %v3084 = vadd.f32 %v3083, %v3029
  %v3085 = vadd.f32 %v3084, %v3030
  %v3086 = vadd.f32 %v3085, %v3031
  %v3087 = vadd.f32 %v3086, %v3032
  %v3088 = vadd.f32 %v3087, %v3033
  %v3089 = vadd.f32 %v3088, %v3034
  %v3090 = vadd.f32 %v3089, %v3035
  %v3091 = vadd.f32 %v3090, %v3036
  %v3092 = vadd.f32 %v3091, %v3037
  %v3093 = vadd.f32 %v3092, %v3038
  %v3094 = vadd.f32 %v3093, %v3039
  %v3095 = vadd.f32 %v3094, %v3040
  %v3096 = vadd.f32 %v3095, %v3041
  %v3097 = vadd.f32 %v3096, %v3042
  %v3098 = vadd.f32 %v3097, %v3043
  %v3099 = vadd.f32 %v3098, %v3044
  %v3100 = vadd.f32 %v3099, %v3045
  %v3101 = vadd.f32 %v3100, %v3046
  %v3102 = vadd.f32 %v3101, %v3047
  %v3103 = vadd.f32 %v3102, %v3048
  %v3104 = vadd.f32 %v3103, %v3049
  %v3105 = vadd.f32 %v3104, %v3050
  %v3106 = vadd.f32 %v3105, %v3051
  %v3107 = vadd.f32 %v3106, %v3052
  %v3108 = vadd.f32 %v3107, %v3053
  %v3109 = vadd.f32 %v3108, %v3054
  %v3110 = vadd.f32 %v3109, %v3055
  %v3111 = vadd.f32 %v3110, %v3056
  %v3112 = vadd.f32 %v3111, %v3057
  %v3113 = vadd.f32 %v3112, %v3058
  %v3114 = vadd.f32 %v3113, %v3059
  %v3115 = vadd.f32 %v3114, %v3060
  %v3116 = vadd.f32 %v3115, %v3061
  %v3117 = vadd.f32 %v3116, %v3062
  %v3118 = vadd.f32 %v3117, %v3063
  %v3119 = vadd.f32 %v3118, %v3064
  %v3120 = vadd.f32 %v3119, %v3065
  %v3121 = vadd.f32 %v3120, %v3066
  %v3122 = vadd.f32 %v3121, %v3067
  %v3123 = vadd.f32 %v3122, %v3068
  %v3124 = vadd.f32 %v3123, %v3069
  %v3125 = vadd.f32 %v3124, %v3070
  %v3126 = vadd.f32 %v3125, %v3071
  %v3127 = vadd.f32 %v3126, %v3072
  %v3128 = vrot.slane %v3127, 4
  %v3129 = vadd.f32 %v3127, %v3128
  %v3130 = vrot.slane %v3129, 2
  %v3131 = vadd.f32 %v3129, %v3130
  %v3132 = vrot.slane %v3131, 1
  %v3133 = vadd.f32 %v3131, %v3132
  %3134 = vst [vmem:[%s4] sm:$0x1] %v3133
  // Predicated region
  $region10: #{discriminator_forward.4} parent=0 // pred_check
    _
  $region11: #{discriminator_forward.4} parent=0 // pred_check_branch
    %3136 = sbr.rel (0) target = $region13
  $region12: #{discriminator_forward.4} parent=0 // pred_region
    _
  $region13: #{discriminator_forward.4} parent=0 // pred_fallthru
    _
  // Predicated region
  $region14: #{discriminator_forward.4} parent=0 // pred_check
    _
  $region15: #{discriminator_forward.4} parent=0 // pred_check_branch
    %3138 = sbr.rel (0) target = $region17
  $region16: #{discriminator_forward.4} parent=0 // pred_region
    _
  $region17: #{discriminator_forward.4} parent=0 // pred_fallthru
    _
  // Predicated region
  $region18: #{discriminator_forward.4} parent=0 // pred_check
    _
  $region19: #{discriminator_forward.4} parent=0 // pred_check_branch
    %3140 = sbr.rel (0) target = $region21
  $region20: #{discriminator_forward.4} parent=0 // pred_region
    _
  $region21: #{discriminator_forward.4} parent=0 // pred_fallthru
    _
  // Predicated region
  $region22: #{discriminator_forward.4} parent=0 // pred_check
    _
  $region23: #{discriminator_forward.4} parent=0 // pred_check_branch
    %3142 = sbr.rel (0) target = $region25
  $region24: #{discriminator_forward.4} parent=0 // pred_region
    _
  $region25: #{discriminator_forward.4} parent=0 // pred_fallthru
    _
  // Predicated region
  $region26: #{discriminator_forward.4} parent=0 // pred_check
    _
  $region27: #{discriminator_forward.4} parent=0 // pred_check_branch
    %3144 = sbr.rel (0) target = $region29
  $region28: #{discriminator_forward.4} parent=0 // pred_region
    _
  $region29: #{discriminator_forward.4} parent=0 // pred_fallthru
    _
  // Predicated region
  $region30: #{discriminator_forward.4} parent=0 // pred_check
    _
  $region31: #{discriminator_forward.4} parent=0 // pred_check_branch
    %3146 = sbr.rel (0) target = $region33
  $region32: #{discriminator_forward.4} parent=0 // pred_region
    _
  $region33: #{discriminator_forward.4} parent=0 // pred_fallthru
    _

</llo_original>
